<compile_context>
chip_gen: v5e
topology: v5e:2x2
jax: 0.10.0
libtpu: 0.0.40
codegen_flags: <defaults>
</compile_context>

<pallas_src>
import functools

import jax
import jax.numpy as jnp
from jax.experimental import pallas as pl
from jax.experimental.pallas import tpu as pltpu


# ----------------------------- Pallas kernel ---------------------------------

def _gru_cell(gi, gh, b_hn, h, H):
    """PyTorch GRU cell, gates packed on the lane axis as [r | z | n].

    r  = sigmoid(gi_r + gh_r)          (b_ir + b_hr folded into gi_r)
    z  = sigmoid(gi_z + gh_z)          (b_iz + b_hz folded into gi_z)
    n  = tanh   (gi_n + r * (gh_n + b_hn))
    h' = (1 - z) * n + z * h
    """
    r = jax.nn.sigmoid(gi[:, 0:H] + gh[:, 0:H])
    z = jax.nn.sigmoid(gi[:, H:2 * H] + gh[:, H:2 * H])
    n = jnp.tanh(gi[:, 2 * H:3 * H] + r * (gh[:, 2 * H:3 * H] + b_hn))
    return (1.0 - z) * n + z * h


def _seq2seq_kernel(*args, num_layers, enc_T, dec_T, Np_e, Np_d, H):
    """Whole GraphSeq2Seq forward (teacher forcing) in one kernel invocation.

    args = [enc_x, M, dec_x,
            (w_ih, b_i, w_hh, b_hn) x num_layers (encoder),
            (w_ih, b_i, w_hh, b_hn) x num_layers (decoder),
            out_ref, gi_scr, seq_scr]
    """
    f32 = jnp.float32
    n_in = 3 + 8 * num_layers
    enc_x_ref, m_ref, dec_x_ref = args[0:3]
    wrefs = args[3:n_in]
    enc_w = [wrefs[4 * l: 4 * l + 4] for l in range(num_layers)]
    dec_w = [wrefs[4 * num_layers + 4 * l: 4 * num_layers + 4 * l + 4]
             for l in range(num_layers)]
    out_ref = args[n_in]
    gi_scr = args[n_in + 1]          # (2, max_rows, 3H)  per-direction input proj
    seq_scr = args[n_in + 2]         # (max_rows, 2H)     inter-layer activations

    def run_layer(x, w_ref, b_ref, u_ref, n_ref, h_f, h_b, seq_ref, T, Np):
        """One bidirectional GRU layer; fwd/bwd recurrences interleaved."""
        rows = T * Np
        # Preamble: whole-sequence input projection, off the serial path; gates are
        # lane-packed so this is one lane-dense dot per direction.
        gi_scr[0, 0:rows, :] = (jnp.dot(x, w_ref[0], preferred_element_type=f32)
                                + b_ref[0])
        gi_scr[1, 0:rows, :] = (jnp.dot(x, w_ref[1], preferred_element_type=f32)
                                + b_ref[1])
        u_f, u_b = u_ref[0], u_ref[1]            # (H, 3H) hidden->gates per direction
        bn_f, bn_b = n_ref[0], n_ref[1]          # (1, H)
        # Serial recurrence: one (Np,H)x(H,3H) MXU dot per direction per step; static
        # time indices (fwd: t, bwd: T-1-t) -> constant-folded addresses.
        for t in range(T):
            tb = T - 1 - t
            gif = gi_scr[0, t * Np:(t + 1) * Np, :]
            gib = gi_scr[1, tb * Np:(tb + 1) * Np, :]
            ghf = jnp.dot(h_f, u_f, preferred_element_type=f32)
            ghb = jnp.dot(h_b, u_b, preferred_element_type=f32)
            h_f = _gru_cell(gif, ghf, bn_f, h_f, H)
            h_b = _gru_cell(gib, ghb, bn_b, h_b, H)
            if seq_ref is not None:
                # Output stays in original time order; fwd -> lanes 0:H, bwd -> H:2H.
                seq_ref[t * Np:(t + 1) * Np, 0:H] = h_f
                seq_ref[tb * Np:(tb + 1) * Np, H:2 * H] = h_b
        return h_f, h_b

    m = m_ref[...]                                   # (Np_d, Np_e) mask/selection
    h0_enc = jnp.zeros((Np_e, H), f32)

    # ----------------------------- encoder stack -----------------------------
    # dec_h0[layer][dir] = M @ h_n  fuses the padding-path mask + sum-over-paths
    # glue into the encoder tail (no HBM round trip for the context vector).
    dec_h0 = []
    x = enc_x_ref[...]
    for l in range(num_layers):
        w, b, u, n = enc_w[l]
        seq_ref = seq_scr if l < num_layers - 1 else None   # last layer: only h_n used
        hf, hb = run_layer(x, w, b, u, n, h0_enc, h0_enc, seq_ref, enc_T, Np_e)
        dec_h0.append((jnp.dot(m, hf, preferred_element_type=f32),
                       jnp.dot(m, hb, preferred_element_type=f32)))
        if l < num_layers - 1:
            x = seq_scr[0:enc_T * Np_e, :]

    # ----------------------------- decoder stack -----------------------------
    x = dec_x_ref[...]
    for l in range(num_layers):
        w, b, u, n = dec_w[l]
        h0f, h0b = dec_h0[l]
        seq_ref = out_ref if l == num_layers - 1 else seq_scr
        run_layer(x, w, b, u, n, h0f, h0b, seq_ref, dec_T, Np_d)
        if l < num_layers - 1:
            x = seq_scr[0:dec_T * Np_d, :]


def graph_seq2seq_pallas(enc_x, m, dec_x, enc_layers, dec_layers, *,
                         enc_T, dec_T, Np_e, Np_d, H, num_layers):
    """Single fused pallas_call for the whole encoder+decoder GRU stack."""
    max_rows = max(enc_T * Np_e, dec_T * Np_d)
    inputs = [enc_x, m, dec_x]
    for layers in (enc_layers, dec_layers):
        for p in layers:
            inputs += [p["w_ih"], p["b_i"], p["w_hh"], p["b_hn"]]

    def vspec(a):
        nd = a.ndim
        return pl.BlockSpec(a.shape, lambda i, _nd=nd: (0,) * _nd)

    kernel = functools.partial(_seq2seq_kernel, num_layers=num_layers, enc_T=enc_T,
                               dec_T=dec_T, Np_e=Np_e, Np_d=Np_d, H=H)
    grid_spec = pltpu.PrefetchScalarGridSpec(
        num_scalar_prefetch=0,
        grid=(1,),
        in_specs=[vspec(a) for a in inputs],
        out_specs=pl.BlockSpec((dec_T * Np_d, 2 * H), lambda i: (0, 0)),
        scratch_shapes=[
            pltpu.VMEM((2, max_rows, 3 * H), jnp.float32),   # per-dir GI (input proj)
            pltpu.VMEM((max_rows, 2 * H), jnp.float32),      # inter-layer activations
        ],
    )
    return pl.pallas_call(
        kernel,
        out_shape=jax.ShapeDtypeStruct((dec_T * Np_d, 2 * H), jnp.float32),
        grid_spec=grid_spec,
        compiler_params=pltpu.CompilerParams(dimension_semantics=("arbitrary",)),
    )(*inputs)


# ------------------------------ model glue -----------------------------------

def init_gru_params(key, input_size, hidden_size, num_layers):
    """Gate-packed bidirectional GRU weights.

    Per layer:  w_ih (2, I, 3H), b_i (2, 1, 3H)  [b_hr/b_hz folded into b_i],
                w_hh (2, H, 3H), b_hn (2, 1, H).
    Gate column order is [r | z | n]; direction 0 = fwd, 1 = bwd.
    """
    H = hidden_size
    bound = 1.0 / (H ** 0.5)
    layers = []
    for l in range(num_layers):
        Ip = input_size if l == 0 else 2 * H           # layer >0 eats fwd+bwd concat
        key, k1, k2, k3, k4 = jax.random.split(key, 5)
        w_ih = jax.random.uniform(k1, (2, Ip, 3 * H), jnp.float32, -bound, bound)
        w_hh = jax.random.uniform(k2, (2, H, 3 * H), jnp.float32, -bound, bound)
        b_ih = jax.random.uniform(k3, (2, 1, 3 * H), jnp.float32, -bound, bound)
        b_hh = jax.random.uniform(k4, (2, 1, 3 * H), jnp.float32, -bound, bound)
        b_i = b_ih.at[:, :, 0:2 * H].add(b_hh[:, :, 0:2 * H])   # fold b_hr, b_hz
        b_hn = b_hh[:, :, 2 * H:3 * H]                          # stays in r * (...)
        layers.append(dict(w_ih=w_ih, b_i=b_i, w_hh=w_hh, b_hn=b_hn))
    return layers, key


def init_params(key, n_classes, n_dimensions, hidden_size, num_layers, embedding_size):
    key, ke, kd = jax.random.split(key, 3)
    enc_emb = jax.random.normal(ke, (n_classes, embedding_size), jnp.float32)
    dec_emb = jax.random.normal(kd, (n_classes, embedding_size), jnp.float32)
    enc_gru, key = init_gru_params(key, embedding_size * n_dimensions,
                                   hidden_size, num_layers)
    dec_gru, key = init_gru_params(key, embedding_size * n_dimensions,
                                   hidden_size, num_layers)
    key, kw, kb = jax.random.split(key, 3)
    bound = 1.0 / ((2 * hidden_size) ** 0.5)
    out_w_t = jax.random.uniform(kw, (2 * hidden_size, n_classes * n_dimensions),
                                 jnp.float32, -bound, bound)
    out_b = jax.random.uniform(kb, (n_classes * n_dimensions,),
                               jnp.float32, -bound, bound)
    return dict(enc_embedding=enc_emb, dec_embedding=dec_emb,
                enc_gru=enc_gru, dec_gru=dec_gru, out_w_t=out_w_t, out_b=out_b)


def graph_seq2seq_forward(params, x, y, *, n_classes, n_dimensions,
                          hidden_size, num_layers, embedding_size):
    """Teacher-forcing forward pass of GraphSeq2Seq (training branch)."""
    B, P, S, D = x.shape
    H, C, E = hidden_size, n_classes, embedding_size
    zero_class = C // 2 - 1
    Np_e = ((B * P + 7) // 8) * 8          # encoder "batch" = paths, sublane-padded
    Np_d = ((B + 7) // 8) * 8              # decoder batch, sublane-padded

    # ---- encoder input: embed, time-major, pad paths to a sublane multiple ----
    emb = params["enc_embedding"][x].reshape(B * P, S, D * E)
    enc_x = jnp.transpose(emb, (1, 0, 2))                             # (S, B*P, DE)
    enc_x = jnp.pad(enc_x, ((0, 0), (0, Np_e - B * P), (0, 0))).reshape(S * Np_e, D * E)

    # ---- padding-path filtering folded into a selection/mask matrix M --------
    # PyTorch filters padding paths before the GRU; with zero h0, masking the FINAL
    # hidden of padding paths before summing is equivalent: dec_h0 = M @ h_n, with
    # M[b, b*P+p] = 1 iff path (b,p) is non-padding (and 0 for padded rows/cols).
    mask = (jnp.max(jnp.abs(x - zero_class), axis=(2, 3)) > 0).astype(jnp.float32)
    col_sample = jnp.arange(Np_e) // P
    col_valid = jnp.arange(Np_e) < B * P
    mask_flat = jnp.pad(mask.reshape(-1), (0, Np_e - B * P))
    M = ((col_sample[None, :] == jnp.arange(Np_d)[:, None]) & col_valid[None, :]
         ).astype(jnp.float32) * mask_flat[None, :]                  # (Np_d, Np_e)

    # ---- decoder input (teacher forcing; channel 1 of y, ReLU on embedding) ---
    start = jnp.full((B, 1, D), zero_class, dtype=x.dtype)
    dec_in = jnp.concatenate([start, y[:, 1, :-1]], axis=1)          # (B, T, D)
    T = dec_in.shape[1]
    demb = jnp.maximum(params["dec_embedding"][dec_in].reshape(B, T, D * E), 0.0)
    dec_x = jnp.transpose(demb, (1, 0, 2))                           # (T, B, DE)
    dec_x = jnp.pad(dec_x, ((0, 0), (0, Np_d - B), (0, 0))).reshape(T * Np_d, D * E)

    # ---- one fused Pallas call: encoder stack -> dec_h0 -> decoder stack ------
    seq = graph_seq2seq_pallas(enc_x, M, dec_x, params["enc_gru"], params["dec_gru"],
                               enc_T=S, dec_T=T, Np_e=Np_e, Np_d=Np_d, H=H,
                               num_layers=num_layers)                # (T*Np_d, 2H)

    # ---- final Linear deliberately left to XLA (K=64, N=C*D<128 lanes) --------
    h = seq.reshape(T, Np_d, 2 * H)[:, :B]                           # (T, B, 2H)
    logits = jnp.einsum("tbh,hc->tbc", h, params["out_w_t"]) + params["out_b"]
    out = jnp.transpose(logits, (1, 0, 2)).reshape(B, T, D, C)       # batch-first
    return out.reshape(-1, C)


# --------------------------------- main ---------------------------------------

if __name__ == "__main__":
    n_classes = 8
    n_dimensions = 3
    hidden_size = 32
    num_layers = 2
    embedding_size = 8
    B, P, S, T_dec = 2, 3, 5, 4   # batch, paths per sample, path len, decoder len

    key = jax.random.PRNGKey(0)
    key, kp, kx, ky = jax.random.split(key, 4)
    params = init_params(kp, n_classes, n_dimensions,
                         hidden_size, num_layers, embedding_size)

    zero_class = n_classes // 2 - 1
    x = jax.random.randint(kx, (B, P, S, n_dimensions), 0, n_classes, dtype=jnp.int32)
    x = x.at[:, -1].set(zero_class)   # last path of each sample is a padding path
    y = jax.random.randint(ky, (B, 2, T_dec, n_dimensions), 0, n_classes, dtype=jnp.int32)

    fwd = jax.jit(functools.partial(
        graph_seq2seq_forward,
        n_classes=n_classes, n_dimensions=n_dimensions,
        hidden_size=hidden_size, num_layers=num_layers,
        embedding_size=embedding_size))

    out = fwd(params, x, y)
    jax.block_until_ready(out)
    assert out.shape == (B * T_dec * n_dimensions, n_classes), out.shape
    assert bool(jnp.all(jnp.isfinite(out)))
    print("KERNEL_OK")
</pallas_src>

<mosaic_0001>
module attributes {stable_mosaic.version = 11 : i64} {
  func.func @_seq2seq_kernel(%arg0: i32, %arg1: memref<40x24xf32, #tpu.memory_space<vmem>>, %arg2: memref<8x8xf32, #tpu.memory_space<vmem>>, %arg3: memref<32x24xf32, #tpu.memory_space<vmem>>, %arg4: memref<2x24x96xf32, #tpu.memory_space<vmem>>, %arg5: memref<2x1x96xf32, #tpu.memory_space<vmem>>, %arg6: memref<2x32x96xf32, #tpu.memory_space<vmem>>, %arg7: memref<2x1x32xf32, #tpu.memory_space<vmem>>, %arg8: memref<2x64x96xf32, #tpu.memory_space<vmem>>, %arg9: memref<2x1x96xf32, #tpu.memory_space<vmem>>, %arg10: memref<2x32x96xf32, #tpu.memory_space<vmem>>, %arg11: memref<2x1x32xf32, #tpu.memory_space<vmem>>, %arg12: memref<2x24x96xf32, #tpu.memory_space<vmem>>, %arg13: memref<2x1x96xf32, #tpu.memory_space<vmem>>, %arg14: memref<2x32x96xf32, #tpu.memory_space<vmem>>, %arg15: memref<2x1x32xf32, #tpu.memory_space<vmem>>, %arg16: memref<2x64x96xf32, #tpu.memory_space<vmem>>, %arg17: memref<2x1x96xf32, #tpu.memory_space<vmem>>, %arg18: memref<2x32x96xf32, #tpu.memory_space<vmem>>, %arg19: memref<2x1x32xf32, #tpu.memory_space<vmem>>, %arg20: memref<32x64xf32, #tpu.memory_space<vmem>>, %arg21: memref<2x40x96xf32, #tpu.memory_space<vmem>>, %arg22: memref<40x64xf32, #tpu.memory_space<vmem>>) attributes {dimension_semantics = [#tpu.dimension_semantics<arbitrary>], iteration_bounds = array<i64: 1>, scalar_prefetch = 0 : i64, scratch_operands = 2 : i64, tpu.core_type = #tpu.core_type<tc>, window_params = [{pipeline_mode = #tpu.pipeline_mode<synchronous>, transform_indices = @transform_0, window_bounds = array<i64: 40, 24>}, {pipeline_mode = #tpu.pipeline_mode<synchronous>, transform_indices = @transform_1, window_bounds = array<i64: 8, 8>}, {pipeline_mode = #tpu.pipeline_mode<synchronous>, transform_indices = @transform_2, window_bounds = array<i64: 32, 24>}, {pipeline_mode = #tpu.pipeline_mode<synchronous>, transform_indices = @transform_3, window_bounds = array<i64: 2, 24, 96>}, {pipeline_mode = #tpu.pipeline_mode<synchronous>, transform_indices = @transform_4, window_bounds = array<i64: 2, 1, 96>}, {pipeline_mode = #tpu.pipeline_mode<synchronous>, transform_indices = @transform_5, window_bounds = array<i64: 2, 32, 96>}, {pipeline_mode = #tpu.pipeline_mode<synchronous>, transform_indices = @transform_6, window_bounds = array<i64: 2, 1, 32>}, {pipeline_mode = #tpu.pipeline_mode<synchronous>, transform_indices = @transform_7, window_bounds = array<i64: 2, 64, 96>}, {pipeline_mode = #tpu.pipeline_mode<synchronous>, transform_indices = @transform_8, window_bounds = array<i64: 2, 1, 96>}, {pipeline_mode = #tpu.pipeline_mode<synchronous>, transform_indices = @transform_9, window_bounds = array<i64: 2, 32, 96>}, {pipeline_mode = #tpu.pipeline_mode<synchronous>, transform_indices = @transform_10, window_bounds = array<i64: 2, 1, 32>}, {pipeline_mode = #tpu.pipeline_mode<synchronous>, transform_indices = @transform_11, window_bounds = array<i64: 2, 24, 96>}, {pipeline_mode = #tpu.pipeline_mode<synchronous>, transform_indices = @transform_12, window_bounds = array<i64: 2, 1, 96>}, {pipeline_mode = #tpu.pipeline_mode<synchronous>, transform_indices = @transform_13, window_bounds = array<i64: 2, 32, 96>}, {pipeline_mode = #tpu.pipeline_mode<synchronous>, transform_indices = @transform_14, window_bounds = array<i64: 2, 1, 32>}, {pipeline_mode = #tpu.pipeline_mode<synchronous>, transform_indices = @transform_15, window_bounds = array<i64: 2, 64, 96>}, {pipeline_mode = #tpu.pipeline_mode<synchronous>, transform_indices = @transform_16, window_bounds = array<i64: 2, 1, 96>}, {pipeline_mode = #tpu.pipeline_mode<synchronous>, transform_indices = @transform_17, window_bounds = array<i64: 2, 32, 96>}, {pipeline_mode = #tpu.pipeline_mode<synchronous>, transform_indices = @transform_18, window_bounds = array<i64: 2, 1, 32>}, {pipeline_mode = #tpu.pipeline_mode<synchronous>, transform_indices = @transform_19, window_bounds = array<i64: 32, 64>}]} {
    %c0 = arith.constant 0 : index
    %c0_0 = arith.constant 0 : index
    %0 = vector.load %arg2[%c0, %c0_0] : memref<8x8xf32, #tpu.memory_space<vmem>>, vector<8x8xf32>
    %cst = arith.constant 0.000000e+00 : f32
    %1 = vector.broadcast %cst : f32 to vector<8x32xf32>
    %c0_1 = arith.constant 0 : index
    %c0_2 = arith.constant 0 : index
    %2 = vector.load %arg1[%c0_1, %c0_2] : memref<40x24xf32, #tpu.memory_space<vmem>>, vector<40x24xf32>
    %c0_3 = arith.constant 0 : index
    %c0_4 = arith.constant 0 : index
    %c0_5 = arith.constant 0 : index
    %3 = vector.load %arg4[%c0_3, %c0_4, %c0_5] : memref<2x24x96xf32, #tpu.memory_space<vmem>>, vector<1x24x96xf32>
    %4 = vector.shape_cast %3 : vector<1x24x96xf32> to vector<24x96xf32>
    %cst_6 = arith.constant dense<0.000000e+00> : vector<40x96xf32>
    %5 = tpu.matmul %2, %4, %cst_6 {dimension_numbers = #tpu.dot_dimension_numbers<[1], [0], [0], [1], [0, 0, 1, 1], [], []>} : vector<40x24xf32>, vector<24x96xf32>, vector<40x96xf32> -> vector<40x96xf32>
    %c0_7 = arith.constant 0 : index
    %c0_8 = arith.constant 0 : index
    %c0_9 = arith.constant 0 : index
    %6 = vector.load %arg5[%c0_7, %c0_8, %c0_9] : memref<2x1x96xf32, #tpu.memory_space<vmem>>, vector<1x1x96xf32>
    %7 = vector.shape_cast %6 : vector<1x1x96xf32> to vector<1x96xf32>
    %8 = vector.broadcast %7 : vector<1x96xf32> to vector<40x96xf32>
    %9 = arith.addf %5, %8 : vector<40x96xf32>
    %c0_10 = arith.constant 0 : index
    %c0_11 = arith.constant 0 : index
    %c0_12 = arith.constant 0 : index
    %10 = vector.load %arg21[%c0_10, %c0_11, %c0_12] : memref<2x40x96xf32, #tpu.memory_space<vmem>>, vector<1x40x96xf32>
    %11 = vector.shape_cast %10 : vector<1x40x96xf32> to vector<40x96xf32>
    %12 = vector.shape_cast %9 : vector<40x96xf32> to vector<1x40x96xf32>
    tpu.vector_store %arg21[%c0_10, %c0_11, %c0_12], %12 {strides = array<i32>} : memref<2x40x96xf32, #tpu.memory_space<vmem>>, vector<1x40x96xf32>,
    %c1 = arith.constant 1 : index
    %c0_13 = arith.constant 0 : index
    %c0_14 = arith.constant 0 : index
    %13 = vector.load %arg4[%c1, %c0_13, %c0_14] : memref<2x24x96xf32, #tpu.memory_space<vmem>>, vector<1x24x96xf32>
    %14 = vector.shape_cast %13 : vector<1x24x96xf32> to vector<24x96xf32>
    %cst_15 = arith.constant dense<0.000000e+00> : vector<40x96xf32>
    %15 = tpu.matmul %2, %14, %cst_15 {dimension_numbers = #tpu.dot_dimension_numbers<[1], [0], [0], [1], [0, 0, 1, 1], [], []>} : vector<40x24xf32>, vector<24x96xf32>, vector<40x96xf32> -> vector<40x96xf32>
    %c1_16 = arith.constant 1 : index
    %c0_17 = arith.constant 0 : index
    %c0_18 = arith.constant 0 : index
    %16 = vector.load %arg5[%c1_16, %c0_17, %c0_18] : memref<2x1x96xf32, #tpu.memory_space<vmem>>, vector<1x1x96xf32>
    %17 = vector.shape_cast %16 : vector<1x1x96xf32> to vector<1x96xf32>
    %18 = vector.broadcast %17 : vector<1x96xf32> to vector<40x96xf32>
    %19 = arith.addf %15, %18 : vector<40x96xf32>
    %c1_19 = arith.constant 1 : index
    %c0_20 = arith.constant 0 : index
    %c0_21 = arith.constant 0 : index
    %20 = vector.load %arg21[%c1_19, %c0_20, %c0_21] : memref<2x40x96xf32, #tpu.memory_space<vmem>>, vector<1x40x96xf32>
    %21 = vector.shape_cast %20 : vector<1x40x96xf32> to vector<40x96xf32>
    %22 = vector.shape_cast %19 : vector<40x96xf32> to vector<1x40x96xf32>
    tpu.vector_store %arg21[%c1_19, %c0_20, %c0_21], %22 {strides = array<i32>} : memref<2x40x96xf32, #tpu.memory_space<vmem>>, vector<1x40x96xf32>,
    %c0_22 = arith.constant 0 : index
    %c0_23 = arith.constant 0 : index
    %c0_24 = arith.constant 0 : index
    %23 = vector.load %arg6[%c0_22, %c0_23, %c0_24] : memref<2x32x96xf32, #tpu.memory_space<vmem>>, vector<1x32x96xf32>
    %24 = vector.shape_cast %23 : vector<1x32x96xf32> to vector<32x96xf32>
    %c1_25 = arith.constant 1 : index
    %c0_26 = arith.constant 0 : index
    %c0_27 = arith.constant 0 : index
    %25 = vector.load %arg6[%c1_25, %c0_26, %c0_27] : memref<2x32x96xf32, #tpu.memory_space<vmem>>, vector<1x32x96xf32>
    %26 = vector.shape_cast %25 : vector<1x32x96xf32> to vector<32x96xf32>
    %c0_28 = arith.constant 0 : index
    %c0_29 = arith.constant 0 : index
    %c0_30 = arith.constant 0 : index
    %27 = vector.load %arg7[%c0_28, %c0_29, %c0_30] : memref<2x1x32xf32, #tpu.memory_space<vmem>>, vector<1x1x32xf32>
    %28 = vector.shape_cast %27 : vector<1x1x32xf32> to vector<1x32xf32>
    %c1_31 = arith.constant 1 : index
    %c0_32 = arith.constant 0 : index
    %c0_33 = arith.constant 0 : index
    %29 = vector.load %arg7[%c1_31, %c0_32, %c0_33] : memref<2x1x32xf32, #tpu.memory_space<vmem>>, vector<1x1x32xf32>
    %30 = vector.shape_cast %29 : vector<1x1x32xf32> to vector<1x32xf32>
    %c0_34 = arith.constant 0 : index
    %c0_35 = arith.constant 0 : index
    %c0_36 = arith.constant 0 : index
    %31 = vector.load %arg21[%c0_34, %c0_35, %c0_36] : memref<2x40x96xf32, #tpu.memory_space<vmem>>, vector<1x8x96xf32>
    %32 = vector.shape_cast %31 : vector<1x8x96xf32> to vector<8x96xf32>
    %c1_37 = arith.constant 1 : index
    %c32 = arith.constant 32 : index
    %c0_38 = arith.constant 0 : index
    %33 = vector.load %arg21[%c1_37, %c32, %c0_38] : memref<2x40x96xf32, #tpu.memory_space<vmem>>, vector<1x8x96xf32>
    %34 = vector.shape_cast %33 : vector<1x8x96xf32> to vector<8x96xf32>
    %cst_39 = arith.constant dense<0.000000e+00> : vector<8x96xf32>
    %35 = tpu.matmul %1, %24, %cst_39 {dimension_numbers = #tpu.dot_dimension_numbers<[1], [0], [0], [1], [0, 0, 1, 1], [], []>} : vector<8x32xf32>, vector<32x96xf32>, vector<8x96xf32> -> vector<8x96xf32>
    %cst_40 = arith.constant dense<0.000000e+00> : vector<8x96xf32>
    %36 = tpu.matmul %1, %26, %cst_40 {dimension_numbers = #tpu.dot_dimension_numbers<[1], [0], [0], [1], [0, 0, 1, 1], [], []>} : vector<8x32xf32>, vector<32x96xf32>, vector<8x96xf32> -> vector<8x96xf32>
    %37 = vector.extract_strided_slice %32 {offsets = [0, 0], sizes = [8, 32], strides = [1, 1]} : vector<8x96xf32> to vector<8x32xf32>
    %38 = vector.extract_strided_slice %35 {offsets = [0, 0], sizes = [8, 32], strides = [1, 1]} : vector<8x96xf32> to vector<8x32xf32>
    %39 = arith.addf %37, %38 : vector<8x32xf32>
    %40 = arith.negf %39 : vector<8x32xf32>
    %41 = math.exp %40 : vector<8x32xf32>
    %cst_41 = arith.constant 1.000000e+00 : f32
    %42 = vector.broadcast %cst_41 : f32 to vector<8x32xf32>
    %43 = arith.addf %42, %41 : vector<8x32xf32>
    %44 = arith.divf %42, %43 : vector<8x32xf32>
    %45 = vector.extract_strided_slice %32 {offsets = [0, 32], sizes = [8, 32], strides = [1, 1]} : vector<8x96xf32> to vector<8x32xf32>
    %46 = vector.extract_strided_slice %35 {offsets = [0, 32], sizes = [8, 32], strides = [1, 1]} : vector<8x96xf32> to vector<8x32xf32>
    %47 = arith.addf %45, %46 : vector<8x32xf32>
    %48 = arith.negf %47 : vector<8x32xf32>
    %49 = math.exp %48 : vector<8x32xf32>
    %cst_42 = arith.constant 1.000000e+00 : f32
    %50 = vector.broadcast %cst_42 : f32 to vector<8x32xf32>
    %51 = arith.addf %50, %49 : vector<8x32xf32>
    %52 = arith.divf %50, %51 : vector<8x32xf32>
    %53 = vector.extract_strided_slice %32 {offsets = [0, 64], sizes = [8, 32], strides = [1, 1]} : vector<8x96xf32> to vector<8x32xf32>
    %54 = vector.extract_strided_slice %35 {offsets = [0, 64], sizes = [8, 32], strides = [1, 1]} : vector<8x96xf32> to vector<8x32xf32>
    %55 = vector.broadcast %28 : vector<1x32xf32> to vector<8x32xf32>
    %56 = arith.addf %54, %55 : vector<8x32xf32>
    %57 = arith.mulf %44, %56 : vector<8x32xf32>
    %58 = arith.addf %53, %57 : vector<8x32xf32>
    %59 = math.tanh %58 : vector<8x32xf32>
    %cst_43 = arith.constant 1.000000e+00 : f32
    %60 = vector.broadcast %cst_43 : f32 to vector<8x32xf32>
    %61 = arith.subf %60, %52 : vector<8x32xf32>
    %62 = arith.mulf %61, %59 : vector<8x32xf32>
    %63 = arith.mulf %52, %1 : vector<8x32xf32>
    %64 = arith.addf %62, %63 : vector<8x32xf32>
    %65 = vector.extract_strided_slice %34 {offsets = [0, 0], sizes = [8, 32], strides = [1, 1]} : vector<8x96xf32> to vector<8x32xf32>
    %66 = vector.extract_strided_slice %36 {offsets = [0, 0], sizes = [8, 32], strides = [1, 1]} : vector<8x96xf32> to vector<8x32xf32>
    %67 = arith.addf %65, %66 : vector<8x32xf32>
    %68 = arith.negf %67 : vector<8x32xf32>
    %69 = math.exp %68 : vector<8x32xf32>
    %cst_44 = arith.constant 1.000000e+00 : f32
    %70 = vector.broadcast %cst_44 : f32 to vector<8x32xf32>
    %71 = arith.addf %70, %69 : vector<8x32xf32>
    %72 = arith.divf %70, %71 : vector<8x32xf32>
    %73 = vector.extract_strided_slice %34 {offsets = [0, 32], sizes = [8, 32], strides = [1, 1]} : vector<8x96xf32> to vector<8x32xf32>
    %74 = vector.extract_strided_slice %36 {offsets = [0, 32], sizes = [8, 32], strides = [1, 1]} : vector<8x96xf32> to vector<8x32xf32>
    %75 = arith.addf %73, %74 : vector<8x32xf32>
    %76 = arith.negf %75 : vector<8x32xf32>
    %77 = math.exp %76 : vector<8x32xf32>
    %cst_45 = arith.constant 1.000000e+00 : f32
    %78 = vector.broadcast %cst_45 : f32 to vector<8x32xf32>
    %79 = arith.addf %78, %77 : vector<8x32xf32>
    %80 = arith.divf %78, %79 : vector<8x32xf32>
    %81 = vector.extract_strided_slice %34 {offsets = [0, 64], sizes = [8, 32], strides = [1, 1]} : vector<8x96xf32> to vector<8x32xf32>
    %82 = vector.extract_strided_slice %36 {offsets = [0, 64], sizes = [8, 32], strides = [1, 1]} : vector<8x96xf32> to vector<8x32xf32>
    %83 = vector.broadcast %30 : vector<1x32xf32> to vector<8x32xf32>
    %84 = arith.addf %82, %83 : vector<8x32xf32>
    %85 = arith.mulf %72, %84 : vector<8x32xf32>
    %86 = arith.addf %81, %85 : vector<8x32xf32>
    %87 = math.tanh %86 : vector<8x32xf32>
    %cst_46 = arith.constant 1.000000e+00 : f32
    %88 = vector.broadcast %cst_46 : f32 to vector<8x32xf32>
    %89 = arith.subf %88, %80 : vector<8x32xf32>
    %90 = arith.mulf %89, %87 : vector<8x32xf32>
    %91 = arith.mulf %80, %1 : vector<8x32xf32>
    %92 = arith.addf %90, %91 : vector<8x32xf32>
    %c0_47 = arith.constant 0 : index
    %c0_48 = arith.constant 0 : index
    %93 = vector.load %arg22[%c0_47, %c0_48] : memref<40x64xf32, #tpu.memory_space<vmem>>, vector<8x32xf32>
    tpu.vector_store %arg22[%c0_47, %c0_48], %64 {strides = array<i32>} : memref<40x64xf32, #tpu.memory_space<vmem>>, vector<8x32xf32>,
    %c32_49 = arith.constant 32 : index
    %c32_50 = arith.constant 32 : index
    %94 = vector.load %arg22[%c32_49, %c32_50] : memref<40x64xf32, #tpu.memory_space<vmem>>, vector<8x32xf32>
    tpu.vector_store %arg22[%c32_49, %c32_50], %92 {strides = array<i32>} : memref<40x64xf32, #tpu.memory_space<vmem>>, vector<8x32xf32>,
    %c0_51 = arith.constant 0 : index
    %c8 = arith.constant 8 : index
    %c0_52 = arith.constant 0 : index
    %95 = vector.load %arg21[%c0_51, %c8, %c0_52] : memref<2x40x96xf32, #tpu.memory_space<vmem>>, vector<1x8x96xf32>
    %96 = vector.shape_cast %95 : vector<1x8x96xf32> to vector<8x96xf32>
    %c1_53 = arith.constant 1 : index
    %c24 = arith.constant 24 : index
    %c0_54 = arith.constant 0 : index
    %97 = vector.load %arg21[%c1_53, %c24, %c0_54] : memref<2x40x96xf32, #tpu.memory_space<vmem>>, vector<1x8x96xf32>
    %98 = vector.shape_cast %97 : vector<1x8x96xf32> to vector<8x96xf32>
    %cst_55 = arith.constant dense<0.000000e+00> : vector<8x96xf32>
    %99 = tpu.matmul %64, %24, %cst_55 {dimension_numbers = #tpu.dot_dimension_numbers<[1], [0], [0], [1], [0, 0, 1, 1], [], []>} : vector<8x32xf32>, vector<32x96xf32>, vector<8x96xf32> -> vector<8x96xf32>
    %cst_56 = arith.constant dense<0.000000e+00> : vector<8x96xf32>
    %100 = tpu.matmul %92, %26, %cst_56 {dimension_numbers = #tpu.dot_dimension_numbers<[1], [0], [0], [1], [0, 0, 1, 1], [], []>} : vector<8x32xf32>, vector<32x96xf32>, vector<8x96xf32> -> vector<8x96xf32>
    %101 = vector.extract_strided_slice %96 {offsets = [0, 0], sizes = [8, 32], strides = [1, 1]} : vector<8x96xf32> to vector<8x32xf32>
    %102 = vector.extract_strided_slice %99 {offsets = [0, 0], sizes = [8, 32], strides = [1, 1]} : vector<8x96xf32> to vector<8x32xf32>
    %103 = arith.addf %101, %102 : vector<8x32xf32>
    %104 = arith.negf %103 : vector<8x32xf32>
    %105 = math.exp %104 : vector<8x32xf32>
    %cst_57 = arith.constant 1.000000e+00 : f32
    %106 = vector.broadcast %cst_57 : f32 to vector<8x32xf32>
    %107 = arith.addf %106, %105 : vector<8x32xf32>
    %108 = arith.divf %106, %107 : vector<8x32xf32>
    %109 = vector.extract_strided_slice %96 {offsets = [0, 32], sizes = [8, 32], strides = [1, 1]} : vector<8x96xf32> to vector<8x32xf32>
    %110 = vector.extract_strided_slice %99 {offsets = [0, 32], sizes = [8, 32], strides = [1, 1]} : vector<8x96xf32> to vector<8x32xf32>
    %111 = arith.addf %109, %110 : vector<8x32xf32>
    %112 = arith.negf %111 : vector<8x32xf32>
    %113 = math.exp %112 : vector<8x32xf32>
    %cst_58 = arith.constant 1.000000e+00 : f32
    %114 = vector.broadcast %cst_58 : f32 to vector<8x32xf32>
    %115 = arith.addf %114, %113 : vector<8x32xf32>
    %116 = arith.divf %114, %115 : vector<8x32xf32>
    %117 = vector.extract_strided_slice %96 {offsets = [0, 64], sizes = [8, 32], strides = [1, 1]} : vector<8x96xf32> to vector<8x32xf32>
    %118 = vector.extract_strided_slice %99 {offsets = [0, 64], sizes = [8, 32], strides = [1, 1]} : vector<8x96xf32> to vector<8x32xf32>
    %119 = vector.broadcast %28 : vector<1x32xf32> to vector<8x32xf32>
    %120 = arith.addf %118, %119 : vector<8x32xf32>
    %121 = arith.mulf %108, %120 : vector<8x32xf32>
    %122 = arith.addf %117, %121 : vector<8x32xf32>
    %123 = math.tanh %122 : vector<8x32xf32>
    %cst_59 = arith.constant 1.000000e+00 : f32
    %124 = vector.broadcast %cst_59 : f32 to vector<8x32xf32>
    %125 = arith.subf %124, %116 : vector<8x32xf32>
    %126 = arith.mulf %125, %123 : vector<8x32xf32>
    %127 = arith.mulf %116, %64 : vector<8x32xf32>
    %128 = arith.addf %126, %127 : vector<8x32xf32>
    %129 = vector.extract_strided_slice %98 {offsets = [0, 0], sizes = [8, 32], strides = [1, 1]} : vector<8x96xf32> to vector<8x32xf32>
    %130 = vector.extract_strided_slice %100 {offsets = [0, 0], sizes = [8, 32], strides = [1, 1]} : vector<8x96xf32> to vector<8x32xf32>
    %131 = arith.addf %129, %130 : vector<8x32xf32>
    %132 = arith.negf %131 : vector<8x32xf32>
    %133 = math.exp %132 : vector<8x32xf32>
    %cst_60 = arith.constant 1.000000e+00 : f32
    %134 = vector.broadcast %cst_60 : f32 to vector<8x32xf32>
    %135 = arith.addf %134, %133 : vector<8x32xf32>
    %136 = arith.divf %134, %135 : vector<8x32xf32>
    %137 = vector.extract_strided_slice %98 {offsets = [0, 32], sizes = [8, 32], strides = [1, 1]} : vector<8x96xf32> to vector<8x32xf32>
    %138 = vector.extract_strided_slice %100 {offsets = [0, 32], sizes = [8, 32], strides = [1, 1]} : vector<8x96xf32> to vector<8x32xf32>
    %139 = arith.addf %137, %138 : vector<8x32xf32>
    %140 = arith.negf %139 : vector<8x32xf32>
    %141 = math.exp %140 : vector<8x32xf32>
    %cst_61 = arith.constant 1.000000e+00 : f32
    %142 = vector.broadcast %cst_61 : f32 to vector<8x32xf32>
    %143 = arith.addf %142, %141 : vector<8x32xf32>
    %144 = arith.divf %142, %143 : vector<8x32xf32>
    %145 = vector.extract_strided_slice %98 {offsets = [0, 64], sizes = [8, 32], strides = [1, 1]} : vector<8x96xf32> to vector<8x32xf32>
    %146 = vector.extract_strided_slice %100 {offsets = [0, 64], sizes = [8, 32], strides = [1, 1]} : vector<8x96xf32> to vector<8x32xf32>
    %147 = vector.broadcast %30 : vector<1x32xf32> to vector<8x32xf32>
    %148 = arith.addf %146, %147 : vector<8x32xf32>
    %149 = arith.mulf %136, %148 : vector<8x32xf32>
    %150 = arith.addf %145, %149 : vector<8x32xf32>
    %151 = math.tanh %150 : vector<8x32xf32>
    %cst_62 = arith.constant 1.000000e+00 : f32
    %152 = vector.broadcast %cst_62 : f32 to vector<8x32xf32>
    %153 = arith.subf %152, %144 : vector<8x32xf32>
    %154 = arith.mulf %153, %151 : vector<8x32xf32>
    %155 = arith.mulf %144, %92 : vector<8x32xf32>
    %156 = arith.addf %154, %155 : vector<8x32xf32>
    %c8_63 = arith.constant 8 : index
    %c0_64 = arith.constant 0 : index
    %157 = vector.load %arg22[%c8_63, %c0_64] : memref<40x64xf32, #tpu.memory_space<vmem>>, vector<8x32xf32>
    tpu.vector_store %arg22[%c8_63, %c0_64], %128 {strides = array<i32>} : memref<40x64xf32, #tpu.memory_space<vmem>>, vector<8x32xf32>,
    %c24_65 = arith.constant 24 : index
    %c32_66 = arith.constant 32 : index
    %158 = vector.load %arg22[%c24_65, %c32_66] : memref<40x64xf32, #tpu.memory_space<vmem>>, vector<8x32xf32>
    tpu.vector_store %arg22[%c24_65, %c32_66], %156 {strides = array<i32>} : memref<40x64xf32, #tpu.memory_space<vmem>>, vector<8x32xf32>,
    %c0_67 = arith.constant 0 : index
    %c16 = arith.constant 16 : index
    %c0_68 = arith.constant 0 : index
    %159 = vector.load %arg21[%c0_67, %c16, %c0_68] : memref<2x40x96xf32, #tpu.memory_space<vmem>>, vector<1x8x96xf32>
    %160 = vector.shape_cast %159 : vector<1x8x96xf32> to vector<8x96xf32>
    %c1_69 = arith.constant 1 : index
    %c16_70 = arith.constant 16 : index
    %c0_71 = arith.constant 0 : index
    %161 = vector.load %arg21[%c1_69, %c16_70, %c0_71] : memref<2x40x96xf32, #tpu.memory_space<vmem>>, vector<1x8x96xf32>
    %162 = vector.shape_cast %161 : vector<1x8x96xf32> to vector<8x96xf32>
    %cst_72 = arith.constant dense<0.000000e+00> : vector<8x96xf32>
    %163 = tpu.matmul %128, %24, %cst_72 {dimension_numbers = #tpu.dot_dimension_numbers<[1], [0], [0], [1], [0, 0, 1, 1], [], []>} : vector<8x32xf32>, vector<32x96xf32>, vector<8x96xf32> -> vector<8x96xf32>
    %cst_73 = arith.constant dense<0.000000e+00> : vector<8x96xf32>
    %164 = tpu.matmul %156, %26, %cst_73 {dimension_numbers = #tpu.dot_dimension_numbers<[1], [0], [0], [1], [0, 0, 1, 1], [], []>} : vector<8x32xf32>, vector<32x96xf32>, vector<8x96xf32> -> vector<8x96xf32>
    %165 = vector.extract_strided_slice %160 {offsets = [0, 0], sizes = [8, 32], strides = [1, 1]} : vector<8x96xf32> to vector<8x32xf32>
    %166 = vector.extract_strided_slice %163 {offsets = [0, 0], sizes = [8, 32], strides = [1, 1]} : vector<8x96xf32> to vector<8x32xf32>
    %167 = arith.addf %165, %166 : vector<8x32xf32>
    %168 = arith.negf %167 : vector<8x32xf32>
    %169 = math.exp %168 : vector<8x32xf32>
    %cst_74 = arith.constant 1.000000e+00 : f32
    %170 = vector.broadcast %cst_74 : f32 to vector<8x32xf32>
    %171 = arith.addf %170, %169 : vector<8x32xf32>
    %172 = arith.divf %170, %171 : vector<8x32xf32>
    %173 = vector.extract_strided_slice %160 {offsets = [0, 32], sizes = [8, 32], strides = [1, 1]} : vector<8x96xf32> to vector<8x32xf32>
    %174 = vector.extract_strided_slice %163 {offsets = [0, 32], sizes = [8, 32], strides = [1, 1]} : vector<8x96xf32> to vector<8x32xf32>
    %175 = arith.addf %173, %174 : vector<8x32xf32>
    %176 = arith.negf %175 : vector<8x32xf32>
    %177 = math.exp %176 : vector<8x32xf32>
    %cst_75 = arith.constant 1.000000e+00 : f32
    %178 = vector.broadcast %cst_75 : f32 to vector<8x32xf32>
    %179 = arith.addf %178, %177 : vector<8x32xf32>
    %180 = arith.divf %178, %179 : vector<8x32xf32>
    %181 = vector.extract_strided_slice %160 {offsets = [0, 64], sizes = [8, 32], strides = [1, 1]} : vector<8x96xf32> to vector<8x32xf32>
    %182 = vector.extract_strided_slice %163 {offsets = [0, 64], sizes = [8, 32], strides = [1, 1]} : vector<8x96xf32> to vector<8x32xf32>
    %183 = vector.broadcast %28 : vector<1x32xf32> to vector<8x32xf32>
    %184 = arith.addf %182, %183 : vector<8x32xf32>
    %185 = arith.mulf %172, %184 : vector<8x32xf32>
    %186 = arith.addf %181, %185 : vector<8x32xf32>
    %187 = math.tanh %186 : vector<8x32xf32>
    %cst_76 = arith.constant 1.000000e+00 : f32
    %188 = vector.broadcast %cst_76 : f32 to vector<8x32xf32>
    %189 = arith.subf %188, %180 : vector<8x32xf32>
    %190 = arith.mulf %189, %187 : vector<8x32xf32>
    %191 = arith.mulf %180, %128 : vector<8x32xf32>
    %192 = arith.addf %190, %191 : vector<8x32xf32>
    %193 = vector.extract_strided_slice %162 {offsets = [0, 0], sizes = [8, 32], strides = [1, 1]} : vector<8x96xf32> to vector<8x32xf32>
    %194 = vector.extract_strided_slice %164 {offsets = [0, 0], sizes = [8, 32], strides = [1, 1]} : vector<8x96xf32> to vector<8x32xf32>
    %195 = arith.addf %193, %194 : vector<8x32xf32>
    %196 = arith.negf %195 : vector<8x32xf32>
    %197 = math.exp %196 : vector<8x32xf32>
    %cst_77 = arith.constant 1.000000e+00 : f32
    %198 = vector.broadcast %cst_77 : f32 to vector<8x32xf32>
    %199 = arith.addf %198, %197 : vector<8x32xf32>
    %200 = arith.divf %198, %199 : vector<8x32xf32>
    %201 = vector.extract_strided_slice %162 {offsets = [0, 32], sizes = [8, 32], strides = [1, 1]} : vector<8x96xf32> to vector<8x32xf32>
    %202 = vector.extract_strided_slice %164 {offsets = [0, 32], sizes = [8, 32], strides = [1, 1]} : vector<8x96xf32> to vector<8x32xf32>
    %203 = arith.addf %201, %202 : vector<8x32xf32>
    %204 = arith.negf %203 : vector<8x32xf32>
    %205 = math.exp %204 : vector<8x32xf32>
    %cst_78 = arith.constant 1.000000e+00 : f32
    %206 = vector.broadcast %cst_78 : f32 to vector<8x32xf32>
    %207 = arith.addf %206, %205 : vector<8x32xf32>
    %208 = arith.divf %206, %207 : vector<8x32xf32>
    %209 = vector.extract_strided_slice %162 {offsets = [0, 64], sizes = [8, 32], strides = [1, 1]} : vector<8x96xf32> to vector<8x32xf32>
    %210 = vector.extract_strided_slice %164 {offsets = [0, 64], sizes = [8, 32], strides = [1, 1]} : vector<8x96xf32> to vector<8x32xf32>
    %211 = vector.broadcast %30 : vector<1x32xf32> to vector<8x32xf32>
    %212 = arith.addf %210, %211 : vector<8x32xf32>
    %213 = arith.mulf %200, %212 : vector<8x32xf32>
    %214 = arith.addf %209, %213 : vector<8x32xf32>
    %215 = math.tanh %214 : vector<8x32xf32>
    %cst_79 = arith.constant 1.000000e+00 : f32
    %216 = vector.broadcast %cst_79 : f32 to vector<8x32xf32>
    %217 = arith.subf %216, %208 : vector<8x32xf32>
    %218 = arith.mulf %217, %215 : vector<8x32xf32>
    %219 = arith.mulf %208, %156 : vector<8x32xf32>
    %220 = arith.addf %218, %219 : vector<8x32xf32>
    %c16_80 = arith.constant 16 : index
    %c0_81 = arith.constant 0 : index
    %221 = vector.load %arg22[%c16_80, %c0_81] : memref<40x64xf32, #tpu.memory_space<vmem>>, vector<8x32xf32>
    tpu.vector_store %arg22[%c16_80, %c0_81], %192 {strides = array<i32>} : memref<40x64xf32, #tpu.memory_space<vmem>>, vector<8x32xf32>,
    %c16_82 = arith.constant 16 : index
    %c32_83 = arith.constant 32 : index
    %222 = vector.load %arg22[%c16_82, %c32_83] : memref<40x64xf32, #tpu.memory_space<vmem>>, vector<8x32xf32>
    tpu.vector_store %arg22[%c16_82, %c32_83], %220 {strides = array<i32>} : memref<40x64xf32, #tpu.memory_space<vmem>>, vector<8x32xf32>,
    %c0_84 = arith.constant 0 : index
    %c24_85 = arith.constant 24 : index
    %c0_86 = arith.constant 0 : index
    %223 = vector.load %arg21[%c0_84, %c24_85, %c0_86] : memref<2x40x96xf32, #tpu.memory_space<vmem>>, vector<1x8x96xf32>
    %224 = vector.shape_cast %223 : vector<1x8x96xf32> to vector<8x96xf32>
    %c1_87 = arith.constant 1 : index
    %c8_88 = arith.constant 8 : index
    %c0_89 = arith.constant 0 : index
    %225 = vector.load %arg21[%c1_87, %c8_88, %c0_89] : memref<2x40x96xf32, #tpu.memory_space<vmem>>, vector<1x8x96xf32>
    %226 = vector.shape_cast %225 : vector<1x8x96xf32> to vector<8x96xf32>
    %cst_90 = arith.constant dense<0.000000e+00> : vector<8x96xf32>
    %227 = tpu.matmul %192, %24, %cst_90 {dimension_numbers = #tpu.dot_dimension_numbers<[1], [0], [0], [1], [0, 0, 1, 1], [], []>} : vector<8x32xf32>, vector<32x96xf32>, vector<8x96xf32> -> vector<8x96xf32>
    %cst_91 = arith.constant dense<0.000000e+00> : vector<8x96xf32>
    %228 = tpu.matmul %220, %26, %cst_91 {dimension_numbers = #tpu.dot_dimension_numbers<[1], [0], [0], [1], [0, 0, 1, 1], [], []>} : vector<8x32xf32>, vector<32x96xf32>, vector<8x96xf32> -> vector<8x96xf32>
    %229 = vector.extract_strided_slice %224 {offsets = [0, 0], sizes = [8, 32], strides = [1, 1]} : vector<8x96xf32> to vector<8x32xf32>
    %230 = vector.extract_strided_slice %227 {offsets = [0, 0], sizes = [8, 32], strides = [1, 1]} : vector<8x96xf32> to vector<8x32xf32>
    %231 = arith.addf %229, %230 : vector<8x32xf32>
    %232 = arith.negf %231 : vector<8x32xf32>
    %233 = math.exp %232 : vector<8x32xf32>
    %cst_92 = arith.constant 1.000000e+00 : f32
    %234 = vector.broadcast %cst_92 : f32 to vector<8x32xf32>
    %235 = arith.addf %234, %233 : vector<8x32xf32>
    %236 = arith.divf %234, %235 : vector<8x32xf32>
    %237 = vector.extract_strided_slice %224 {offsets = [0, 32], sizes = [8, 32], strides = [1, 1]} : vector<8x96xf32> to vector<8x32xf32>
    %238 = vector.extract_strided_slice %227 {offsets = [0, 32], sizes = [8, 32], strides = [1, 1]} : vector<8x96xf32> to vector<8x32xf32>
    %239 = arith.addf %237, %238 : vector<8x32xf32>
    %240 = arith.negf %239 : vector<8x32xf32>
    %241 = math.exp %240 : vector<8x32xf32>
    %cst_93 = arith.constant 1.000000e+00 : f32
    %242 = vector.broadcast %cst_93 : f32 to vector<8x32xf32>
    %243 = arith.addf %242, %241 : vector<8x32xf32>
    %244 = arith.divf %242, %243 : vector<8x32xf32>
    %245 = vector.extract_strided_slice %224 {offsets = [0, 64], sizes = [8, 32], strides = [1, 1]} : vector<8x96xf32> to vector<8x32xf32>
    %246 = vector.extract_strided_slice %227 {offsets = [0, 64], sizes = [8, 32], strides = [1, 1]} : vector<8x96xf32> to vector<8x32xf32>
    %247 = vector.broadcast %28 : vector<1x32xf32> to vector<8x32xf32>
    %248 = arith.addf %246, %247 : vector<8x32xf32>
    %249 = arith.mulf %236, %248 : vector<8x32xf32>
    %250 = arith.addf %245, %249 : vector<8x32xf32>
    %251 = math.tanh %250 : vector<8x32xf32>
    %cst_94 = arith.constant 1.000000e+00 : f32
    %252 = vector.broadcast %cst_94 : f32 to vector<8x32xf32>
    %253 = arith.subf %252, %244 : vector<8x32xf32>
    %254 = arith.mulf %253, %251 : vector<8x32xf32>
    %255 = arith.mulf %244, %192 : vector<8x32xf32>
    %256 = arith.addf %254, %255 : vector<8x32xf32>
    %257 = vector.extract_strided_slice %226 {offsets = [0, 0], sizes = [8, 32], strides = [1, 1]} : vector<8x96xf32> to vector<8x32xf32>
    %258 = vector.extract_strided_slice %228 {offsets = [0, 0], sizes = [8, 32], strides = [1, 1]} : vector<8x96xf32> to vector<8x32xf32>
    %259 = arith.addf %257, %258 : vector<8x32xf32>
    %260 = arith.negf %259 : vector<8x32xf32>
    %261 = math.exp %260 : vector<8x32xf32>
    %cst_95 = arith.constant 1.000000e+00 : f32
    %262 = vector.broadcast %cst_95 : f32 to vector<8x32xf32>
    %263 = arith.addf %262, %261 : vector<8x32xf32>
    %264 = arith.divf %262, %263 : vector<8x32xf32>
    %265 = vector.extract_strided_slice %226 {offsets = [0, 32], sizes = [8, 32], strides = [1, 1]} : vector<8x96xf32> to vector<8x32xf32>
    %266 = vector.extract_strided_slice %228 {offsets = [0, 32], sizes = [8, 32], strides = [1, 1]} : vector<8x96xf32> to vector<8x32xf32>
    %267 = arith.addf %265, %266 : vector<8x32xf32>
    %268 = arith.negf %267 : vector<8x32xf32>
    %269 = math.exp %268 : vector<8x32xf32>
    %cst_96 = arith.constant 1.000000e+00 : f32
    %270 = vector.broadcast %cst_96 : f32 to vector<8x32xf32>
    %271 = arith.addf %270, %269 : vector<8x32xf32>
    %272 = arith.divf %270, %271 : vector<8x32xf32>
    %273 = vector.extract_strided_slice %226 {offsets = [0, 64], sizes = [8, 32], strides = [1, 1]} : vector<8x96xf32> to vector<8x32xf32>
    %274 = vector.extract_strided_slice %228 {offsets = [0, 64], sizes = [8, 32], strides = [1, 1]} : vector<8x96xf32> to vector<8x32xf32>
    %275 = vector.broadcast %30 : vector<1x32xf32> to vector<8x32xf32>
    %276 = arith.addf %274, %275 : vector<8x32xf32>
    %277 = arith.mulf %264, %276 : vector<8x32xf32>
    %278 = arith.addf %273, %277 : vector<8x32xf32>
    %279 = math.tanh %278 : vector<8x32xf32>
    %cst_97 = arith.constant 1.000000e+00 : f32
    %280 = vector.broadcast %cst_97 : f32 to vector<8x32xf32>
    %281 = arith.subf %280, %272 : vector<8x32xf32>
    %282 = arith.mulf %281, %279 : vector<8x32xf32>
    %283 = arith.mulf %272, %220 : vector<8x32xf32>
    %284 = arith.addf %282, %283 : vector<8x32xf32>
    %c24_98 = arith.constant 24 : index
    %c0_99 = arith.constant 0 : index
    %285 = vector.load %arg22[%c24_98, %c0_99] : memref<40x64xf32, #tpu.memory_space<vmem>>, vector<8x32xf32>
    tpu.vector_store %arg22[%c24_98, %c0_99], %256 {strides = array<i32>} : memref<40x64xf32, #tpu.memory_space<vmem>>, vector<8x32xf32>,
    %c8_100 = arith.constant 8 : index
    %c32_101 = arith.constant 32 : index
    %286 = vector.load %arg22[%c8_100, %c32_101] : memref<40x64xf32, #tpu.memory_space<vmem>>, vector<8x32xf32>
    tpu.vector_store %arg22[%c8_100, %c32_101], %284 {strides = array<i32>} : memref<40x64xf32, #tpu.memory_space<vmem>>, vector<8x32xf32>,
    %c0_102 = arith.constant 0 : index
    %c32_103 = arith.constant 32 : index
    %c0_104 = arith.constant 0 : index
    %287 = vector.load %arg21[%c0_102, %c32_103, %c0_104] : memref<2x40x96xf32, #tpu.memory_space<vmem>>, vector<1x8x96xf32>
    %288 = vector.shape_cast %287 : vector<1x8x96xf32> to vector<8x96xf32>
    %c1_105 = arith.constant 1 : index
    %c0_106 = arith.constant 0 : index
    %c0_107 = arith.constant 0 : index
    %289 = vector.load %arg21[%c1_105, %c0_106, %c0_107] : memref<2x40x96xf32, #tpu.memory_space<vmem>>, vector<1x8x96xf32>
    %290 = vector.shape_cast %289 : vector<1x8x96xf32> to vector<8x96xf32>
    %cst_108 = arith.constant dense<0.000000e+00> : vector<8x96xf32>
    %291 = tpu.matmul %256, %24, %cst_108 {dimension_numbers = #tpu.dot_dimension_numbers<[1], [0], [0], [1], [0, 0, 1, 1], [], []>} : vector<8x32xf32>, vector<32x96xf32>, vector<8x96xf32> -> vector<8x96xf32>
    %cst_109 = arith.constant dense<0.000000e+00> : vector<8x96xf32>
    %292 = tpu.matmul %284, %26, %cst_109 {dimension_numbers = #tpu.dot_dimension_numbers<[1], [0], [0], [1], [0, 0, 1, 1], [], []>} : vector<8x32xf32>, vector<32x96xf32>, vector<8x96xf32> -> vector<8x96xf32>
    %293 = vector.extract_strided_slice %288 {offsets = [0, 0], sizes = [8, 32], strides = [1, 1]} : vector<8x96xf32> to vector<8x32xf32>
    %294 = vector.extract_strided_slice %291 {offsets = [0, 0], sizes = [8, 32], strides = [1, 1]} : vector<8x96xf32> to vector<8x32xf32>
    %295 = arith.addf %293, %294 : vector<8x32xf32>
    %296 = arith.negf %295 : vector<8x32xf32>
    %297 = math.exp %296 : vector<8x32xf32>
    %cst_110 = arith.constant 1.000000e+00 : f32
    %298 = vector.broadcast %cst_110 : f32 to vector<8x32xf32>
    %299 = arith.addf %298, %297 : vector<8x32xf32>
    %300 = arith.divf %298, %299 : vector<8x32xf32>
    %301 = vector.extract_strided_slice %288 {offsets = [0, 32], sizes = [8, 32], strides = [1, 1]} : vector<8x96xf32> to vector<8x32xf32>
    %302 = vector.extract_strided_slice %291 {offsets = [0, 32], sizes = [8, 32], strides = [1, 1]} : vector<8x96xf32> to vector<8x32xf32>
    %303 = arith.addf %301, %302 : vector<8x32xf32>
    %304 = arith.negf %303 : vector<8x32xf32>
    %305 = math.exp %304 : vector<8x32xf32>
    %cst_111 = arith.constant 1.000000e+00 : f32
    %306 = vector.broadcast %cst_111 : f32 to vector<8x32xf32>
    %307 = arith.addf %306, %305 : vector<8x32xf32>
    %308 = arith.divf %306, %307 : vector<8x32xf32>
    %309 = vector.extract_strided_slice %288 {offsets = [0, 64], sizes = [8, 32], strides = [1, 1]} : vector<8x96xf32> to vector<8x32xf32>
    %310 = vector.extract_strided_slice %291 {offsets = [0, 64], sizes = [8, 32], strides = [1, 1]} : vector<8x96xf32> to vector<8x32xf32>
    %311 = vector.broadcast %28 : vector<1x32xf32> to vector<8x32xf32>
    %312 = arith.addf %310, %311 : vector<8x32xf32>
    %313 = arith.mulf %300, %312 : vector<8x32xf32>
    %314 = arith.addf %309, %313 : vector<8x32xf32>
    %315 = math.tanh %314 : vector<8x32xf32>
    %cst_112 = arith.constant 1.000000e+00 : f32
    %316 = vector.broadcast %cst_112 : f32 to vector<8x32xf32>
    %317 = arith.subf %316, %308 : vector<8x32xf32>
    %318 = arith.mulf %317, %315 : vector<8x32xf32>
    %319 = arith.mulf %308, %256 : vector<8x32xf32>
    %320 = arith.addf %318, %319 : vector<8x32xf32>
    %321 = vector.extract_strided_slice %290 {offsets = [0, 0], sizes = [8, 32], strides = [1, 1]} : vector<8x96xf32> to vector<8x32xf32>
    %322 = vector.extract_strided_slice %292 {offsets = [0, 0], sizes = [8, 32], strides = [1, 1]} : vector<8x96xf32> to vector<8x32xf32>
    %323 = arith.addf %321, %322 : vector<8x32xf32>
    %324 = arith.negf %323 : vector<8x32xf32>
    %325 = math.exp %324 : vector<8x32xf32>
    %cst_113 = arith.constant 1.000000e+00 : f32
    %326 = vector.broadcast %cst_113 : f32 to vector<8x32xf32>
    %327 = arith.addf %326, %325 : vector<8x32xf32>
    %328 = arith.divf %326, %327 : vector<8x32xf32>
    %329 = vector.extract_strided_slice %290 {offsets = [0, 32], sizes = [8, 32], strides = [1, 1]} : vector<8x96xf32> to vector<8x32xf32>
    %330 = vector.extract_strided_slice %292 {offsets = [0, 32], sizes = [8, 32], strides = [1, 1]} : vector<8x96xf32> to vector<8x32xf32>
    %331 = arith.addf %329, %330 : vector<8x32xf32>
    %332 = arith.negf %331 : vector<8x32xf32>
    %333 = math.exp %332 : vector<8x32xf32>
    %cst_114 = arith.constant 1.000000e+00 : f32
    %334 = vector.broadcast %cst_114 : f32 to vector<8x32xf32>
    %335 = arith.addf %334, %333 : vector<8x32xf32>
    %336 = arith.divf %334, %335 : vector<8x32xf32>
    %337 = vector.extract_strided_slice %290 {offsets = [0, 64], sizes = [8, 32], strides = [1, 1]} : vector<8x96xf32> to vector<8x32xf32>
    %338 = vector.extract_strided_slice %292 {offsets = [0, 64], sizes = [8, 32], strides = [1, 1]} : vector<8x96xf32> to vector<8x32xf32>
    %339 = vector.broadcast %30 : vector<1x32xf32> to vector<8x32xf32>
    %340 = arith.addf %338, %339 : vector<8x32xf32>
    %341 = arith.mulf %328, %340 : vector<8x32xf32>
    %342 = arith.addf %337, %341 : vector<8x32xf32>
    %343 = math.tanh %342 : vector<8x32xf32>
    %cst_115 = arith.constant 1.000000e+00 : f32
    %344 = vector.broadcast %cst_115 : f32 to vector<8x32xf32>
    %345 = arith.subf %344, %336 : vector<8x32xf32>
    %346 = arith.mulf %345, %343 : vector<8x32xf32>
    %347 = arith.mulf %336, %284 : vector<8x32xf32>
    %348 = arith.addf %346, %347 : vector<8x32xf32>
    %c32_116 = arith.constant 32 : index
    %c0_117 = arith.constant 0 : index
    %349 = vector.load %arg22[%c32_116, %c0_117] : memref<40x64xf32, #tpu.memory_space<vmem>>, vector<8x32xf32>
    tpu.vector_store %arg22[%c32_116, %c0_117], %320 {strides = array<i32>} : memref<40x64xf32, #tpu.memory_space<vmem>>, vector<8x32xf32>,
    %c0_118 = arith.constant 0 : index
    %c32_119 = arith.constant 32 : index
    %350 = vector.load %arg22[%c0_118, %c32_119] : memref<40x64xf32, #tpu.memory_space<vmem>>, vector<8x32xf32>
    tpu.vector_store %arg22[%c0_118, %c32_119], %348 {strides = array<i32>} : memref<40x64xf32, #tpu.memory_space<vmem>>, vector<8x32xf32>,
    %cst_120 = arith.constant dense<0.000000e+00> : vector<8x32xf32>
    %351 = tpu.matmul %0, %320, %cst_120 {dimension_numbers = #tpu.dot_dimension_numbers<[1], [0], [0], [1], [0, 0, 1, 1], [], []>} : vector<8x8xf32>, vector<8x32xf32>, vector<8x32xf32> -> vector<8x32xf32>
    %cst_121 = arith.constant dense<0.000000e+00> : vector<8x32xf32>
    %352 = tpu.matmul %0, %348, %cst_121 {dimension_numbers = #tpu.dot_dimension_numbers<[1], [0], [0], [1], [0, 0, 1, 1], [], []>} : vector<8x8xf32>, vector<8x32xf32>, vector<8x32xf32> -> vector<8x32xf32>
    %c0_122 = arith.constant 0 : index
    %c0_123 = arith.constant 0 : index
    %353 = vector.load %arg22[%c0_122, %c0_123] : memref<40x64xf32, #tpu.memory_space<vmem>>, vector<40x64xf32>
    %c0_124 = arith.constant 0 : index
    %c0_125 = arith.constant 0 : index
    %c0_126 = arith.constant 0 : index
    %354 = vector.load %arg8[%c0_124, %c0_125, %c0_126] : memref<2x64x96xf32, #tpu.memory_space<vmem>>, vector<1x64x96xf32>
    %355 = vector.shape_cast %354 : vector<1x64x96xf32> to vector<64x96xf32>
    %cst_127 = arith.constant dense<0.000000e+00> : vector<40x96xf32>
    %356 = tpu.matmul %353, %355, %cst_127 {dimension_numbers = #tpu.dot_dimension_numbers<[1], [0], [0], [1], [0, 0, 1, 1], [], []>} : vector<40x64xf32>, vector<64x96xf32>, vector<40x96xf32> -> vector<40x96xf32>
    %c0_128 = arith.constant 0 : index
    %c0_129 = arith.constant 0 : index
    %c0_130 = arith.constant 0 : index
    %357 = vector.load %arg9[%c0_128, %c0_129, %c0_130] : memref<2x1x96xf32, #tpu.memory_space<vmem>>, vector<1x1x96xf32>
    %358 = vector.shape_cast %357 : vector<1x1x96xf32> to vector<1x96xf32>
    %359 = vector.broadcast %358 : vector<1x96xf32> to vector<40x96xf32>
    %360 = arith.addf %356, %359 : vector<40x96xf32>
    %c0_131 = arith.constant 0 : index
    %c0_132 = arith.constant 0 : index
    %c0_133 = arith.constant 0 : index
    %361 = vector.load %arg21[%c0_131, %c0_132, %c0_133] : memref<2x40x96xf32, #tpu.memory_space<vmem>>, vector<1x40x96xf32>
    %362 = vector.shape_cast %361 : vector<1x40x96xf32> to vector<40x96xf32>
    %363 = vector.shape_cast %360 : vector<40x96xf32> to vector<1x40x96xf32>
    tpu.vector_store %arg21[%c0_131, %c0_132, %c0_133], %363 {strides = array<i32>} : memref<2x40x96xf32, #tpu.memory_space<vmem>>, vector<1x40x96xf32>,
    %c1_134 = arith.constant 1 : index
    %c0_135 = arith.constant 0 : index
    %c0_136 = arith.constant 0 : index
    %364 = vector.load %arg8[%c1_134, %c0_135, %c0_136] : memref<2x64x96xf32, #tpu.memory_space<vmem>>, vector<1x64x96xf32>
    %365 = vector.shape_cast %364 : vector<1x64x96xf32> to vector<64x96xf32>
    %cst_137 = arith.constant dense<0.000000e+00> : vector<40x96xf32>
    %366 = tpu.matmul %353, %365, %cst_137 {dimension_numbers = #tpu.dot_dimension_numbers<[1], [0], [0], [1], [0, 0, 1, 1], [], []>} : vector<40x64xf32>, vector<64x96xf32>, vector<40x96xf32> -> vector<40x96xf32>
    %c1_138 = arith.constant 1 : index
    %c0_139 = arith.constant 0 : index
    %c0_140 = arith.constant 0 : index
    %367 = vector.load %arg9[%c1_138, %c0_139, %c0_140] : memref<2x1x96xf32, #tpu.memory_space<vmem>>, vector<1x1x96xf32>
    %368 = vector.shape_cast %367 : vector<1x1x96xf32> to vector<1x96xf32>
    %369 = vector.broadcast %368 : vector<1x96xf32> to vector<40x96xf32>
    %370 = arith.addf %366, %369 : vector<40x96xf32>
    %c1_141 = arith.constant 1 : index
    %c0_142 = arith.constant 0 : index
    %c0_143 = arith.constant 0 : index
    %371 = vector.load %arg21[%c1_141, %c0_142, %c0_143] : memref<2x40x96xf32, #tpu.memory_space<vmem>>, vector<1x40x96xf32>
    %372 = vector.shape_cast %371 : vector<1x40x96xf32> to vector<40x96xf32>
    %373 = vector.shape_cast %370 : vector<40x96xf32> to vector<1x40x96xf32>
    tpu.vector_store %arg21[%c1_141, %c0_142, %c0_143], %373 {strides = array<i32>} : memref<2x40x96xf32, #tpu.memory_space<vmem>>, vector<1x40x96xf32>,
    %c0_144 = arith.constant 0 : index
    %c0_145 = arith.constant 0 : index
    %c0_146 = arith.constant 0 : index
    %374 = vector.load %arg10[%c0_144, %c0_145, %c0_146] : memref<2x32x96xf32, #tpu.memory_space<vmem>>, vector<1x32x96xf32>
    %375 = vector.shape_cast %374 : vector<1x32x96xf32> to vector<32x96xf32>
    %c1_147 = arith.constant 1 : index
    %c0_148 = arith.constant 0 : index
    %c0_149 = arith.constant 0 : index
    %376 = vector.load %arg10[%c1_147, %c0_148, %c0_149] : memref<2x32x96xf32, #tpu.memory_space<vmem>>, vector<1x32x96xf32>
    %377 = vector.shape_cast %376 : vector<1x32x96xf32> to vector<32x96xf32>
    %c0_150 = arith.constant 0 : index
    %c0_151 = arith.constant 0 : index
    %c0_152 = arith.constant 0 : index
    %378 = vector.load %arg11[%c0_150, %c0_151, %c0_152] : memref<2x1x32xf32, #tpu.memory_space<vmem>>, vector<1x1x32xf32>
    %379 = vector.shape_cast %378 : vector<1x1x32xf32> to vector<1x32xf32>
    %c1_153 = arith.constant 1 : index
    %c0_154 = arith.constant 0 : index
    %c0_155 = arith.constant 0 : index
    %380 = vector.load %arg11[%c1_153, %c0_154, %c0_155] : memref<2x1x32xf32, #tpu.memory_space<vmem>>, vector<1x1x32xf32>
    %381 = vector.shape_cast %380 : vector<1x1x32xf32> to vector<1x32xf32>
    %c0_156 = arith.constant 0 : index
    %c0_157 = arith.constant 0 : index
    %c0_158 = arith.constant 0 : index
    %382 = vector.load %arg21[%c0_156, %c0_157, %c0_158] : memref<2x40x96xf32, #tpu.memory_space<vmem>>, vector<1x8x96xf32>
    %383 = vector.shape_cast %382 : vector<1x8x96xf32> to vector<8x96xf32>
    %c1_159 = arith.constant 1 : index
    %c32_160 = arith.constant 32 : index
    %c0_161 = arith.constant 0 : index
    %384 = vector.load %arg21[%c1_159, %c32_160, %c0_161] : memref<2x40x96xf32, #tpu.memory_space<vmem>>, vector<1x8x96xf32>
    %385 = vector.shape_cast %384 : vector<1x8x96xf32> to vector<8x96xf32>
    %cst_162 = arith.constant dense<0.000000e+00> : vector<8x96xf32>
    %386 = tpu.matmul %1, %375, %cst_162 {dimension_numbers = #tpu.dot_dimension_numbers<[1], [0], [0], [1], [0, 0, 1, 1], [], []>} : vector<8x32xf32>, vector<32x96xf32>, vector<8x96xf32> -> vector<8x96xf32>
    %cst_163 = arith.constant dense<0.000000e+00> : vector<8x96xf32>
    %387 = tpu.matmul %1, %377, %cst_163 {dimension_numbers = #tpu.dot_dimension_numbers<[1], [0], [0], [1], [0, 0, 1, 1], [], []>} : vector<8x32xf32>, vector<32x96xf32>, vector<8x96xf32> -> vector<8x96xf32>
    %388 = vector.extract_strided_slice %383 {offsets = [0, 0], sizes = [8, 32], strides = [1, 1]} : vector<8x96xf32> to vector<8x32xf32>
    %389 = vector.extract_strided_slice %386 {offsets = [0, 0], sizes = [8, 32], strides = [1, 1]} : vector<8x96xf32> to vector<8x32xf32>
    %390 = arith.addf %388, %389 : vector<8x32xf32>
    %391 = arith.negf %390 : vector<8x32xf32>
    %392 = math.exp %391 : vector<8x32xf32>
    %cst_164 = arith.constant 1.000000e+00 : f32
    %393 = vector.broadcast %cst_164 : f32 to vector<8x32xf32>
    %394 = arith.addf %393, %392 : vector<8x32xf32>
    %395 = arith.divf %393, %394 : vector<8x32xf32>
    %396 = vector.extract_strided_slice %383 {offsets = [0, 32], sizes = [8, 32], strides = [1, 1]} : vector<8x96xf32> to vector<8x32xf32>
    %397 = vector.extract_strided_slice %386 {offsets = [0, 32], sizes = [8, 32], strides = [1, 1]} : vector<8x96xf32> to vector<8x32xf32>
    %398 = arith.addf %396, %397 : vector<8x32xf32>
    %399 = arith.negf %398 : vector<8x32xf32>
    %400 = math.exp %399 : vector<8x32xf32>
    %cst_165 = arith.constant 1.000000e+00 : f32
    %401 = vector.broadcast %cst_165 : f32 to vector<8x32xf32>
    %402 = arith.addf %401, %400 : vector<8x32xf32>
    %403 = arith.divf %401, %402 : vector<8x32xf32>
    %404 = vector.extract_strided_slice %383 {offsets = [0, 64], sizes = [8, 32], strides = [1, 1]} : vector<8x96xf32> to vector<8x32xf32>
    %405 = vector.extract_strided_slice %386 {offsets = [0, 64], sizes = [8, 32], strides = [1, 1]} : vector<8x96xf32> to vector<8x32xf32>
    %406 = vector.broadcast %379 : vector<1x32xf32> to vector<8x32xf32>
    %407 = arith.addf %405, %406 : vector<8x32xf32>
    %408 = arith.mulf %395, %407 : vector<8x32xf32>
    %409 = arith.addf %404, %408 : vector<8x32xf32>
    %410 = math.tanh %409 : vector<8x32xf32>
    %cst_166 = arith.constant 1.000000e+00 : f32
    %411 = vector.broadcast %cst_166 : f32 to vector<8x32xf32>
    %412 = arith.subf %411, %403 : vector<8x32xf32>
    %413 = arith.mulf %412, %410 : vector<8x32xf32>
    %414 = arith.mulf %403, %1 : vector<8x32xf32>
    %415 = arith.addf %413, %414 : vector<8x32xf32>
    %416 = vector.extract_strided_slice %385 {offsets = [0, 0], sizes = [8, 32], strides = [1, 1]} : vector<8x96xf32> to vector<8x32xf32>
    %417 = vector.extract_strided_slice %387 {offsets = [0, 0], sizes = [8, 32], strides = [1, 1]} : vector<8x96xf32> to vector<8x32xf32>
    %418 = arith.addf %416, %417 : vector<8x32xf32>
    %419 = arith.negf %418 : vector<8x32xf32>
    %420 = math.exp %419 : vector<8x32xf32>
    %cst_167 = arith.constant 1.000000e+00 : f32
    %421 = vector.broadcast %cst_167 : f32 to vector<8x32xf32>
    %422 = arith.addf %421, %420 : vector<8x32xf32>
    %423 = arith.divf %421, %422 : vector<8x32xf32>
    %424 = vector.extract_strided_slice %385 {offsets = [0, 32], sizes = [8, 32], strides = [1, 1]} : vector<8x96xf32> to vector<8x32xf32>
    %425 = vector.extract_strided_slice %387 {offsets = [0, 32], sizes = [8, 32], strides = [1, 1]} : vector<8x96xf32> to vector<8x32xf32>
    %426 = arith.addf %424, %425 : vector<8x32xf32>
    %427 = arith.negf %426 : vector<8x32xf32>
    %428 = math.exp %427 : vector<8x32xf32>
    %cst_168 = arith.constant 1.000000e+00 : f32
    %429 = vector.broadcast %cst_168 : f32 to vector<8x32xf32>
    %430 = arith.addf %429, %428 : vector<8x32xf32>
    %431 = arith.divf %429, %430 : vector<8x32xf32>
    %432 = vector.extract_strided_slice %385 {offsets = [0, 64], sizes = [8, 32], strides = [1, 1]} : vector<8x96xf32> to vector<8x32xf32>
    %433 = vector.extract_strided_slice %387 {offsets = [0, 64], sizes = [8, 32], strides = [1, 1]} : vector<8x96xf32> to vector<8x32xf32>
    %434 = vector.broadcast %381 : vector<1x32xf32> to vector<8x32xf32>
    %435 = arith.addf %433, %434 : vector<8x32xf32>
    %436 = arith.mulf %423, %435 : vector<8x32xf32>
    %437 = arith.addf %432, %436 : vector<8x32xf32>
    %438 = math.tanh %437 : vector<8x32xf32>
    %cst_169 = arith.constant 1.000000e+00 : f32
    %439 = vector.broadcast %cst_169 : f32 to vector<8x32xf32>
    %440 = arith.subf %439, %431 : vector<8x32xf32>
    %441 = arith.mulf %440, %438 : vector<8x32xf32>
    %442 = arith.mulf %431, %1 : vector<8x32xf32>
    %443 = arith.addf %441, %442 : vector<8x32xf32>
    %c0_170 = arith.constant 0 : index
    %c8_171 = arith.constant 8 : index
    %c0_172 = arith.constant 0 : index
    %444 = vector.load %arg21[%c0_170, %c8_171, %c0_172] : memref<2x40x96xf32, #tpu.memory_space<vmem>>, vector<1x8x96xf32>
    %445 = vector.shape_cast %444 : vector<1x8x96xf32> to vector<8x96xf32>
    %c1_173 = arith.constant 1 : index
    %c24_174 = arith.constant 24 : index
    %c0_175 = arith.constant 0 : index
    %446 = vector.load %arg21[%c1_173, %c24_174, %c0_175] : memref<2x40x96xf32, #tpu.memory_space<vmem>>, vector<1x8x96xf32>
    %447 = vector.shape_cast %446 : vector<1x8x96xf32> to vector<8x96xf32>
    %cst_176 = arith.constant dense<0.000000e+00> : vector<8x96xf32>
    %448 = tpu.matmul %415, %375, %cst_176 {dimension_numbers = #tpu.dot_dimension_numbers<[1], [0], [0], [1], [0, 0, 1, 1], [], []>} : vector<8x32xf32>, vector<32x96xf32>, vector<8x96xf32> -> vector<8x96xf32>
    %cst_177 = arith.constant dense<0.000000e+00> : vector<8x96xf32>
    %449 = tpu.matmul %443, %377, %cst_177 {dimension_numbers = #tpu.dot_dimension_numbers<[1], [0], [0], [1], [0, 0, 1, 1], [], []>} : vector<8x32xf32>, vector<32x96xf32>, vector<8x96xf32> -> vector<8x96xf32>
    %450 = vector.extract_strided_slice %445 {offsets = [0, 0], sizes = [8, 32], strides = [1, 1]} : vector<8x96xf32> to vector<8x32xf32>
    %451 = vector.extract_strided_slice %448 {offsets = [0, 0], sizes = [8, 32], strides = [1, 1]} : vector<8x96xf32> to vector<8x32xf32>
    %452 = arith.addf %450, %451 : vector<8x32xf32>
    %453 = arith.negf %452 : vector<8x32xf32>
    %454 = math.exp %453 : vector<8x32xf32>
    %cst_178 = arith.constant 1.000000e+00 : f32
    %455 = vector.broadcast %cst_178 : f32 to vector<8x32xf32>
    %456 = arith.addf %455, %454 : vector<8x32xf32>
    %457 = arith.divf %455, %456 : vector<8x32xf32>
    %458 = vector.extract_strided_slice %445 {offsets = [0, 32], sizes = [8, 32], strides = [1, 1]} : vector<8x96xf32> to vector<8x32xf32>
    %459 = vector.extract_strided_slice %448 {offsets = [0, 32], sizes = [8, 32], strides = [1, 1]} : vector<8x96xf32> to vector<8x32xf32>
    %460 = arith.addf %458, %459 : vector<8x32xf32>
    %461 = arith.negf %460 : vector<8x32xf32>
    %462 = math.exp %461 : vector<8x32xf32>
    %cst_179 = arith.constant 1.000000e+00 : f32
    %463 = vector.broadcast %cst_179 : f32 to vector<8x32xf32>
    %464 = arith.addf %463, %462 : vector<8x32xf32>
    %465 = arith.divf %463, %464 : vector<8x32xf32>
    %466 = vector.extract_strided_slice %445 {offsets = [0, 64], sizes = [8, 32], strides = [1, 1]} : vector<8x96xf32> to vector<8x32xf32>
    %467 = vector.extract_strided_slice %448 {offsets = [0, 64], sizes = [8, 32], strides = [1, 1]} : vector<8x96xf32> to vector<8x32xf32>
    %468 = vector.broadcast %379 : vector<1x32xf32> to vector<8x32xf32>
    %469 = arith.addf %467, %468 : vector<8x32xf32>
    %470 = arith.mulf %457, %469 : vector<8x32xf32>
    %471 = arith.addf %466, %470 : vector<8x32xf32>
    %472 = math.tanh %471 : vector<8x32xf32>
    %cst_180 = arith.constant 1.000000e+00 : f32
    %473 = vector.broadcast %cst_180 : f32 to vector<8x32xf32>
    %474 = arith.subf %473, %465 : vector<8x32xf32>
    %475 = arith.mulf %474, %472 : vector<8x32xf32>
    %476 = arith.mulf %465, %415 : vector<8x32xf32>
    %477 = arith.addf %475, %476 : vector<8x32xf32>
    %478 = vector.extract_strided_slice %447 {offsets = [0, 0], sizes = [8, 32], strides = [1, 1]} : vector<8x96xf32> to vector<8x32xf32>
    %479 = vector.extract_strided_slice %449 {offsets = [0, 0], sizes = [8, 32], strides = [1, 1]} : vector<8x96xf32> to vector<8x32xf32>
    %480 = arith.addf %478, %479 : vector<8x32xf32>
    %481 = arith.negf %480 : vector<8x32xf32>
    %482 = math.exp %481 : vector<8x32xf32>
    %cst_181 = arith.constant 1.000000e+00 : f32
    %483 = vector.broadcast %cst_181 : f32 to vector<8x32xf32>
    %484 = arith.addf %483, %482 : vector<8x32xf32>
    %485 = arith.divf %483, %484 : vector<8x32xf32>
    %486 = vector.extract_strided_slice %447 {offsets = [0, 32], sizes = [8, 32], strides = [1, 1]} : vector<8x96xf32> to vector<8x32xf32>
    %487 = vector.extract_strided_slice %449 {offsets = [0, 32], sizes = [8, 32], strides = [1, 1]} : vector<8x96xf32> to vector<8x32xf32>
    %488 = arith.addf %486, %487 : vector<8x32xf32>
    %489 = arith.negf %488 : vector<8x32xf32>
    %490 = math.exp %489 : vector<8x32xf32>
    %cst_182 = arith.constant 1.000000e+00 : f32
    %491 = vector.broadcast %cst_182 : f32 to vector<8x32xf32>
    %492 = arith.addf %491, %490 : vector<8x32xf32>
    %493 = arith.divf %491, %492 : vector<8x32xf32>
    %494 = vector.extract_strided_slice %447 {offsets = [0, 64], sizes = [8, 32], strides = [1, 1]} : vector<8x96xf32> to vector<8x32xf32>
    %495 = vector.extract_strided_slice %449 {offsets = [0, 64], sizes = [8, 32], strides = [1, 1]} : vector<8x96xf32> to vector<8x32xf32>
    %496 = vector.broadcast %381 : vector<1x32xf32> to vector<8x32xf32>
    %497 = arith.addf %495, %496 : vector<8x32xf32>
    %498 = arith.mulf %485, %497 : vector<8x32xf32>
    %499 = arith.addf %494, %498 : vector<8x32xf32>
    %500 = math.tanh %499 : vector<8x32xf32>
    %cst_183 = arith.constant 1.000000e+00 : f32
    %501 = vector.broadcast %cst_183 : f32 to vector<8x32xf32>
    %502 = arith.subf %501, %493 : vector<8x32xf32>
    %503 = arith.mulf %502, %500 : vector<8x32xf32>
    %504 = arith.mulf %493, %443 : vector<8x32xf32>
    %505 = arith.addf %503, %504 : vector<8x32xf32>
    %c0_184 = arith.constant 0 : index
    %c16_185 = arith.constant 16 : index
    %c0_186 = arith.constant 0 : index
    %506 = vector.load %arg21[%c0_184, %c16_185, %c0_186] : memref<2x40x96xf32, #tpu.memory_space<vmem>>, vector<1x8x96xf32>
    %507 = vector.shape_cast %506 : vector<1x8x96xf32> to vector<8x96xf32>
    %c1_187 = arith.constant 1 : index
    %c16_188 = arith.constant 16 : index
    %c0_189 = arith.constant 0 : index
    %508 = vector.load %arg21[%c1_187, %c16_188, %c0_189] : memref<2x40x96xf32, #tpu.memory_space<vmem>>, vector<1x8x96xf32>
    %509 = vector.shape_cast %508 : vector<1x8x96xf32> to vector<8x96xf32>
    %cst_190 = arith.constant dense<0.000000e+00> : vector<8x96xf32>
    %510 = tpu.matmul %477, %375, %cst_190 {dimension_numbers = #tpu.dot_dimension_numbers<[1], [0], [0], [1], [0, 0, 1, 1], [], []>} : vector<8x32xf32>, vector<32x96xf32>, vector<8x96xf32> -> vector<8x96xf32>
    %cst_191 = arith.constant dense<0.000000e+00> : vector<8x96xf32>
    %511 = tpu.matmul %505, %377, %cst_191 {dimension_numbers = #tpu.dot_dimension_numbers<[1], [0], [0], [1], [0, 0, 1, 1], [], []>} : vector<8x32xf32>, vector<32x96xf32>, vector<8x96xf32> -> vector<8x96xf32>
    %512 = vector.extract_strided_slice %507 {offsets = [0, 0], sizes = [8, 32], strides = [1, 1]} : vector<8x96xf32> to vector<8x32xf32>
    %513 = vector.extract_strided_slice %510 {offsets = [0, 0], sizes = [8, 32], strides = [1, 1]} : vector<8x96xf32> to vector<8x32xf32>
    %514 = arith.addf %512, %513 : vector<8x32xf32>
    %515 = arith.negf %514 : vector<8x32xf32>
    %516 = math.exp %515 : vector<8x32xf32>
    %cst_192 = arith.constant 1.000000e+00 : f32
    %517 = vector.broadcast %cst_192 : f32 to vector<8x32xf32>
    %518 = arith.addf %517, %516 : vector<8x32xf32>
    %519 = arith.divf %517, %518 : vector<8x32xf32>
    %520 = vector.extract_strided_slice %507 {offsets = [0, 32], sizes = [8, 32], strides = [1, 1]} : vector<8x96xf32> to vector<8x32xf32>
    %521 = vector.extract_strided_slice %510 {offsets = [0, 32], sizes = [8, 32], strides = [1, 1]} : vector<8x96xf32> to vector<8x32xf32>
    %522 = arith.addf %520, %521 : vector<8x32xf32>
    %523 = arith.negf %522 : vector<8x32xf32>
    %524 = math.exp %523 : vector<8x32xf32>
    %cst_193 = arith.constant 1.000000e+00 : f32
    %525 = vector.broadcast %cst_193 : f32 to vector<8x32xf32>
    %526 = arith.addf %525, %524 : vector<8x32xf32>
    %527 = arith.divf %525, %526 : vector<8x32xf32>
    %528 = vector.extract_strided_slice %507 {offsets = [0, 64], sizes = [8, 32], strides = [1, 1]} : vector<8x96xf32> to vector<8x32xf32>
    %529 = vector.extract_strided_slice %510 {offsets = [0, 64], sizes = [8, 32], strides = [1, 1]} : vector<8x96xf32> to vector<8x32xf32>
    %530 = vector.broadcast %379 : vector<1x32xf32> to vector<8x32xf32>
    %531 = arith.addf %529, %530 : vector<8x32xf32>
    %532 = arith.mulf %519, %531 : vector<8x32xf32>
    %533 = arith.addf %528, %532 : vector<8x32xf32>
    %534 = math.tanh %533 : vector<8x32xf32>
    %cst_194 = arith.constant 1.000000e+00 : f32
    %535 = vector.broadcast %cst_194 : f32 to vector<8x32xf32>
    %536 = arith.subf %535, %527 : vector<8x32xf32>
    %537 = arith.mulf %536, %534 : vector<8x32xf32>
    %538 = arith.mulf %527, %477 : vector<8x32xf32>
    %539 = arith.addf %537, %538 : vector<8x32xf32>
    %540 = vector.extract_strided_slice %509 {offsets = [0, 0], sizes = [8, 32], strides = [1, 1]} : vector<8x96xf32> to vector<8x32xf32>
    %541 = vector.extract_strided_slice %511 {offsets = [0, 0], sizes = [8, 32], strides = [1, 1]} : vector<8x96xf32> to vector<8x32xf32>
    %542 = arith.addf %540, %541 : vector<8x32xf32>
    %543 = arith.negf %542 : vector<8x32xf32>
    %544 = math.exp %543 : vector<8x32xf32>
    %cst_195 = arith.constant 1.000000e+00 : f32
    %545 = vector.broadcast %cst_195 : f32 to vector<8x32xf32>
    %546 = arith.addf %545, %544 : vector<8x32xf32>
    %547 = arith.divf %545, %546 : vector<8x32xf32>
    %548 = vector.extract_strided_slice %509 {offsets = [0, 32], sizes = [8, 32], strides = [1, 1]} : vector<8x96xf32> to vector<8x32xf32>
    %549 = vector.extract_strided_slice %511 {offsets = [0, 32], sizes = [8, 32], strides = [1, 1]} : vector<8x96xf32> to vector<8x32xf32>
    %550 = arith.addf %548, %549 : vector<8x32xf32>
    %551 = arith.negf %550 : vector<8x32xf32>
    %552 = math.exp %551 : vector<8x32xf32>
    %cst_196 = arith.constant 1.000000e+00 : f32
    %553 = vector.broadcast %cst_196 : f32 to vector<8x32xf32>
    %554 = arith.addf %553, %552 : vector<8x32xf32>
    %555 = arith.divf %553, %554 : vector<8x32xf32>
    %556 = vector.extract_strided_slice %509 {offsets = [0, 64], sizes = [8, 32], strides = [1, 1]} : vector<8x96xf32> to vector<8x32xf32>
    %557 = vector.extract_strided_slice %511 {offsets = [0, 64], sizes = [8, 32], strides = [1, 1]} : vector<8x96xf32> to vector<8x32xf32>
    %558 = vector.broadcast %381 : vector<1x32xf32> to vector<8x32xf32>
    %559 = arith.addf %557, %558 : vector<8x32xf32>
    %560 = arith.mulf %547, %559 : vector<8x32xf32>
    %561 = arith.addf %556, %560 : vector<8x32xf32>
    %562 = math.tanh %561 : vector<8x32xf32>
    %cst_197 = arith.constant 1.000000e+00 : f32
    %563 = vector.broadcast %cst_197 : f32 to vector<8x32xf32>
    %564 = arith.subf %563, %555 : vector<8x32xf32>
    %565 = arith.mulf %564, %562 : vector<8x32xf32>
    %566 = arith.mulf %555, %505 : vector<8x32xf32>
    %567 = arith.addf %565, %566 : vector<8x32xf32>
    %c0_198 = arith.constant 0 : index
    %c24_199 = arith.constant 24 : index
    %c0_200 = arith.constant 0 : index
    %568 = vector.load %arg21[%c0_198, %c24_199, %c0_200] : memref<2x40x96xf32, #tpu.memory_space<vmem>>, vector<1x8x96xf32>
    %569 = vector.shape_cast %568 : vector<1x8x96xf32> to vector<8x96xf32>
    %c1_201 = arith.constant 1 : index
    %c8_202 = arith.constant 8 : index
    %c0_203 = arith.constant 0 : index
    %570 = vector.load %arg21[%c1_201, %c8_202, %c0_203] : memref<2x40x96xf32, #tpu.memory_space<vmem>>, vector<1x8x96xf32>
    %571 = vector.shape_cast %570 : vector<1x8x96xf32> to vector<8x96xf32>
    %cst_204 = arith.constant dense<0.000000e+00> : vector<8x96xf32>
    %572 = tpu.matmul %539, %375, %cst_204 {dimension_numbers = #tpu.dot_dimension_numbers<[1], [0], [0], [1], [0, 0, 1, 1], [], []>} : vector<8x32xf32>, vector<32x96xf32>, vector<8x96xf32> -> vector<8x96xf32>
    %cst_205 = arith.constant dense<0.000000e+00> : vector<8x96xf32>
    %573 = tpu.matmul %567, %377, %cst_205 {dimension_numbers = #tpu.dot_dimension_numbers<[1], [0], [0], [1], [0, 0, 1, 1], [], []>} : vector<8x32xf32>, vector<32x96xf32>, vector<8x96xf32> -> vector<8x96xf32>
    %574 = vector.extract_strided_slice %569 {offsets = [0, 0], sizes = [8, 32], strides = [1, 1]} : vector<8x96xf32> to vector<8x32xf32>
    %575 = vector.extract_strided_slice %572 {offsets = [0, 0], sizes = [8, 32], strides = [1, 1]} : vector<8x96xf32> to vector<8x32xf32>
    %576 = arith.addf %574, %575 : vector<8x32xf32>
    %577 = arith.negf %576 : vector<8x32xf32>
    %578 = math.exp %577 : vector<8x32xf32>
    %cst_206 = arith.constant 1.000000e+00 : f32
    %579 = vector.broadcast %cst_206 : f32 to vector<8x32xf32>
    %580 = arith.addf %579, %578 : vector<8x32xf32>
    %581 = arith.divf %579, %580 : vector<8x32xf32>
    %582 = vector.extract_strided_slice %569 {offsets = [0, 32], sizes = [8, 32], strides = [1, 1]} : vector<8x96xf32> to vector<8x32xf32>
    %583 = vector.extract_strided_slice %572 {offsets = [0, 32], sizes = [8, 32], strides = [1, 1]} : vector<8x96xf32> to vector<8x32xf32>
    %584 = arith.addf %582, %583 : vector<8x32xf32>
    %585 = arith.negf %584 : vector<8x32xf32>
    %586 = math.exp %585 : vector<8x32xf32>
    %cst_207 = arith.constant 1.000000e+00 : f32
    %587 = vector.broadcast %cst_207 : f32 to vector<8x32xf32>
    %588 = arith.addf %587, %586 : vector<8x32xf32>
    %589 = arith.divf %587, %588 : vector<8x32xf32>
    %590 = vector.extract_strided_slice %569 {offsets = [0, 64], sizes = [8, 32], strides = [1, 1]} : vector<8x96xf32> to vector<8x32xf32>
    %591 = vector.extract_strided_slice %572 {offsets = [0, 64], sizes = [8, 32], strides = [1, 1]} : vector<8x96xf32> to vector<8x32xf32>
    %592 = vector.broadcast %379 : vector<1x32xf32> to vector<8x32xf32>
    %593 = arith.addf %591, %592 : vector<8x32xf32>
    %594 = arith.mulf %581, %593 : vector<8x32xf32>
    %595 = arith.addf %590, %594 : vector<8x32xf32>
    %596 = math.tanh %595 : vector<8x32xf32>
    %cst_208 = arith.constant 1.000000e+00 : f32
    %597 = vector.broadcast %cst_208 : f32 to vector<8x32xf32>
    %598 = arith.subf %597, %589 : vector<8x32xf32>
    %599 = arith.mulf %598, %596 : vector<8x32xf32>
    %600 = arith.mulf %589, %539 : vector<8x32xf32>
    %601 = arith.addf %599, %600 : vector<8x32xf32>
    %602 = vector.extract_strided_slice %571 {offsets = [0, 0], sizes = [8, 32], strides = [1, 1]} : vector<8x96xf32> to vector<8x32xf32>
    %603 = vector.extract_strided_slice %573 {offsets = [0, 0], sizes = [8, 32], strides = [1, 1]} : vector<8x96xf32> to vector<8x32xf32>
    %604 = arith.addf %602, %603 : vector<8x32xf32>
    %605 = arith.negf %604 : vector<8x32xf32>
    %606 = math.exp %605 : vector<8x32xf32>
    %cst_209 = arith.constant 1.000000e+00 : f32
    %607 = vector.broadcast %cst_209 : f32 to vector<8x32xf32>
    %608 = arith.addf %607, %606 : vector<8x32xf32>
    %609 = arith.divf %607, %608 : vector<8x32xf32>
    %610 = vector.extract_strided_slice %571 {offsets = [0, 32], sizes = [8, 32], strides = [1, 1]} : vector<8x96xf32> to vector<8x32xf32>
    %611 = vector.extract_strided_slice %573 {offsets = [0, 32], sizes = [8, 32], strides = [1, 1]} : vector<8x96xf32> to vector<8x32xf32>
    %612 = arith.addf %610, %611 : vector<8x32xf32>
    %613 = arith.negf %612 : vector<8x32xf32>
    %614 = math.exp %613 : vector<8x32xf32>
    %cst_210 = arith.constant 1.000000e+00 : f32
    %615 = vector.broadcast %cst_210 : f32 to vector<8x32xf32>
    %616 = arith.addf %615, %614 : vector<8x32xf32>
    %617 = arith.divf %615, %616 : vector<8x32xf32>
    %618 = vector.extract_strided_slice %571 {offsets = [0, 64], sizes = [8, 32], strides = [1, 1]} : vector<8x96xf32> to vector<8x32xf32>
    %619 = vector.extract_strided_slice %573 {offsets = [0, 64], sizes = [8, 32], strides = [1, 1]} : vector<8x96xf32> to vector<8x32xf32>
    %620 = vector.broadcast %381 : vector<1x32xf32> to vector<8x32xf32>
    %621 = arith.addf %619, %620 : vector<8x32xf32>
    %622 = arith.mulf %609, %621 : vector<8x32xf32>
    %623 = arith.addf %618, %622 : vector<8x32xf32>
    %624 = math.tanh %623 : vector<8x32xf32>
    %cst_211 = arith.constant 1.000000e+00 : f32
    %625 = vector.broadcast %cst_211 : f32 to vector<8x32xf32>
    %626 = arith.subf %625, %617 : vector<8x32xf32>
    %627 = arith.mulf %626, %624 : vector<8x32xf32>
    %628 = arith.mulf %617, %567 : vector<8x32xf32>
    %629 = arith.addf %627, %628 : vector<8x32xf32>
    %c0_212 = arith.constant 0 : index
    %c32_213 = arith.constant 32 : index
    %c0_214 = arith.constant 0 : index
    %630 = vector.load %arg21[%c0_212, %c32_213, %c0_214] : memref<2x40x96xf32, #tpu.memory_space<vmem>>, vector<1x8x96xf32>
    %631 = vector.shape_cast %630 : vector<1x8x96xf32> to vector<8x96xf32>
    %c1_215 = arith.constant 1 : index
    %c0_216 = arith.constant 0 : index
    %c0_217 = arith.constant 0 : index
    %632 = vector.load %arg21[%c1_215, %c0_216, %c0_217] : memref<2x40x96xf32, #tpu.memory_space<vmem>>, vector<1x8x96xf32>
    %633 = vector.shape_cast %632 : vector<1x8x96xf32> to vector<8x96xf32>
    %cst_218 = arith.constant dense<0.000000e+00> : vector<8x96xf32>
    %634 = tpu.matmul %601, %375, %cst_218 {dimension_numbers = #tpu.dot_dimension_numbers<[1], [0], [0], [1], [0, 0, 1, 1], [], []>} : vector<8x32xf32>, vector<32x96xf32>, vector<8x96xf32> -> vector<8x96xf32>
    %cst_219 = arith.constant dense<0.000000e+00> : vector<8x96xf32>
    %635 = tpu.matmul %629, %377, %cst_219 {dimension_numbers = #tpu.dot_dimension_numbers<[1], [0], [0], [1], [0, 0, 1, 1], [], []>} : vector<8x32xf32>, vector<32x96xf32>, vector<8x96xf32> -> vector<8x96xf32>
    %636 = vector.extract_strided_slice %631 {offsets = [0, 0], sizes = [8, 32], strides = [1, 1]} : vector<8x96xf32> to vector<8x32xf32>
    %637 = vector.extract_strided_slice %634 {offsets = [0, 0], sizes = [8, 32], strides = [1, 1]} : vector<8x96xf32> to vector<8x32xf32>
    %638 = arith.addf %636, %637 : vector<8x32xf32>
    %639 = arith.negf %638 : vector<8x32xf32>
    %640 = math.exp %639 : vector<8x32xf32>
    %cst_220 = arith.constant 1.000000e+00 : f32
    %641 = vector.broadcast %cst_220 : f32 to vector<8x32xf32>
    %642 = arith.addf %641, %640 : vector<8x32xf32>
    %643 = arith.divf %641, %642 : vector<8x32xf32>
    %644 = vector.extract_strided_slice %631 {offsets = [0, 32], sizes = [8, 32], strides = [1, 1]} : vector<8x96xf32> to vector<8x32xf32>
    %645 = vector.extract_strided_slice %634 {offsets = [0, 32], sizes = [8, 32], strides = [1, 1]} : vector<8x96xf32> to vector<8x32xf32>
    %646 = arith.addf %644, %645 : vector<8x32xf32>
    %647 = arith.negf %646 : vector<8x32xf32>
    %648 = math.exp %647 : vector<8x32xf32>
    %cst_221 = arith.constant 1.000000e+00 : f32
    %649 = vector.broadcast %cst_221 : f32 to vector<8x32xf32>
    %650 = arith.addf %649, %648 : vector<8x32xf32>
    %651 = arith.divf %649, %650 : vector<8x32xf32>
    %652 = vector.extract_strided_slice %631 {offsets = [0, 64], sizes = [8, 32], strides = [1, 1]} : vector<8x96xf32> to vector<8x32xf32>
    %653 = vector.extract_strided_slice %634 {offsets = [0, 64], sizes = [8, 32], strides = [1, 1]} : vector<8x96xf32> to vector<8x32xf32>
    %654 = vector.broadcast %379 : vector<1x32xf32> to vector<8x32xf32>
    %655 = arith.addf %653, %654 : vector<8x32xf32>
    %656 = arith.mulf %643, %655 : vector<8x32xf32>
    %657 = arith.addf %652, %656 : vector<8x32xf32>
    %658 = math.tanh %657 : vector<8x32xf32>
    %cst_222 = arith.constant 1.000000e+00 : f32
    %659 = vector.broadcast %cst_222 : f32 to vector<8x32xf32>
    %660 = arith.subf %659, %651 : vector<8x32xf32>
    %661 = arith.mulf %660, %658 : vector<8x32xf32>
    %662 = arith.mulf %651, %601 : vector<8x32xf32>
    %663 = arith.addf %661, %662 : vector<8x32xf32>
    %664 = vector.extract_strided_slice %633 {offsets = [0, 0], sizes = [8, 32], strides = [1, 1]} : vector<8x96xf32> to vector<8x32xf32>
    %665 = vector.extract_strided_slice %635 {offsets = [0, 0], sizes = [8, 32], strides = [1, 1]} : vector<8x96xf32> to vector<8x32xf32>
    %666 = arith.addf %664, %665 : vector<8x32xf32>
    %667 = arith.negf %666 : vector<8x32xf32>
    %668 = math.exp %667 : vector<8x32xf32>
    %cst_223 = arith.constant 1.000000e+00 : f32
    %669 = vector.broadcast %cst_223 : f32 to vector<8x32xf32>
    %670 = arith.addf %669, %668 : vector<8x32xf32>
    %671 = arith.divf %669, %670 : vector<8x32xf32>
    %672 = vector.extract_strided_slice %633 {offsets = [0, 32], sizes = [8, 32], strides = [1, 1]} : vector<8x96xf32> to vector<8x32xf32>
    %673 = vector.extract_strided_slice %635 {offsets = [0, 32], sizes = [8, 32], strides = [1, 1]} : vector<8x96xf32> to vector<8x32xf32>
    %674 = arith.addf %672, %673 : vector<8x32xf32>
    %675 = arith.negf %674 : vector<8x32xf32>
    %676 = math.exp %675 : vector<8x32xf32>
    %cst_224 = arith.constant 1.000000e+00 : f32
    %677 = vector.broadcast %cst_224 : f32 to vector<8x32xf32>
    %678 = arith.addf %677, %676 : vector<8x32xf32>
    %679 = arith.divf %677, %678 : vector<8x32xf32>
    %680 = vector.extract_strided_slice %633 {offsets = [0, 64], sizes = [8, 32], strides = [1, 1]} : vector<8x96xf32> to vector<8x32xf32>
    %681 = vector.extract_strided_slice %635 {offsets = [0, 64], sizes = [8, 32], strides = [1, 1]} : vector<8x96xf32> to vector<8x32xf32>
    %682 = vector.broadcast %381 : vector<1x32xf32> to vector<8x32xf32>
    %683 = arith.addf %681, %682 : vector<8x32xf32>
    %684 = arith.mulf %671, %683 : vector<8x32xf32>
    %685 = arith.addf %680, %684 : vector<8x32xf32>
    %686 = math.tanh %685 : vector<8x32xf32>
    %cst_225 = arith.constant 1.000000e+00 : f32
    %687 = vector.broadcast %cst_225 : f32 to vector<8x32xf32>
    %688 = arith.subf %687, %679 : vector<8x32xf32>
    %689 = arith.mulf %688, %686 : vector<8x32xf32>
    %690 = arith.mulf %679, %629 : vector<8x32xf32>
    %691 = arith.addf %689, %690 : vector<8x32xf32>
    %cst_226 = arith.constant dense<0.000000e+00> : vector<8x32xf32>
    %692 = tpu.matmul %0, %663, %cst_226 {dimension_numbers = #tpu.dot_dimension_numbers<[1], [0], [0], [1], [0, 0, 1, 1], [], []>} : vector<8x8xf32>, vector<8x32xf32>, vector<8x32xf32> -> vector<8x32xf32>
    %cst_227 = arith.constant dense<0.000000e+00> : vector<8x32xf32>
    %693 = tpu.matmul %0, %691, %cst_227 {dimension_numbers = #tpu.dot_dimension_numbers<[1], [0], [0], [1], [0, 0, 1, 1], [], []>} : vector<8x8xf32>, vector<8x32xf32>, vector<8x32xf32> -> vector<8x32xf32>
    %c0_228 = arith.constant 0 : index
    %c0_229 = arith.constant 0 : index
    %694 = vector.load %arg3[%c0_228, %c0_229] : memref<32x24xf32, #tpu.memory_space<vmem>>, vector<32x24xf32>
    %c0_230 = arith.constant 0 : index
    %c0_231 = arith.constant 0 : index
    %c0_232 = arith.constant 0 : index
    %695 = vector.load %arg12[%c0_230, %c0_231, %c0_232] : memref<2x24x96xf32, #tpu.memory_space<vmem>>, vector<1x24x96xf32>
    %696 = vector.shape_cast %695 : vector<1x24x96xf32> to vector<24x96xf32>
    %cst_233 = arith.constant dense<0.000000e+00> : vector<32x96xf32>
    %697 = tpu.matmul %694, %696, %cst_233 {dimension_numbers = #tpu.dot_dimension_numbers<[1], [0], [0], [1], [0, 0, 1, 1], [], []>} : vector<32x24xf32>, vector<24x96xf32>, vector<32x96xf32> -> vector<32x96xf32>
    %c0_234 = arith.constant 0 : index
    %c0_235 = arith.constant 0 : index
    %c0_236 = arith.constant 0 : index
    %698 = vector.load %arg13[%c0_234, %c0_235, %c0_236] : memref<2x1x96xf32, #tpu.memory_space<vmem>>, vector<1x1x96xf32>
    %699 = vector.shape_cast %698 : vector<1x1x96xf32> to vector<1x96xf32>
    %700 = vector.broadcast %699 : vector<1x96xf32> to vector<32x96xf32>
    %701 = arith.addf %697, %700 : vector<32x96xf32>
    %c0_237 = arith.constant 0 : index
    %c0_238 = arith.constant 0 : index
    %c0_239 = arith.constant 0 : index
    %702 = vector.load %arg21[%c0_237, %c0_238, %c0_239] : memref<2x40x96xf32, #tpu.memory_space<vmem>>, vector<1x32x96xf32>
    %703 = vector.shape_cast %702 : vector<1x32x96xf32> to vector<32x96xf32>
    %704 = vector.shape_cast %701 : vector<32x96xf32> to vector<1x32x96xf32>
    tpu.vector_store %arg21[%c0_237, %c0_238, %c0_239], %704 {strides = array<i32>} : memref<2x40x96xf32, #tpu.memory_space<vmem>>, vector<1x32x96xf32>,
    %c1_240 = arith.constant 1 : index
    %c0_241 = arith.constant 0 : index
    %c0_242 = arith.constant 0 : index
    %705 = vector.load %arg12[%c1_240, %c0_241, %c0_242] : memref<2x24x96xf32, #tpu.memory_space<vmem>>, vector<1x24x96xf32>
    %706 = vector.shape_cast %705 : vector<1x24x96xf32> to vector<24x96xf32>
    %cst_243 = arith.constant dense<0.000000e+00> : vector<32x96xf32>
    %707 = tpu.matmul %694, %706, %cst_243 {dimension_numbers = #tpu.dot_dimension_numbers<[1], [0], [0], [1], [0, 0, 1, 1], [], []>} : vector<32x24xf32>, vector<24x96xf32>, vector<32x96xf32> -> vector<32x96xf32>
    %c1_244 = arith.constant 1 : index
    %c0_245 = arith.constant 0 : index
    %c0_246 = arith.constant 0 : index
    %708 = vector.load %arg13[%c1_244, %c0_245, %c0_246] : memref<2x1x96xf32, #tpu.memory_space<vmem>>, vector<1x1x96xf32>
    %709 = vector.shape_cast %708 : vector<1x1x96xf32> to vector<1x96xf32>
    %710 = vector.broadcast %709 : vector<1x96xf32> to vector<32x96xf32>
    %711 = arith.addf %707, %710 : vector<32x96xf32>
    %c1_247 = arith.constant 1 : index
    %c0_248 = arith.constant 0 : index
    %c0_249 = arith.constant 0 : index
    %712 = vector.load %arg21[%c1_247, %c0_248, %c0_249] : memref<2x40x96xf32, #tpu.memory_space<vmem>>, vector<1x32x96xf32>
    %713 = vector.shape_cast %712 : vector<1x32x96xf32> to vector<32x96xf32>
    %714 = vector.shape_cast %711 : vector<32x96xf32> to vector<1x32x96xf32>
    tpu.vector_store %arg21[%c1_247, %c0_248, %c0_249], %714 {strides = array<i32>} : memref<2x40x96xf32, #tpu.memory_space<vmem>>, vector<1x32x96xf32>,
    %c0_250 = arith.constant 0 : index
    %c0_251 = arith.constant 0 : index
    %c0_252 = arith.constant 0 : index
    %715 = vector.load %arg14[%c0_250, %c0_251, %c0_252] : memref<2x32x96xf32, #tpu.memory_space<vmem>>, vector<1x32x96xf32>
    %716 = vector.shape_cast %715 : vector<1x32x96xf32> to vector<32x96xf32>
    %c1_253 = arith.constant 1 : index
    %c0_254 = arith.constant 0 : index
    %c0_255 = arith.constant 0 : index
    %717 = vector.load %arg14[%c1_253, %c0_254, %c0_255] : memref<2x32x96xf32, #tpu.memory_space<vmem>>, vector<1x32x96xf32>
    %718 = vector.shape_cast %717 : vector<1x32x96xf32> to vector<32x96xf32>
    %c0_256 = arith.constant 0 : index
    %c0_257 = arith.constant 0 : index
    %c0_258 = arith.constant 0 : index
    %719 = vector.load %arg15[%c0_256, %c0_257, %c0_258] : memref<2x1x32xf32, #tpu.memory_space<vmem>>, vector<1x1x32xf32>
    %720 = vector.shape_cast %719 : vector<1x1x32xf32> to vector<1x32xf32>
    %c1_259 = arith.constant 1 : index
    %c0_260 = arith.constant 0 : index
    %c0_261 = arith.constant 0 : index
    %721 = vector.load %arg15[%c1_259, %c0_260, %c0_261] : memref<2x1x32xf32, #tpu.memory_space<vmem>>, vector<1x1x32xf32>
    %722 = vector.shape_cast %721 : vector<1x1x32xf32> to vector<1x32xf32>
    %c0_262 = arith.constant 0 : index
    %c0_263 = arith.constant 0 : index
    %c0_264 = arith.constant 0 : index
    %723 = vector.load %arg21[%c0_262, %c0_263, %c0_264] : memref<2x40x96xf32, #tpu.memory_space<vmem>>, vector<1x8x96xf32>
    %724 = vector.shape_cast %723 : vector<1x8x96xf32> to vector<8x96xf32>
    %c1_265 = arith.constant 1 : index
    %c24_266 = arith.constant 24 : index
    %c0_267 = arith.constant 0 : index
    %725 = vector.load %arg21[%c1_265, %c24_266, %c0_267] : memref<2x40x96xf32, #tpu.memory_space<vmem>>, vector<1x8x96xf32>
    %726 = vector.shape_cast %725 : vector<1x8x96xf32> to vector<8x96xf32>
    %cst_268 = arith.constant dense<0.000000e+00> : vector<8x96xf32>
    %727 = tpu.matmul %351, %716, %cst_268 {dimension_numbers = #tpu.dot_dimension_numbers<[1], [0], [0], [1], [0, 0, 1, 1], [], []>} : vector<8x32xf32>, vector<32x96xf32>, vector<8x96xf32> -> vector<8x96xf32>
    %cst_269 = arith.constant dense<0.000000e+00> : vector<8x96xf32>
    %728 = tpu.matmul %352, %718, %cst_269 {dimension_numbers = #tpu.dot_dimension_numbers<[1], [0], [0], [1], [0, 0, 1, 1], [], []>} : vector<8x32xf32>, vector<32x96xf32>, vector<8x96xf32> -> vector<8x96xf32>
    %729 = vector.extract_strided_slice %724 {offsets = [0, 0], sizes = [8, 32], strides = [1, 1]} : vector<8x96xf32> to vector<8x32xf32>
    %730 = vector.extract_strided_slice %727 {offsets = [0, 0], sizes = [8, 32], strides = [1, 1]} : vector<8x96xf32> to vector<8x32xf32>
    %731 = arith.addf %729, %730 : vector<8x32xf32>
    %732 = arith.negf %731 : vector<8x32xf32>
    %733 = math.exp %732 : vector<8x32xf32>
    %cst_270 = arith.constant 1.000000e+00 : f32
    %734 = vector.broadcast %cst_270 : f32 to vector<8x32xf32>
    %735 = arith.addf %734, %733 : vector<8x32xf32>
    %736 = arith.divf %734, %735 : vector<8x32xf32>
    %737 = vector.extract_strided_slice %724 {offsets = [0, 32], sizes = [8, 32], strides = [1, 1]} : vector<8x96xf32> to vector<8x32xf32>
    %738 = vector.extract_strided_slice %727 {offsets = [0, 32], sizes = [8, 32], strides = [1, 1]} : vector<8x96xf32> to vector<8x32xf32>
    %739 = arith.addf %737, %738 : vector<8x32xf32>
    %740 = arith.negf %739 : vector<8x32xf32>
    %741 = math.exp %740 : vector<8x32xf32>
    %cst_271 = arith.constant 1.000000e+00 : f32
    %742 = vector.broadcast %cst_271 : f32 to vector<8x32xf32>
    %743 = arith.addf %742, %741 : vector<8x32xf32>
    %744 = arith.divf %742, %743 : vector<8x32xf32>
    %745 = vector.extract_strided_slice %724 {offsets = [0, 64], sizes = [8, 32], strides = [1, 1]} : vector<8x96xf32> to vector<8x32xf32>
    %746 = vector.extract_strided_slice %727 {offsets = [0, 64], sizes = [8, 32], strides = [1, 1]} : vector<8x96xf32> to vector<8x32xf32>
    %747 = vector.broadcast %720 : vector<1x32xf32> to vector<8x32xf32>
    %748 = arith.addf %746, %747 : vector<8x32xf32>
    %749 = arith.mulf %736, %748 : vector<8x32xf32>
    %750 = arith.addf %745, %749 : vector<8x32xf32>
    %751 = math.tanh %750 : vector<8x32xf32>
    %cst_272 = arith.constant 1.000000e+00 : f32
    %752 = vector.broadcast %cst_272 : f32 to vector<8x32xf32>
    %753 = arith.subf %752, %744 : vector<8x32xf32>
    %754 = arith.mulf %753, %751 : vector<8x32xf32>
    %755 = arith.mulf %744, %351 : vector<8x32xf32>
    %756 = arith.addf %754, %755 : vector<8x32xf32>
    %757 = vector.extract_strided_slice %726 {offsets = [0, 0], sizes = [8, 32], strides = [1, 1]} : vector<8x96xf32> to vector<8x32xf32>
    %758 = vector.extract_strided_slice %728 {offsets = [0, 0], sizes = [8, 32], strides = [1, 1]} : vector<8x96xf32> to vector<8x32xf32>
    %759 = arith.addf %757, %758 : vector<8x32xf32>
    %760 = arith.negf %759 : vector<8x32xf32>
    %761 = math.exp %760 : vector<8x32xf32>
    %cst_273 = arith.constant 1.000000e+00 : f32
    %762 = vector.broadcast %cst_273 : f32 to vector<8x32xf32>
    %763 = arith.addf %762, %761 : vector<8x32xf32>
    %764 = arith.divf %762, %763 : vector<8x32xf32>
    %765 = vector.extract_strided_slice %726 {offsets = [0, 32], sizes = [8, 32], strides = [1, 1]} : vector<8x96xf32> to vector<8x32xf32>
    %766 = vector.extract_strided_slice %728 {offsets = [0, 32], sizes = [8, 32], strides = [1, 1]} : vector<8x96xf32> to vector<8x32xf32>
    %767 = arith.addf %765, %766 : vector<8x32xf32>
    %768 = arith.negf %767 : vector<8x32xf32>
    %769 = math.exp %768 : vector<8x32xf32>
    %cst_274 = arith.constant 1.000000e+00 : f32
    %770 = vector.broadcast %cst_274 : f32 to vector<8x32xf32>
    %771 = arith.addf %770, %769 : vector<8x32xf32>
    %772 = arith.divf %770, %771 : vector<8x32xf32>
    %773 = vector.extract_strided_slice %726 {offsets = [0, 64], sizes = [8, 32], strides = [1, 1]} : vector<8x96xf32> to vector<8x32xf32>
    %774 = vector.extract_strided_slice %728 {offsets = [0, 64], sizes = [8, 32], strides = [1, 1]} : vector<8x96xf32> to vector<8x32xf32>
    %775 = vector.broadcast %722 : vector<1x32xf32> to vector<8x32xf32>
    %776 = arith.addf %774, %775 : vector<8x32xf32>
    %777 = arith.mulf %764, %776 : vector<8x32xf32>
    %778 = arith.addf %773, %777 : vector<8x32xf32>
    %779 = math.tanh %778 : vector<8x32xf32>
    %cst_275 = arith.constant 1.000000e+00 : f32
    %780 = vector.broadcast %cst_275 : f32 to vector<8x32xf32>
    %781 = arith.subf %780, %772 : vector<8x32xf32>
    %782 = arith.mulf %781, %779 : vector<8x32xf32>
    %783 = arith.mulf %772, %352 : vector<8x32xf32>
    %784 = arith.addf %782, %783 : vector<8x32xf32>
    %c0_276 = arith.constant 0 : index
    %c0_277 = arith.constant 0 : index
    %785 = vector.load %arg22[%c0_276, %c0_277] : memref<40x64xf32, #tpu.memory_space<vmem>>, vector<8x32xf32>
    tpu.vector_store %arg22[%c0_276, %c0_277], %756 {strides = array<i32>} : memref<40x64xf32, #tpu.memory_space<vmem>>, vector<8x32xf32>,
    %c24_278 = arith.constant 24 : index
    %c32_279 = arith.constant 32 : index
    %786 = vector.load %arg22[%c24_278, %c32_279] : memref<40x64xf32, #tpu.memory_space<vmem>>, vector<8x32xf32>
    tpu.vector_store %arg22[%c24_278, %c32_279], %784 {strides = array<i32>} : memref<40x64xf32, #tpu.memory_space<vmem>>, vector<8x32xf32>,
    %c0_280 = arith.constant 0 : index
    %c8_281 = arith.constant 8 : index
    %c0_282 = arith.constant 0 : index
    %787 = vector.load %arg21[%c0_280, %c8_281, %c0_282] : memref<2x40x96xf32, #tpu.memory_space<vmem>>, vector<1x8x96xf32>
    %788 = vector.shape_cast %787 : vector<1x8x96xf32> to vector<8x96xf32>
    %c1_283 = arith.constant 1 : index
    %c16_284 = arith.constant 16 : index
    %c0_285 = arith.constant 0 : index
    %789 = vector.load %arg21[%c1_283, %c16_284, %c0_285] : memref<2x40x96xf32, #tpu.memory_space<vmem>>, vector<1x8x96xf32>
    %790 = vector.shape_cast %789 : vector<1x8x96xf32> to vector<8x96xf32>
    %cst_286 = arith.constant dense<0.000000e+00> : vector<8x96xf32>
    %791 = tpu.matmul %756, %716, %cst_286 {dimension_numbers = #tpu.dot_dimension_numbers<[1], [0], [0], [1], [0, 0, 1, 1], [], []>} : vector<8x32xf32>, vector<32x96xf32>, vector<8x96xf32> -> vector<8x96xf32>
    %cst_287 = arith.constant dense<0.000000e+00> : vector<8x96xf32>
    %792 = tpu.matmul %784, %718, %cst_287 {dimension_numbers = #tpu.dot_dimension_numbers<[1], [0], [0], [1], [0, 0, 1, 1], [], []>} : vector<8x32xf32>, vector<32x96xf32>, vector<8x96xf32> -> vector<8x96xf32>
    %793 = vector.extract_strided_slice %788 {offsets = [0, 0], sizes = [8, 32], strides = [1, 1]} : vector<8x96xf32> to vector<8x32xf32>
    %794 = vector.extract_strided_slice %791 {offsets = [0, 0], sizes = [8, 32], strides = [1, 1]} : vector<8x96xf32> to vector<8x32xf32>
    %795 = arith.addf %793, %794 : vector<8x32xf32>
    %796 = arith.negf %795 : vector<8x32xf32>
    %797 = math.exp %796 : vector<8x32xf32>
    %cst_288 = arith.constant 1.000000e+00 : f32
    %798 = vector.broadcast %cst_288 : f32 to vector<8x32xf32>
    %799 = arith.addf %798, %797 : vector<8x32xf32>
    %800 = arith.divf %798, %799 : vector<8x32xf32>
    %801 = vector.extract_strided_slice %788 {offsets = [0, 32], sizes = [8, 32], strides = [1, 1]} : vector<8x96xf32> to vector<8x32xf32>
    %802 = vector.extract_strided_slice %791 {offsets = [0, 32], sizes = [8, 32], strides = [1, 1]} : vector<8x96xf32> to vector<8x32xf32>
    %803 = arith.addf %801, %802 : vector<8x32xf32>
    %804 = arith.negf %803 : vector<8x32xf32>
    %805 = math.exp %804 : vector<8x32xf32>
    %cst_289 = arith.constant 1.000000e+00 : f32
    %806 = vector.broadcast %cst_289 : f32 to vector<8x32xf32>
    %807 = arith.addf %806, %805 : vector<8x32xf32>
    %808 = arith.divf %806, %807 : vector<8x32xf32>
    %809 = vector.extract_strided_slice %788 {offsets = [0, 64], sizes = [8, 32], strides = [1, 1]} : vector<8x96xf32> to vector<8x32xf32>
    %810 = vector.extract_strided_slice %791 {offsets = [0, 64], sizes = [8, 32], strides = [1, 1]} : vector<8x96xf32> to vector<8x32xf32>
    %811 = vector.broadcast %720 : vector<1x32xf32> to vector<8x32xf32>
    %812 = arith.addf %810, %811 : vector<8x32xf32>
    %813 = arith.mulf %800, %812 : vector<8x32xf32>
    %814 = arith.addf %809, %813 : vector<8x32xf32>
    %815 = math.tanh %814 : vector<8x32xf32>
    %cst_290 = arith.constant 1.000000e+00 : f32
    %816 = vector.broadcast %cst_290 : f32 to vector<8x32xf32>
    %817 = arith.subf %816, %808 : vector<8x32xf32>
    %818 = arith.mulf %817, %815 : vector<8x32xf32>
    %819 = arith.mulf %808, %756 : vector<8x32xf32>
    %820 = arith.addf %818, %819 : vector<8x32xf32>
    %821 = vector.extract_strided_slice %790 {offsets = [0, 0], sizes = [8, 32], strides = [1, 1]} : vector<8x96xf32> to vector<8x32xf32>
    %822 = vector.extract_strided_slice %792 {offsets = [0, 0], sizes = [8, 32], strides = [1, 1]} : vector<8x96xf32> to vector<8x32xf32>
    %823 = arith.addf %821, %822 : vector<8x32xf32>
    %824 = arith.negf %823 : vector<8x32xf32>
    %825 = math.exp %824 : vector<8x32xf32>
    %cst_291 = arith.constant 1.000000e+00 : f32
    %826 = vector.broadcast %cst_291 : f32 to vector<8x32xf32>
    %827 = arith.addf %826, %825 : vector<8x32xf32>
    %828 = arith.divf %826, %827 : vector<8x32xf32>
    %829 = vector.extract_strided_slice %790 {offsets = [0, 32], sizes = [8, 32], strides = [1, 1]} : vector<8x96xf32> to vector<8x32xf32>
    %830 = vector.extract_strided_slice %792 {offsets = [0, 32], sizes = [8, 32], strides = [1, 1]} : vector<8x96xf32> to vector<8x32xf32>
    %831 = arith.addf %829, %830 : vector<8x32xf32>
    %832 = arith.negf %831 : vector<8x32xf32>
    %833 = math.exp %832 : vector<8x32xf32>
    %cst_292 = arith.constant 1.000000e+00 : f32
    %834 = vector.broadcast %cst_292 : f32 to vector<8x32xf32>
    %835 = arith.addf %834, %833 : vector<8x32xf32>
    %836 = arith.divf %834, %835 : vector<8x32xf32>
    %837 = vector.extract_strided_slice %790 {offsets = [0, 64], sizes = [8, 32], strides = [1, 1]} : vector<8x96xf32> to vector<8x32xf32>
    %838 = vector.extract_strided_slice %792 {offsets = [0, 64], sizes = [8, 32], strides = [1, 1]} : vector<8x96xf32> to vector<8x32xf32>
    %839 = vector.broadcast %722 : vector<1x32xf32> to vector<8x32xf32>
    %840 = arith.addf %838, %839 : vector<8x32xf32>
    %841 = arith.mulf %828, %840 : vector<8x32xf32>
    %842 = arith.addf %837, %841 : vector<8x32xf32>
    %843 = math.tanh %842 : vector<8x32xf32>
    %cst_293 = arith.constant 1.000000e+00 : f32
    %844 = vector.broadcast %cst_293 : f32 to vector<8x32xf32>
    %845 = arith.subf %844, %836 : vector<8x32xf32>
    %846 = arith.mulf %845, %843 : vector<8x32xf32>
    %847 = arith.mulf %836, %784 : vector<8x32xf32>
    %848 = arith.addf %846, %847 : vector<8x32xf32>
    %c8_294 = arith.constant 8 : index
    %c0_295 = arith.constant 0 : index
    %849 = vector.load %arg22[%c8_294, %c0_295] : memref<40x64xf32, #tpu.memory_space<vmem>>, vector<8x32xf32>
    tpu.vector_store %arg22[%c8_294, %c0_295], %820 {strides = array<i32>} : memref<40x64xf32, #tpu.memory_space<vmem>>, vector<8x32xf32>,
    %c16_296 = arith.constant 16 : index
    %c32_297 = arith.constant 32 : index
    %850 = vector.load %arg22[%c16_296, %c32_297] : memref<40x64xf32, #tpu.memory_space<vmem>>, vector<8x32xf32>
    tpu.vector_store %arg22[%c16_296, %c32_297], %848 {strides = array<i32>} : memref<40x64xf32, #tpu.memory_space<vmem>>, vector<8x32xf32>,
    %c0_298 = arith.constant 0 : index
    %c16_299 = arith.constant 16 : index
    %c0_300 = arith.constant 0 : index
    %851 = vector.load %arg21[%c0_298, %c16_299, %c0_300] : memref<2x40x96xf32, #tpu.memory_space<vmem>>, vector<1x8x96xf32>
    %852 = vector.shape_cast %851 : vector<1x8x96xf32> to vector<8x96xf32>
    %c1_301 = arith.constant 1 : index
    %c8_302 = arith.constant 8 : index
    %c0_303 = arith.constant 0 : index
    %853 = vector.load %arg21[%c1_301, %c8_302, %c0_303] : memref<2x40x96xf32, #tpu.memory_space<vmem>>, vector<1x8x96xf32>
    %854 = vector.shape_cast %853 : vector<1x8x96xf32> to vector<8x96xf32>
    %cst_304 = arith.constant dense<0.000000e+00> : vector<8x96xf32>
    %855 = tpu.matmul %820, %716, %cst_304 {dimension_numbers = #tpu.dot_dimension_numbers<[1], [0], [0], [1], [0, 0, 1, 1], [], []>} : vector<8x32xf32>, vector<32x96xf32>, vector<8x96xf32> -> vector<8x96xf32>
    %cst_305 = arith.constant dense<0.000000e+00> : vector<8x96xf32>
    %856 = tpu.matmul %848, %718, %cst_305 {dimension_numbers = #tpu.dot_dimension_numbers<[1], [0], [0], [1], [0, 0, 1, 1], [], []>} : vector<8x32xf32>, vector<32x96xf32>, vector<8x96xf32> -> vector<8x96xf32>
    %857 = vector.extract_strided_slice %852 {offsets = [0, 0], sizes = [8, 32], strides = [1, 1]} : vector<8x96xf32> to vector<8x32xf32>
    %858 = vector.extract_strided_slice %855 {offsets = [0, 0], sizes = [8, 32], strides = [1, 1]} : vector<8x96xf32> to vector<8x32xf32>
    %859 = arith.addf %857, %858 : vector<8x32xf32>
    %860 = arith.negf %859 : vector<8x32xf32>
    %861 = math.exp %860 : vector<8x32xf32>
    %cst_306 = arith.constant 1.000000e+00 : f32
    %862 = vector.broadcast %cst_306 : f32 to vector<8x32xf32>
    %863 = arith.addf %862, %861 : vector<8x32xf32>
    %864 = arith.divf %862, %863 : vector<8x32xf32>
    %865 = vector.extract_strided_slice %852 {offsets = [0, 32], sizes = [8, 32], strides = [1, 1]} : vector<8x96xf32> to vector<8x32xf32>
    %866 = vector.extract_strided_slice %855 {offsets = [0, 32], sizes = [8, 32], strides = [1, 1]} : vector<8x96xf32> to vector<8x32xf32>
    %867 = arith.addf %865, %866 : vector<8x32xf32>
    %868 = arith.negf %867 : vector<8x32xf32>
    %869 = math.exp %868 : vector<8x32xf32>
    %cst_307 = arith.constant 1.000000e+00 : f32
    %870 = vector.broadcast %cst_307 : f32 to vector<8x32xf32>
    %871 = arith.addf %870, %869 : vector<8x32xf32>
    %872 = arith.divf %870, %871 : vector<8x32xf32>
    %873 = vector.extract_strided_slice %852 {offsets = [0, 64], sizes = [8, 32], strides = [1, 1]} : vector<8x96xf32> to vector<8x32xf32>
    %874 = vector.extract_strided_slice %855 {offsets = [0, 64], sizes = [8, 32], strides = [1, 1]} : vector<8x96xf32> to vector<8x32xf32>
    %875 = vector.broadcast %720 : vector<1x32xf32> to vector<8x32xf32>
    %876 = arith.addf %874, %875 : vector<8x32xf32>
    %877 = arith.mulf %864, %876 : vector<8x32xf32>
    %878 = arith.addf %873, %877 : vector<8x32xf32>
    %879 = math.tanh %878 : vector<8x32xf32>
    %cst_308 = arith.constant 1.000000e+00 : f32
    %880 = vector.broadcast %cst_308 : f32 to vector<8x32xf32>
    %881 = arith.subf %880, %872 : vector<8x32xf32>
    %882 = arith.mulf %881, %879 : vector<8x32xf32>
    %883 = arith.mulf %872, %820 : vector<8x32xf32>
    %884 = arith.addf %882, %883 : vector<8x32xf32>
    %885 = vector.extract_strided_slice %854 {offsets = [0, 0], sizes = [8, 32], strides = [1, 1]} : vector<8x96xf32> to vector<8x32xf32>
    %886 = vector.extract_strided_slice %856 {offsets = [0, 0], sizes = [8, 32], strides = [1, 1]} : vector<8x96xf32> to vector<8x32xf32>
    %887 = arith.addf %885, %886 : vector<8x32xf32>
    %888 = arith.negf %887 : vector<8x32xf32>
    %889 = math.exp %888 : vector<8x32xf32>
    %cst_309 = arith.constant 1.000000e+00 : f32
    %890 = vector.broadcast %cst_309 : f32 to vector<8x32xf32>
    %891 = arith.addf %890, %889 : vector<8x32xf32>
    %892 = arith.divf %890, %891 : vector<8x32xf32>
    %893 = vector.extract_strided_slice %854 {offsets = [0, 32], sizes = [8, 32], strides = [1, 1]} : vector<8x96xf32> to vector<8x32xf32>
    %894 = vector.extract_strided_slice %856 {offsets = [0, 32], sizes = [8, 32], strides = [1, 1]} : vector<8x96xf32> to vector<8x32xf32>
    %895 = arith.addf %893, %894 : vector<8x32xf32>
    %896 = arith.negf %895 : vector<8x32xf32>
    %897 = math.exp %896 : vector<8x32xf32>
    %cst_310 = arith.constant 1.000000e+00 : f32
    %898 = vector.broadcast %cst_310 : f32 to vector<8x32xf32>
    %899 = arith.addf %898, %897 : vector<8x32xf32>
    %900 = arith.divf %898, %899 : vector<8x32xf32>
    %901 = vector.extract_strided_slice %854 {offsets = [0, 64], sizes = [8, 32], strides = [1, 1]} : vector<8x96xf32> to vector<8x32xf32>
    %902 = vector.extract_strided_slice %856 {offsets = [0, 64], sizes = [8, 32], strides = [1, 1]} : vector<8x96xf32> to vector<8x32xf32>
    %903 = vector.broadcast %722 : vector<1x32xf32> to vector<8x32xf32>
    %904 = arith.addf %902, %903 : vector<8x32xf32>
    %905 = arith.mulf %892, %904 : vector<8x32xf32>
    %906 = arith.addf %901, %905 : vector<8x32xf32>
    %907 = math.tanh %906 : vector<8x32xf32>
    %cst_311 = arith.constant 1.000000e+00 : f32
    %908 = vector.broadcast %cst_311 : f32 to vector<8x32xf32>
    %909 = arith.subf %908, %900 : vector<8x32xf32>
    %910 = arith.mulf %909, %907 : vector<8x32xf32>
    %911 = arith.mulf %900, %848 : vector<8x32xf32>
    %912 = arith.addf %910, %911 : vector<8x32xf32>
    %c16_312 = arith.constant 16 : index
    %c0_313 = arith.constant 0 : index
    %913 = vector.load %arg22[%c16_312, %c0_313] : memref<40x64xf32, #tpu.memory_space<vmem>>, vector<8x32xf32>
    tpu.vector_store %arg22[%c16_312, %c0_313], %884 {strides = array<i32>} : memref<40x64xf32, #tpu.memory_space<vmem>>, vector<8x32xf32>,
    %c8_314 = arith.constant 8 : index
    %c32_315 = arith.constant 32 : index
    %914 = vector.load %arg22[%c8_314, %c32_315] : memref<40x64xf32, #tpu.memory_space<vmem>>, vector<8x32xf32>
    tpu.vector_store %arg22[%c8_314, %c32_315], %912 {strides = array<i32>} : memref<40x64xf32, #tpu.memory_space<vmem>>, vector<8x32xf32>,
    %c0_316 = arith.constant 0 : index
    %c24_317 = arith.constant 24 : index
    %c0_318 = arith.constant 0 : index
    %915 = vector.load %arg21[%c0_316, %c24_317, %c0_318] : memref<2x40x96xf32, #tpu.memory_space<vmem>>, vector<1x8x96xf32>
    %916 = vector.shape_cast %915 : vector<1x8x96xf32> to vector<8x96xf32>
    %c1_319 = arith.constant 1 : index
    %c0_320 = arith.constant 0 : index
    %c0_321 = arith.constant 0 : index
    %917 = vector.load %arg21[%c1_319, %c0_320, %c0_321] : memref<2x40x96xf32, #tpu.memory_space<vmem>>, vector<1x8x96xf32>
    %918 = vector.shape_cast %917 : vector<1x8x96xf32> to vector<8x96xf32>
    %cst_322 = arith.constant dense<0.000000e+00> : vector<8x96xf32>
    %919 = tpu.matmul %884, %716, %cst_322 {dimension_numbers = #tpu.dot_dimension_numbers<[1], [0], [0], [1], [0, 0, 1, 1], [], []>} : vector<8x32xf32>, vector<32x96xf32>, vector<8x96xf32> -> vector<8x96xf32>
    %cst_323 = arith.constant dense<0.000000e+00> : vector<8x96xf32>
    %920 = tpu.matmul %912, %718, %cst_323 {dimension_numbers = #tpu.dot_dimension_numbers<[1], [0], [0], [1], [0, 0, 1, 1], [], []>} : vector<8x32xf32>, vector<32x96xf32>, vector<8x96xf32> -> vector<8x96xf32>
    %921 = vector.extract_strided_slice %916 {offsets = [0, 0], sizes = [8, 32], strides = [1, 1]} : vector<8x96xf32> to vector<8x32xf32>
    %922 = vector.extract_strided_slice %919 {offsets = [0, 0], sizes = [8, 32], strides = [1, 1]} : vector<8x96xf32> to vector<8x32xf32>
    %923 = arith.addf %921, %922 : vector<8x32xf32>
    %924 = arith.negf %923 : vector<8x32xf32>
    %925 = math.exp %924 : vector<8x32xf32>
    %cst_324 = arith.constant 1.000000e+00 : f32
    %926 = vector.broadcast %cst_324 : f32 to vector<8x32xf32>
    %927 = arith.addf %926, %925 : vector<8x32xf32>
    %928 = arith.divf %926, %927 : vector<8x32xf32>
    %929 = vector.extract_strided_slice %916 {offsets = [0, 32], sizes = [8, 32], strides = [1, 1]} : vector<8x96xf32> to vector<8x32xf32>
    %930 = vector.extract_strided_slice %919 {offsets = [0, 32], sizes = [8, 32], strides = [1, 1]} : vector<8x96xf32> to vector<8x32xf32>
    %931 = arith.addf %929, %930 : vector<8x32xf32>
    %932 = arith.negf %931 : vector<8x32xf32>
    %933 = math.exp %932 : vector<8x32xf32>
    %cst_325 = arith.constant 1.000000e+00 : f32
    %934 = vector.broadcast %cst_325 : f32 to vector<8x32xf32>
    %935 = arith.addf %934, %933 : vector<8x32xf32>
    %936 = arith.divf %934, %935 : vector<8x32xf32>
    %937 = vector.extract_strided_slice %916 {offsets = [0, 64], sizes = [8, 32], strides = [1, 1]} : vector<8x96xf32> to vector<8x32xf32>
    %938 = vector.extract_strided_slice %919 {offsets = [0, 64], sizes = [8, 32], strides = [1, 1]} : vector<8x96xf32> to vector<8x32xf32>
    %939 = vector.broadcast %720 : vector<1x32xf32> to vector<8x32xf32>
    %940 = arith.addf %938, %939 : vector<8x32xf32>
    %941 = arith.mulf %928, %940 : vector<8x32xf32>
    %942 = arith.addf %937, %941 : vector<8x32xf32>
    %943 = math.tanh %942 : vector<8x32xf32>
    %cst_326 = arith.constant 1.000000e+00 : f32
    %944 = vector.broadcast %cst_326 : f32 to vector<8x32xf32>
    %945 = arith.subf %944, %936 : vector<8x32xf32>
    %946 = arith.mulf %945, %943 : vector<8x32xf32>
    %947 = arith.mulf %936, %884 : vector<8x32xf32>
    %948 = arith.addf %946, %947 : vector<8x32xf32>
    %949 = vector.extract_strided_slice %918 {offsets = [0, 0], sizes = [8, 32], strides = [1, 1]} : vector<8x96xf32> to vector<8x32xf32>
    %950 = vector.extract_strided_slice %920 {offsets = [0, 0], sizes = [8, 32], strides = [1, 1]} : vector<8x96xf32> to vector<8x32xf32>
    %951 = arith.addf %949, %950 : vector<8x32xf32>
    %952 = arith.negf %951 : vector<8x32xf32>
    %953 = math.exp %952 : vector<8x32xf32>
    %cst_327 = arith.constant 1.000000e+00 : f32
    %954 = vector.broadcast %cst_327 : f32 to vector<8x32xf32>
    %955 = arith.addf %954, %953 : vector<8x32xf32>
    %956 = arith.divf %954, %955 : vector<8x32xf32>
    %957 = vector.extract_strided_slice %918 {offsets = [0, 32], sizes = [8, 32], strides = [1, 1]} : vector<8x96xf32> to vector<8x32xf32>
    %958 = vector.extract_strided_slice %920 {offsets = [0, 32], sizes = [8, 32], strides = [1, 1]} : vector<8x96xf32> to vector<8x32xf32>
    %959 = arith.addf %957, %958 : vector<8x32xf32>
    %960 = arith.negf %959 : vector<8x32xf32>
    %961 = math.exp %960 : vector<8x32xf32>
    %cst_328 = arith.constant 1.000000e+00 : f32
    %962 = vector.broadcast %cst_328 : f32 to vector<8x32xf32>
    %963 = arith.addf %962, %961 : vector<8x32xf32>
    %964 = arith.divf %962, %963 : vector<8x32xf32>
    %965 = vector.extract_strided_slice %918 {offsets = [0, 64], sizes = [8, 32], strides = [1, 1]} : vector<8x96xf32> to vector<8x32xf32>
    %966 = vector.extract_strided_slice %920 {offsets = [0, 64], sizes = [8, 32], strides = [1, 1]} : vector<8x96xf32> to vector<8x32xf32>
    %967 = vector.broadcast %722 : vector<1x32xf32> to vector<8x32xf32>
    %968 = arith.addf %966, %967 : vector<8x32xf32>
    %969 = arith.mulf %956, %968 : vector<8x32xf32>
    %970 = arith.addf %965, %969 : vector<8x32xf32>
    %971 = math.tanh %970 : vector<8x32xf32>
    %cst_329 = arith.constant 1.000000e+00 : f32
    %972 = vector.broadcast %cst_329 : f32 to vector<8x32xf32>
    %973 = arith.subf %972, %964 : vector<8x32xf32>
    %974 = arith.mulf %973, %971 : vector<8x32xf32>
    %975 = arith.mulf %964, %912 : vector<8x32xf32>
    %976 = arith.addf %974, %975 : vector<8x32xf32>
    %c24_330 = arith.constant 24 : index
    %c0_331 = arith.constant 0 : index
    %977 = vector.load %arg22[%c24_330, %c0_331] : memref<40x64xf32, #tpu.memory_space<vmem>>, vector<8x32xf32>
    tpu.vector_store %arg22[%c24_330, %c0_331], %948 {strides = array<i32>} : memref<40x64xf32, #tpu.memory_space<vmem>>, vector<8x32xf32>,
    %c0_332 = arith.constant 0 : index
    %c32_333 = arith.constant 32 : index
    %978 = vector.load %arg22[%c0_332, %c32_333] : memref<40x64xf32, #tpu.memory_space<vmem>>, vector<8x32xf32>
    tpu.vector_store %arg22[%c0_332, %c32_333], %976 {strides = array<i32>} : memref<40x64xf32, #tpu.memory_space<vmem>>, vector<8x32xf32>,
    %c0_334 = arith.constant 0 : index
    %c0_335 = arith.constant 0 : index
    %979 = vector.load %arg22[%c0_334, %c0_335] : memref<40x64xf32, #tpu.memory_space<vmem>>, vector<32x64xf32>
    %c0_336 = arith.constant 0 : index
    %c0_337 = arith.constant 0 : index
    %c0_338 = arith.constant 0 : index
    %980 = vector.load %arg16[%c0_336, %c0_337, %c0_338] : memref<2x64x96xf32, #tpu.memory_space<vmem>>, vector<1x64x96xf32>
    %981 = vector.shape_cast %980 : vector<1x64x96xf32> to vector<64x96xf32>
    %cst_339 = arith.constant dense<0.000000e+00> : vector<32x96xf32>
    %982 = tpu.matmul %979, %981, %cst_339 {dimension_numbers = #tpu.dot_dimension_numbers<[1], [0], [0], [1], [0, 0, 1, 1], [], []>} : vector<32x64xf32>, vector<64x96xf32>, vector<32x96xf32> -> vector<32x96xf32>
    %c0_340 = arith.constant 0 : index
    %c0_341 = arith.constant 0 : index
    %c0_342 = arith.constant 0 : index
    %983 = vector.load %arg17[%c0_340, %c0_341, %c0_342] : memref<2x1x96xf32, #tpu.memory_space<vmem>>, vector<1x1x96xf32>
    %984 = vector.shape_cast %983 : vector<1x1x96xf32> to vector<1x96xf32>
    %985 = vector.broadcast %984 : vector<1x96xf32> to vector<32x96xf32>
    %986 = arith.addf %982, %985 : vector<32x96xf32>
    %c0_343 = arith.constant 0 : index
    %c0_344 = arith.constant 0 : index
    %c0_345 = arith.constant 0 : index
    %987 = vector.load %arg21[%c0_343, %c0_344, %c0_345] : memref<2x40x96xf32, #tpu.memory_space<vmem>>, vector<1x32x96xf32>
    %988 = vector.shape_cast %987 : vector<1x32x96xf32> to vector<32x96xf32>
    %989 = vector.shape_cast %986 : vector<32x96xf32> to vector<1x32x96xf32>
    tpu.vector_store %arg21[%c0_343, %c0_344, %c0_345], %989 {strides = array<i32>} : memref<2x40x96xf32, #tpu.memory_space<vmem>>, vector<1x32x96xf32>,
    %c1_346 = arith.constant 1 : index
    %c0_347 = arith.constant 0 : index
    %c0_348 = arith.constant 0 : index
    %990 = vector.load %arg16[%c1_346, %c0_347, %c0_348] : memref<2x64x96xf32, #tpu.memory_space<vmem>>, vector<1x64x96xf32>
    %991 = vector.shape_cast %990 : vector<1x64x96xf32> to vector<64x96xf32>
    %cst_349 = arith.constant dense<0.000000e+00> : vector<32x96xf32>
    %992 = tpu.matmul %979, %991, %cst_349 {dimension_numbers = #tpu.dot_dimension_numbers<[1], [0], [0], [1], [0, 0, 1, 1], [], []>} : vector<32x64xf32>, vector<64x96xf32>, vector<32x96xf32> -> vector<32x96xf32>
    %c1_350 = arith.constant 1 : index
    %c0_351 = arith.constant 0 : index
    %c0_352 = arith.constant 0 : index
    %993 = vector.load %arg17[%c1_350, %c0_351, %c0_352] : memref<2x1x96xf32, #tpu.memory_space<vmem>>, vector<1x1x96xf32>
    %994 = vector.shape_cast %993 : vector<1x1x96xf32> to vector<1x96xf32>
    %995 = vector.broadcast %994 : vector<1x96xf32> to vector<32x96xf32>
    %996 = arith.addf %992, %995 : vector<32x96xf32>
    %c1_353 = arith.constant 1 : index
    %c0_354 = arith.constant 0 : index
    %c0_355 = arith.constant 0 : index
    %997 = vector.load %arg21[%c1_353, %c0_354, %c0_355] : memref<2x40x96xf32, #tpu.memory_space<vmem>>, vector<1x32x96xf32>
    %998 = vector.shape_cast %997 : vector<1x32x96xf32> to vector<32x96xf32>
    %999 = vector.shape_cast %996 : vector<32x96xf32> to vector<1x32x96xf32>
    tpu.vector_store %arg21[%c1_353, %c0_354, %c0_355], %999 {strides = array<i32>} : memref<2x40x96xf32, #tpu.memory_space<vmem>>, vector<1x32x96xf32>,
    %c0_356 = arith.constant 0 : index
    %c0_357 = arith.constant 0 : index
    %c0_358 = arith.constant 0 : index
    %1000 = vector.load %arg18[%c0_356, %c0_357, %c0_358] : memref<2x32x96xf32, #tpu.memory_space<vmem>>, vector<1x32x96xf32>
    %1001 = vector.shape_cast %1000 : vector<1x32x96xf32> to vector<32x96xf32>
    %c1_359 = arith.constant 1 : index
    %c0_360 = arith.constant 0 : index
    %c0_361 = arith.constant 0 : index
    %1002 = vector.load %arg18[%c1_359, %c0_360, %c0_361] : memref<2x32x96xf32, #tpu.memory_space<vmem>>, vector<1x32x96xf32>
    %1003 = vector.shape_cast %1002 : vector<1x32x96xf32> to vector<32x96xf32>
    %c0_362 = arith.constant 0 : index
    %c0_363 = arith.constant 0 : index
    %c0_364 = arith.constant 0 : index
    %1004 = vector.load %arg19[%c0_362, %c0_363, %c0_364] : memref<2x1x32xf32, #tpu.memory_space<vmem>>, vector<1x1x32xf32>
    %1005 = vector.shape_cast %1004 : vector<1x1x32xf32> to vector<1x32xf32>
    %c1_365 = arith.constant 1 : index
    %c0_366 = arith.constant 0 : index
    %c0_367 = arith.constant 0 : index
    %1006 = vector.load %arg19[%c1_365, %c0_366, %c0_367] : memref<2x1x32xf32, #tpu.memory_space<vmem>>, vector<1x1x32xf32>
    %1007 = vector.shape_cast %1006 : vector<1x1x32xf32> to vector<1x32xf32>
    %c0_368 = arith.constant 0 : index
    %c0_369 = arith.constant 0 : index
    %c0_370 = arith.constant 0 : index
    %1008 = vector.load %arg21[%c0_368, %c0_369, %c0_370] : memref<2x40x96xf32, #tpu.memory_space<vmem>>, vector<1x8x96xf32>
    %1009 = vector.shape_cast %1008 : vector<1x8x96xf32> to vector<8x96xf32>
    %c1_371 = arith.constant 1 : index
    %c24_372 = arith.constant 24 : index
    %c0_373 = arith.constant 0 : index
    %1010 = vector.load %arg21[%c1_371, %c24_372, %c0_373] : memref<2x40x96xf32, #tpu.memory_space<vmem>>, vector<1x8x96xf32>
    %1011 = vector.shape_cast %1010 : vector<1x8x96xf32> to vector<8x96xf32>
    %cst_374 = arith.constant dense<0.000000e+00> : vector<8x96xf32>
    %1012 = tpu.matmul %692, %1001, %cst_374 {dimension_numbers = #tpu.dot_dimension_numbers<[1], [0], [0], [1], [0, 0, 1, 1], [], []>} : vector<8x32xf32>, vector<32x96xf32>, vector<8x96xf32> -> vector<8x96xf32>
    %cst_375 = arith.constant dense<0.000000e+00> : vector<8x96xf32>
    %1013 = tpu.matmul %693, %1003, %cst_375 {dimension_numbers = #tpu.dot_dimension_numbers<[1], [0], [0], [1], [0, 0, 1, 1], [], []>} : vector<8x32xf32>, vector<32x96xf32>, vector<8x96xf32> -> vector<8x96xf32>
    %1014 = vector.extract_strided_slice %1009 {offsets = [0, 0], sizes = [8, 32], strides = [1, 1]} : vector<8x96xf32> to vector<8x32xf32>
    %1015 = vector.extract_strided_slice %1012 {offsets = [0, 0], sizes = [8, 32], strides = [1, 1]} : vector<8x96xf32> to vector<8x32xf32>
    %1016 = arith.addf %1014, %1015 : vector<8x32xf32>
    %1017 = arith.negf %1016 : vector<8x32xf32>
    %1018 = math.exp %1017 : vector<8x32xf32>
    %cst_376 = arith.constant 1.000000e+00 : f32
    %1019 = vector.broadcast %cst_376 : f32 to vector<8x32xf32>
    %1020 = arith.addf %1019, %1018 : vector<8x32xf32>
    %1021 = arith.divf %1019, %1020 : vector<8x32xf32>
    %1022 = vector.extract_strided_slice %1009 {offsets = [0, 32], sizes = [8, 32], strides = [1, 1]} : vector<8x96xf32> to vector<8x32xf32>
    %1023 = vector.extract_strided_slice %1012 {offsets = [0, 32], sizes = [8, 32], strides = [1, 1]} : vector<8x96xf32> to vector<8x32xf32>
    %1024 = arith.addf %1022, %1023 : vector<8x32xf32>
    %1025 = arith.negf %1024 : vector<8x32xf32>
    %1026 = math.exp %1025 : vector<8x32xf32>
    %cst_377 = arith.constant 1.000000e+00 : f32
    %1027 = vector.broadcast %cst_377 : f32 to vector<8x32xf32>
    %1028 = arith.addf %1027, %1026 : vector<8x32xf32>
    %1029 = arith.divf %1027, %1028 : vector<8x32xf32>
    %1030 = vector.extract_strided_slice %1009 {offsets = [0, 64], sizes = [8, 32], strides = [1, 1]} : vector<8x96xf32> to vector<8x32xf32>
    %1031 = vector.extract_strided_slice %1012 {offsets = [0, 64], sizes = [8, 32], strides = [1, 1]} : vector<8x96xf32> to vector<8x32xf32>
    %1032 = vector.broadcast %1005 : vector<1x32xf32> to vector<8x32xf32>
    %1033 = arith.addf %1031, %1032 : vector<8x32xf32>
    %1034 = arith.mulf %1021, %1033 : vector<8x32xf32>
    %1035 = arith.addf %1030, %1034 : vector<8x32xf32>
    %1036 = math.tanh %1035 : vector<8x32xf32>
    %cst_378 = arith.constant 1.000000e+00 : f32
    %1037 = vector.broadcast %cst_378 : f32 to vector<8x32xf32>
    %1038 = arith.subf %1037, %1029 : vector<8x32xf32>
    %1039 = arith.mulf %1038, %1036 : vector<8x32xf32>
    %1040 = arith.mulf %1029, %692 : vector<8x32xf32>
    %1041 = arith.addf %1039, %1040 : vector<8x32xf32>
    %1042 = vector.extract_strided_slice %1011 {offsets = [0, 0], sizes = [8, 32], strides = [1, 1]} : vector<8x96xf32> to vector<8x32xf32>
    %1043 = vector.extract_strided_slice %1013 {offsets = [0, 0], sizes = [8, 32], strides = [1, 1]} : vector<8x96xf32> to vector<8x32xf32>
    %1044 = arith.addf %1042, %1043 : vector<8x32xf32>
    %1045 = arith.negf %1044 : vector<8x32xf32>
    %1046 = math.exp %1045 : vector<8x32xf32>
    %cst_379 = arith.constant 1.000000e+00 : f32
    %1047 = vector.broadcast %cst_379 : f32 to vector<8x32xf32>
    %1048 = arith.addf %1047, %1046 : vector<8x32xf32>
    %1049 = arith.divf %1047, %1048 : vector<8x32xf32>
    %1050 = vector.extract_strided_slice %1011 {offsets = [0, 32], sizes = [8, 32], strides = [1, 1]} : vector<8x96xf32> to vector<8x32xf32>
    %1051 = vector.extract_strided_slice %1013 {offsets = [0, 32], sizes = [8, 32], strides = [1, 1]} : vector<8x96xf32> to vector<8x32xf32>
    %1052 = arith.addf %1050, %1051 : vector<8x32xf32>
    %1053 = arith.negf %1052 : vector<8x32xf32>
    %1054 = math.exp %1053 : vector<8x32xf32>
    %cst_380 = arith.constant 1.000000e+00 : f32
    %1055 = vector.broadcast %cst_380 : f32 to vector<8x32xf32>
    %1056 = arith.addf %1055, %1054 : vector<8x32xf32>
    %1057 = arith.divf %1055, %1056 : vector<8x32xf32>
    %1058 = vector.extract_strided_slice %1011 {offsets = [0, 64], sizes = [8, 32], strides = [1, 1]} : vector<8x96xf32> to vector<8x32xf32>
    %1059 = vector.extract_strided_slice %1013 {offsets = [0, 64], sizes = [8, 32], strides = [1, 1]} : vector<8x96xf32> to vector<8x32xf32>
    %1060 = vector.broadcast %1007 : vector<1x32xf32> to vector<8x32xf32>
    %1061 = arith.addf %1059, %1060 : vector<8x32xf32>
    %1062 = arith.mulf %1049, %1061 : vector<8x32xf32>
    %1063 = arith.addf %1058, %1062 : vector<8x32xf32>
    %1064 = math.tanh %1063 : vector<8x32xf32>
    %cst_381 = arith.constant 1.000000e+00 : f32
    %1065 = vector.broadcast %cst_381 : f32 to vector<8x32xf32>
    %1066 = arith.subf %1065, %1057 : vector<8x32xf32>
    %1067 = arith.mulf %1066, %1064 : vector<8x32xf32>
    %1068 = arith.mulf %1057, %693 : vector<8x32xf32>
    %1069 = arith.addf %1067, %1068 : vector<8x32xf32>
    %c0_382 = arith.constant 0 : index
    %c0_383 = arith.constant 0 : index
    %1070 = vector.load %arg20[%c0_382, %c0_383] : memref<32x64xf32, #tpu.memory_space<vmem>>, vector<8x32xf32>
    tpu.vector_store %arg20[%c0_382, %c0_383], %1041 {strides = array<i32>} : memref<32x64xf32, #tpu.memory_space<vmem>>, vector<8x32xf32>,
    %c24_384 = arith.constant 24 : index
    %c32_385 = arith.constant 32 : index
    %1071 = vector.load %arg20[%c24_384, %c32_385] : memref<32x64xf32, #tpu.memory_space<vmem>>, vector<8x32xf32>
    tpu.vector_store %arg20[%c24_384, %c32_385], %1069 {strides = array<i32>} : memref<32x64xf32, #tpu.memory_space<vmem>>, vector<8x32xf32>,
    %c0_386 = arith.constant 0 : index
    %c8_387 = arith.constant 8 : index
    %c0_388 = arith.constant 0 : index
    %1072 = vector.load %arg21[%c0_386, %c8_387, %c0_388] : memref<2x40x96xf32, #tpu.memory_space<vmem>>, vector<1x8x96xf32>
    %1073 = vector.shape_cast %1072 : vector<1x8x96xf32> to vector<8x96xf32>
    %c1_389 = arith.constant 1 : index
    %c16_390 = arith.constant 16 : index
    %c0_391 = arith.constant 0 : index
    %1074 = vector.load %arg21[%c1_389, %c16_390, %c0_391] : memref<2x40x96xf32, #tpu.memory_space<vmem>>, vector<1x8x96xf32>
    %1075 = vector.shape_cast %1074 : vector<1x8x96xf32> to vector<8x96xf32>
    %cst_392 = arith.constant dense<0.000000e+00> : vector<8x96xf32>
    %1076 = tpu.matmul %1041, %1001, %cst_392 {dimension_numbers = #tpu.dot_dimension_numbers<[1], [0], [0], [1], [0, 0, 1, 1], [], []>} : vector<8x32xf32>, vector<32x96xf32>, vector<8x96xf32> -> vector<8x96xf32>
    %cst_393 = arith.constant dense<0.000000e+00> : vector<8x96xf32>
    %1077 = tpu.matmul %1069, %1003, %cst_393 {dimension_numbers = #tpu.dot_dimension_numbers<[1], [0], [0], [1], [0, 0, 1, 1], [], []>} : vector<8x32xf32>, vector<32x96xf32>, vector<8x96xf32> -> vector<8x96xf32>
    %1078 = vector.extract_strided_slice %1073 {offsets = [0, 0], sizes = [8, 32], strides = [1, 1]} : vector<8x96xf32> to vector<8x32xf32>
    %1079 = vector.extract_strided_slice %1076 {offsets = [0, 0], sizes = [8, 32], strides = [1, 1]} : vector<8x96xf32> to vector<8x32xf32>
    %1080 = arith.addf %1078, %1079 : vector<8x32xf32>
    %1081 = arith.negf %1080 : vector<8x32xf32>
    %1082 = math.exp %1081 : vector<8x32xf32>
    %cst_394 = arith.constant 1.000000e+00 : f32
    %1083 = vector.broadcast %cst_394 : f32 to vector<8x32xf32>
    %1084 = arith.addf %1083, %1082 : vector<8x32xf32>
    %1085 = arith.divf %1083, %1084 : vector<8x32xf32>
    %1086 = vector.extract_strided_slice %1073 {offsets = [0, 32], sizes = [8, 32], strides = [1, 1]} : vector<8x96xf32> to vector<8x32xf32>
    %1087 = vector.extract_strided_slice %1076 {offsets = [0, 32], sizes = [8, 32], strides = [1, 1]} : vector<8x96xf32> to vector<8x32xf32>
    %1088 = arith.addf %1086, %1087 : vector<8x32xf32>
    %1089 = arith.negf %1088 : vector<8x32xf32>
    %1090 = math.exp %1089 : vector<8x32xf32>
    %cst_395 = arith.constant 1.000000e+00 : f32
    %1091 = vector.broadcast %cst_395 : f32 to vector<8x32xf32>
    %1092 = arith.addf %1091, %1090 : vector<8x32xf32>
    %1093 = arith.divf %1091, %1092 : vector<8x32xf32>
    %1094 = vector.extract_strided_slice %1073 {offsets = [0, 64], sizes = [8, 32], strides = [1, 1]} : vector<8x96xf32> to vector<8x32xf32>
    %1095 = vector.extract_strided_slice %1076 {offsets = [0, 64], sizes = [8, 32], strides = [1, 1]} : vector<8x96xf32> to vector<8x32xf32>
    %1096 = vector.broadcast %1005 : vector<1x32xf32> to vector<8x32xf32>
    %1097 = arith.addf %1095, %1096 : vector<8x32xf32>
    %1098 = arith.mulf %1085, %1097 : vector<8x32xf32>
    %1099 = arith.addf %1094, %1098 : vector<8x32xf32>
    %1100 = math.tanh %1099 : vector<8x32xf32>
    %cst_396 = arith.constant 1.000000e+00 : f32
    %1101 = vector.broadcast %cst_396 : f32 to vector<8x32xf32>
    %1102 = arith.subf %1101, %1093 : vector<8x32xf32>
    %1103 = arith.mulf %1102, %1100 : vector<8x32xf32>
    %1104 = arith.mulf %1093, %1041 : vector<8x32xf32>
    %1105 = arith.addf %1103, %1104 : vector<8x32xf32>
    %1106 = vector.extract_strided_slice %1075 {offsets = [0, 0], sizes = [8, 32], strides = [1, 1]} : vector<8x96xf32> to vector<8x32xf32>
    %1107 = vector.extract_strided_slice %1077 {offsets = [0, 0], sizes = [8, 32], strides = [1, 1]} : vector<8x96xf32> to vector<8x32xf32>
    %1108 = arith.addf %1106, %1107 : vector<8x32xf32>
    %1109 = arith.negf %1108 : vector<8x32xf32>
    %1110 = math.exp %1109 : vector<8x32xf32>
    %cst_397 = arith.constant 1.000000e+00 : f32
    %1111 = vector.broadcast %cst_397 : f32 to vector<8x32xf32>
    %1112 = arith.addf %1111, %1110 : vector<8x32xf32>
    %1113 = arith.divf %1111, %1112 : vector<8x32xf32>
    %1114 = vector.extract_strided_slice %1075 {offsets = [0, 32], sizes = [8, 32], strides = [1, 1]} : vector<8x96xf32> to vector<8x32xf32>
    %1115 = vector.extract_strided_slice %1077 {offsets = [0, 32], sizes = [8, 32], strides = [1, 1]} : vector<8x96xf32> to vector<8x32xf32>
    %1116 = arith.addf %1114, %1115 : vector<8x32xf32>
    %1117 = arith.negf %1116 : vector<8x32xf32>
    %1118 = math.exp %1117 : vector<8x32xf32>
    %cst_398 = arith.constant 1.000000e+00 : f32
    %1119 = vector.broadcast %cst_398 : f32 to vector<8x32xf32>
    %1120 = arith.addf %1119, %1118 : vector<8x32xf32>
    %1121 = arith.divf %1119, %1120 : vector<8x32xf32>
    %1122 = vector.extract_strided_slice %1075 {offsets = [0, 64], sizes = [8, 32], strides = [1, 1]} : vector<8x96xf32> to vector<8x32xf32>
    %1123 = vector.extract_strided_slice %1077 {offsets = [0, 64], sizes = [8, 32], strides = [1, 1]} : vector<8x96xf32> to vector<8x32xf32>
    %1124 = vector.broadcast %1007 : vector<1x32xf32> to vector<8x32xf32>
    %1125 = arith.addf %1123, %1124 : vector<8x32xf32>
    %1126 = arith.mulf %1113, %1125 : vector<8x32xf32>
    %1127 = arith.addf %1122, %1126 : vector<8x32xf32>
    %1128 = math.tanh %1127 : vector<8x32xf32>
    %cst_399 = arith.constant 1.000000e+00 : f32
    %1129 = vector.broadcast %cst_399 : f32 to vector<8x32xf32>
    %1130 = arith.subf %1129, %1121 : vector<8x32xf32>
    %1131 = arith.mulf %1130, %1128 : vector<8x32xf32>
    %1132 = arith.mulf %1121, %1069 : vector<8x32xf32>
    %1133 = arith.addf %1131, %1132 : vector<8x32xf32>
    %c8_400 = arith.constant 8 : index
    %c0_401 = arith.constant 0 : index
    %1134 = vector.load %arg20[%c8_400, %c0_401] : memref<32x64xf32, #tpu.memory_space<vmem>>, vector<8x32xf32>
    tpu.vector_store %arg20[%c8_400, %c0_401], %1105 {strides = array<i32>} : memref<32x64xf32, #tpu.memory_space<vmem>>, vector<8x32xf32>,
    %c16_402 = arith.constant 16 : index
    %c32_403 = arith.constant 32 : index
    %1135 = vector.load %arg20[%c16_402, %c32_403] : memref<32x64xf32, #tpu.memory_space<vmem>>, vector<8x32xf32>
    tpu.vector_store %arg20[%c16_402, %c32_403], %1133 {strides = array<i32>} : memref<32x64xf32, #tpu.memory_space<vmem>>, vector<8x32xf32>,
    %c0_404 = arith.constant 0 : index
    %c16_405 = arith.constant 16 : index
    %c0_406 = arith.constant 0 : index
    %1136 = vector.load %arg21[%c0_404, %c16_405, %c0_406] : memref<2x40x96xf32, #tpu.memory_space<vmem>>, vector<1x8x96xf32>
    %1137 = vector.shape_cast %1136 : vector<1x8x96xf32> to vector<8x96xf32>
    %c1_407 = arith.constant 1 : index
    %c8_408 = arith.constant 8 : index
    %c0_409 = arith.constant 0 : index
    %1138 = vector.load %arg21[%c1_407, %c8_408, %c0_409] : memref<2x40x96xf32, #tpu.memory_space<vmem>>, vector<1x8x96xf32>
    %1139 = vector.shape_cast %1138 : vector<1x8x96xf32> to vector<8x96xf32>
    %cst_410 = arith.constant dense<0.000000e+00> : vector<8x96xf32>
    %1140 = tpu.matmul %1105, %1001, %cst_410 {dimension_numbers = #tpu.dot_dimension_numbers<[1], [0], [0], [1], [0, 0, 1, 1], [], []>} : vector<8x32xf32>, vector<32x96xf32>, vector<8x96xf32> -> vector<8x96xf32>
    %cst_411 = arith.constant dense<0.000000e+00> : vector<8x96xf32>
    %1141 = tpu.matmul %1133, %1003, %cst_411 {dimension_numbers = #tpu.dot_dimension_numbers<[1], [0], [0], [1], [0, 0, 1, 1], [], []>} : vector<8x32xf32>, vector<32x96xf32>, vector<8x96xf32> -> vector<8x96xf32>
    %1142 = vector.extract_strided_slice %1137 {offsets = [0, 0], sizes = [8, 32], strides = [1, 1]} : vector<8x96xf32> to vector<8x32xf32>
    %1143 = vector.extract_strided_slice %1140 {offsets = [0, 0], sizes = [8, 32], strides = [1, 1]} : vector<8x96xf32> to vector<8x32xf32>
    %1144 = arith.addf %1142, %1143 : vector<8x32xf32>
    %1145 = arith.negf %1144 : vector<8x32xf32>
    %1146 = math.exp %1145 : vector<8x32xf32>
    %cst_412 = arith.constant 1.000000e+00 : f32
    %1147 = vector.broadcast %cst_412 : f32 to vector<8x32xf32>
    %1148 = arith.addf %1147, %1146 : vector<8x32xf32>
    %1149 = arith.divf %1147, %1148 : vector<8x32xf32>
    %1150 = vector.extract_strided_slice %1137 {offsets = [0, 32], sizes = [8, 32], strides = [1, 1]} : vector<8x96xf32> to vector<8x32xf32>
    %1151 = vector.extract_strided_slice %1140 {offsets = [0, 32], sizes = [8, 32], strides = [1, 1]} : vector<8x96xf32> to vector<8x32xf32>
    %1152 = arith.addf %1150, %1151 : vector<8x32xf32>
    %1153 = arith.negf %1152 : vector<8x32xf32>
    %1154 = math.exp %1153 : vector<8x32xf32>
    %cst_413 = arith.constant 1.000000e+00 : f32
    %1155 = vector.broadcast %cst_413 : f32 to vector<8x32xf32>
    %1156 = arith.addf %1155, %1154 : vector<8x32xf32>
    %1157 = arith.divf %1155, %1156 : vector<8x32xf32>
    %1158 = vector.extract_strided_slice %1137 {offsets = [0, 64], sizes = [8, 32], strides = [1, 1]} : vector<8x96xf32> to vector<8x32xf32>
    %1159 = vector.extract_strided_slice %1140 {offsets = [0, 64], sizes = [8, 32], strides = [1, 1]} : vector<8x96xf32> to vector<8x32xf32>
    %1160 = vector.broadcast %1005 : vector<1x32xf32> to vector<8x32xf32>
    %1161 = arith.addf %1159, %1160 : vector<8x32xf32>
    %1162 = arith.mulf %1149, %1161 : vector<8x32xf32>
    %1163 = arith.addf %1158, %1162 : vector<8x32xf32>
    %1164 = math.tanh %1163 : vector<8x32xf32>
    %cst_414 = arith.constant 1.000000e+00 : f32
    %1165 = vector.broadcast %cst_414 : f32 to vector<8x32xf32>
    %1166 = arith.subf %1165, %1157 : vector<8x32xf32>
    %1167 = arith.mulf %1166, %1164 : vector<8x32xf32>
    %1168 = arith.mulf %1157, %1105 : vector<8x32xf32>
    %1169 = arith.addf %1167, %1168 : vector<8x32xf32>
    %1170 = vector.extract_strided_slice %1139 {offsets = [0, 0], sizes = [8, 32], strides = [1, 1]} : vector<8x96xf32> to vector<8x32xf32>
    %1171 = vector.extract_strided_slice %1141 {offsets = [0, 0], sizes = [8, 32], strides = [1, 1]} : vector<8x96xf32> to vector<8x32xf32>
    %1172 = arith.addf %1170, %1171 : vector<8x32xf32>
    %1173 = arith.negf %1172 : vector<8x32xf32>
    %1174 = math.exp %1173 : vector<8x32xf32>
    %cst_415 = arith.constant 1.000000e+00 : f32
    %1175 = vector.broadcast %cst_415 : f32 to vector<8x32xf32>
    %1176 = arith.addf %1175, %1174 : vector<8x32xf32>
    %1177 = arith.divf %1175, %1176 : vector<8x32xf32>
    %1178 = vector.extract_strided_slice %1139 {offsets = [0, 32], sizes = [8, 32], strides = [1, 1]} : vector<8x96xf32> to vector<8x32xf32>
    %1179 = vector.extract_strided_slice %1141 {offsets = [0, 32], sizes = [8, 32], strides = [1, 1]} : vector<8x96xf32> to vector<8x32xf32>
    %1180 = arith.addf %1178, %1179 : vector<8x32xf32>
    %1181 = arith.negf %1180 : vector<8x32xf32>
    %1182 = math.exp %1181 : vector<8x32xf32>
    %cst_416 = arith.constant 1.000000e+00 : f32
    %1183 = vector.broadcast %cst_416 : f32 to vector<8x32xf32>
    %1184 = arith.addf %1183, %1182 : vector<8x32xf32>
    %1185 = arith.divf %1183, %1184 : vector<8x32xf32>
    %1186 = vector.extract_strided_slice %1139 {offsets = [0, 64], sizes = [8, 32], strides = [1, 1]} : vector<8x96xf32> to vector<8x32xf32>
    %1187 = vector.extract_strided_slice %1141 {offsets = [0, 64], sizes = [8, 32], strides = [1, 1]} : vector<8x96xf32> to vector<8x32xf32>
    %1188 = vector.broadcast %1007 : vector<1x32xf32> to vector<8x32xf32>
    %1189 = arith.addf %1187, %1188 : vector<8x32xf32>
    %1190 = arith.mulf %1177, %1189 : vector<8x32xf32>
    %1191 = arith.addf %1186, %1190 : vector<8x32xf32>
    %1192 = math.tanh %1191 : vector<8x32xf32>
    %cst_417 = arith.constant 1.000000e+00 : f32
    %1193 = vector.broadcast %cst_417 : f32 to vector<8x32xf32>
    %1194 = arith.subf %1193, %1185 : vector<8x32xf32>
    %1195 = arith.mulf %1194, %1192 : vector<8x32xf32>
    %1196 = arith.mulf %1185, %1133 : vector<8x32xf32>
    %1197 = arith.addf %1195, %1196 : vector<8x32xf32>
    %c16_418 = arith.constant 16 : index
    %c0_419 = arith.constant 0 : index
    %1198 = vector.load %arg20[%c16_418, %c0_419] : memref<32x64xf32, #tpu.memory_space<vmem>>, vector<8x32xf32>
    tpu.vector_store %arg20[%c16_418, %c0_419], %1169 {strides = array<i32>} : memref<32x64xf32, #tpu.memory_space<vmem>>, vector<8x32xf32>,
    %c8_420 = arith.constant 8 : index
    %c32_421 = arith.constant 32 : index
    %1199 = vector.load %arg20[%c8_420, %c32_421] : memref<32x64xf32, #tpu.memory_space<vmem>>, vector<8x32xf32>
    tpu.vector_store %arg20[%c8_420, %c32_421], %1197 {strides = array<i32>} : memref<32x64xf32, #tpu.memory_space<vmem>>, vector<8x32xf32>,
    %c0_422 = arith.constant 0 : index
    %c24_423 = arith.constant 24 : index
    %c0_424 = arith.constant 0 : index
    %1200 = vector.load %arg21[%c0_422, %c24_423, %c0_424] : memref<2x40x96xf32, #tpu.memory_space<vmem>>, vector<1x8x96xf32>
    %1201 = vector.shape_cast %1200 : vector<1x8x96xf32> to vector<8x96xf32>
    %c1_425 = arith.constant 1 : index
    %c0_426 = arith.constant 0 : index
    %c0_427 = arith.constant 0 : index
    %1202 = vector.load %arg21[%c1_425, %c0_426, %c0_427] : memref<2x40x96xf32, #tpu.memory_space<vmem>>, vector<1x8x96xf32>
    %1203 = vector.shape_cast %1202 : vector<1x8x96xf32> to vector<8x96xf32>
    %cst_428 = arith.constant dense<0.000000e+00> : vector<8x96xf32>
    %1204 = tpu.matmul %1169, %1001, %cst_428 {dimension_numbers = #tpu.dot_dimension_numbers<[1], [0], [0], [1], [0, 0, 1, 1], [], []>} : vector<8x32xf32>, vector<32x96xf32>, vector<8x96xf32> -> vector<8x96xf32>
    %cst_429 = arith.constant dense<0.000000e+00> : vector<8x96xf32>
    %1205 = tpu.matmul %1197, %1003, %cst_429 {dimension_numbers = #tpu.dot_dimension_numbers<[1], [0], [0], [1], [0, 0, 1, 1], [], []>} : vector<8x32xf32>, vector<32x96xf32>, vector<8x96xf32> -> vector<8x96xf32>
    %1206 = vector.extract_strided_slice %1201 {offsets = [0, 0], sizes = [8, 32], strides = [1, 1]} : vector<8x96xf32> to vector<8x32xf32>
    %1207 = vector.extract_strided_slice %1204 {offsets = [0, 0], sizes = [8, 32], strides = [1, 1]} : vector<8x96xf32> to vector<8x32xf32>
    %1208 = arith.addf %1206, %1207 : vector<8x32xf32>
    %1209 = arith.negf %1208 : vector<8x32xf32>
    %1210 = math.exp %1209 : vector<8x32xf32>
    %cst_430 = arith.constant 1.000000e+00 : f32
    %1211 = vector.broadcast %cst_430 : f32 to vector<8x32xf32>
    %1212 = arith.addf %1211, %1210 : vector<8x32xf32>
    %1213 = arith.divf %1211, %1212 : vector<8x32xf32>
    %1214 = vector.extract_strided_slice %1201 {offsets = [0, 32], sizes = [8, 32], strides = [1, 1]} : vector<8x96xf32> to vector<8x32xf32>
    %1215 = vector.extract_strided_slice %1204 {offsets = [0, 32], sizes = [8, 32], strides = [1, 1]} : vector<8x96xf32> to vector<8x32xf32>
    %1216 = arith.addf %1214, %1215 : vector<8x32xf32>
    %1217 = arith.negf %1216 : vector<8x32xf32>
    %1218 = math.exp %1217 : vector<8x32xf32>
    %cst_431 = arith.constant 1.000000e+00 : f32
    %1219 = vector.broadcast %cst_431 : f32 to vector<8x32xf32>
    %1220 = arith.addf %1219, %1218 : vector<8x32xf32>
    %1221 = arith.divf %1219, %1220 : vector<8x32xf32>
    %1222 = vector.extract_strided_slice %1201 {offsets = [0, 64], sizes = [8, 32], strides = [1, 1]} : vector<8x96xf32> to vector<8x32xf32>
    %1223 = vector.extract_strided_slice %1204 {offsets = [0, 64], sizes = [8, 32], strides = [1, 1]} : vector<8x96xf32> to vector<8x32xf32>
    %1224 = vector.broadcast %1005 : vector<1x32xf32> to vector<8x32xf32>
    %1225 = arith.addf %1223, %1224 : vector<8x32xf32>
    %1226 = arith.mulf %1213, %1225 : vector<8x32xf32>
    %1227 = arith.addf %1222, %1226 : vector<8x32xf32>
    %1228 = math.tanh %1227 : vector<8x32xf32>
    %cst_432 = arith.constant 1.000000e+00 : f32
    %1229 = vector.broadcast %cst_432 : f32 to vector<8x32xf32>
    %1230 = arith.subf %1229, %1221 : vector<8x32xf32>
    %1231 = arith.mulf %1230, %1228 : vector<8x32xf32>
    %1232 = arith.mulf %1221, %1169 : vector<8x32xf32>
    %1233 = arith.addf %1231, %1232 : vector<8x32xf32>
    %1234 = vector.extract_strided_slice %1203 {offsets = [0, 0], sizes = [8, 32], strides = [1, 1]} : vector<8x96xf32> to vector<8x32xf32>
    %1235 = vector.extract_strided_slice %1205 {offsets = [0, 0], sizes = [8, 32], strides = [1, 1]} : vector<8x96xf32> to vector<8x32xf32>
    %1236 = arith.addf %1234, %1235 : vector<8x32xf32>
    %1237 = arith.negf %1236 : vector<8x32xf32>
    %1238 = math.exp %1237 : vector<8x32xf32>
    %cst_433 = arith.constant 1.000000e+00 : f32
    %1239 = vector.broadcast %cst_433 : f32 to vector<8x32xf32>
    %1240 = arith.addf %1239, %1238 : vector<8x32xf32>
    %1241 = arith.divf %1239, %1240 : vector<8x32xf32>
    %1242 = vector.extract_strided_slice %1203 {offsets = [0, 32], sizes = [8, 32], strides = [1, 1]} : vector<8x96xf32> to vector<8x32xf32>
    %1243 = vector.extract_strided_slice %1205 {offsets = [0, 32], sizes = [8, 32], strides = [1, 1]} : vector<8x96xf32> to vector<8x32xf32>
    %1244 = arith.addf %1242, %1243 : vector<8x32xf32>
    %1245 = arith.negf %1244 : vector<8x32xf32>
    %1246 = math.exp %1245 : vector<8x32xf32>
    %cst_434 = arith.constant 1.000000e+00 : f32
    %1247 = vector.broadcast %cst_434 : f32 to vector<8x32xf32>
    %1248 = arith.addf %1247, %1246 : vector<8x32xf32>
    %1249 = arith.divf %1247, %1248 : vector<8x32xf32>
    %1250 = vector.extract_strided_slice %1203 {offsets = [0, 64], sizes = [8, 32], strides = [1, 1]} : vector<8x96xf32> to vector<8x32xf32>
    %1251 = vector.extract_strided_slice %1205 {offsets = [0, 64], sizes = [8, 32], strides = [1, 1]} : vector<8x96xf32> to vector<8x32xf32>
    %1252 = vector.broadcast %1007 : vector<1x32xf32> to vector<8x32xf32>
    %1253 = arith.addf %1251, %1252 : vector<8x32xf32>
    %1254 = arith.mulf %1241, %1253 : vector<8x32xf32>
    %1255 = arith.addf %1250, %1254 : vector<8x32xf32>
    %1256 = math.tanh %1255 : vector<8x32xf32>
    %cst_435 = arith.constant 1.000000e+00 : f32
    %1257 = vector.broadcast %cst_435 : f32 to vector<8x32xf32>
    %1258 = arith.subf %1257, %1249 : vector<8x32xf32>
    %1259 = arith.mulf %1258, %1256 : vector<8x32xf32>
    %1260 = arith.mulf %1249, %1197 : vector<8x32xf32>
    %1261 = arith.addf %1259, %1260 : vector<8x32xf32>
    %c24_436 = arith.constant 24 : index
    %c0_437 = arith.constant 0 : index
    %1262 = vector.load %arg20[%c24_436, %c0_437] : memref<32x64xf32, #tpu.memory_space<vmem>>, vector<8x32xf32>
    tpu.vector_store %arg20[%c24_436, %c0_437], %1233 {strides = array<i32>} : memref<32x64xf32, #tpu.memory_space<vmem>>, vector<8x32xf32>,
    %c0_438 = arith.constant 0 : index
    %c32_439 = arith.constant 32 : index
    %1263 = vector.load %arg20[%c0_438, %c32_439] : memref<32x64xf32, #tpu.memory_space<vmem>>, vector<8x32xf32>
    tpu.vector_store %arg20[%c0_438, %c32_439], %1261 {strides = array<i32>} : memref<32x64xf32, #tpu.memory_space<vmem>>, vector<8x32xf32>,
    return
  }
  func.func @transform_0(%arg0: i32) -> (i32, i32) {
    %c0_i32 = arith.constant 0 : i32
    %c0_i32_0 = arith.constant 0 : i32
    %c0_i32_1 = arith.constant 0 : i32
    return %c0_i32, %c0_i32_0 : i32, i32
  }
  func.func @transform_1(%arg0: i32) -> (i32, i32) {
    %c0_i32 = arith.constant 0 : i32
    %c0_i32_0 = arith.constant 0 : i32
    %c0_i32_1 = arith.constant 0 : i32
    return %c0_i32, %c0_i32_0 : i32, i32
  }
  func.func @transform_2(%arg0: i32) -> (i32, i32) {
    %c0_i32 = arith.constant 0 : i32
    %c0_i32_0 = arith.constant 0 : i32
    %c0_i32_1 = arith.constant 0 : i32
    return %c0_i32, %c0_i32_0 : i32, i32
  }
  func.func @transform_3(%arg0: i32) -> (i32, i32, i32) {
    %c0_i32 = arith.constant 0 : i32
    %c0_i32_0 = arith.constant 0 : i32
    %c0_i32_1 = arith.constant 0 : i32
    %c0_i32_2 = arith.constant 0 : i32
    return %c0_i32, %c0_i32_0, %c0_i32_1 : i32, i32, i32
  }
  func.func @transform_4(%arg0: i32) -> (i32, i32, i32) {
    %c0_i32 = arith.constant 0 : i32
    %c0_i32_0 = arith.constant 0 : i32
    %c0_i32_1 = arith.constant 0 : i32
    %c0_i32_2 = arith.constant 0 : i32
    return %c0_i32, %c0_i32_0, %c0_i32_1 : i32, i32, i32
  }
  func.func @transform_5(%arg0: i32) -> (i32, i32, i32) {
    %c0_i32 = arith.constant 0 : i32
    %c0_i32_0 = arith.constant 0 : i32
    %c0_i32_1 = arith.constant 0 : i32
    %c0_i32_2 = arith.constant 0 : i32
    return %c0_i32, %c0_i32_0, %c0_i32_1 : i32, i32, i32
  }
  func.func @transform_6(%arg0: i32) -> (i32, i32, i32) {
    %c0_i32 = arith.constant 0 : i32
    %c0_i32_0 = arith.constant 0 : i32
    %c0_i32_1 = arith.constant 0 : i32
    %c0_i32_2 = arith.constant 0 : i32
    return %c0_i32, %c0_i32_0, %c0_i32_1 : i32, i32, i32
  }
  func.func @transform_7(%arg0: i32) -> (i32, i32, i32) {
    %c0_i32 = arith.constant 0 : i32
    %c0_i32_0 = arith.constant 0 : i32
    %c0_i32_1 = arith.constant 0 : i32
    %c0_i32_2 = arith.constant 0 : i32
    return %c0_i32, %c0_i32_0, %c0_i32_1 : i32, i32, i32
  }
  func.func @transform_8(%arg0: i32) -> (i32, i32, i32) {
    %c0_i32 = arith.constant 0 : i32
    %c0_i32_0 = arith.constant 0 : i32
    %c0_i32_1 = arith.constant 0 : i32
    %c0_i32_2 = arith.constant 0 : i32
    return %c0_i32, %c0_i32_0, %c0_i32_1 : i32, i32, i32
  }
  func.func @transform_9(%arg0: i32) -> (i32, i32, i32) {
    %c0_i32 = arith.constant 0 : i32
    %c0_i32_0 = arith.constant 0 : i32
    %c0_i32_1 = arith.constant 0 : i32
    %c0_i32_2 = arith.constant 0 : i32
    return %c0_i32, %c0_i32_0, %c0_i32_1 : i32, i32, i32
  }
  func.func @transform_10(%arg0: i32) -> (i32, i32, i32) {
    %c0_i32 = arith.constant 0 : i32
    %c0_i32_0 = arith.constant 0 : i32
    %c0_i32_1 = arith.constant 0 : i32
    %c0_i32_2 = arith.constant 0 : i32
    return %c0_i32, %c0_i32_0, %c0_i32_1 : i32, i32, i32
  }
  func.func @transform_11(%arg0: i32) -> (i32, i32, i32) {
    %c0_i32 = arith.constant 0 : i32
    %c0_i32_0 = arith.constant 0 : i32
    %c0_i32_1 = arith.constant 0 : i32
    %c0_i32_2 = arith.constant 0 : i32
    return %c0_i32, %c0_i32_0, %c0_i32_1 : i32, i32, i32
  }
  func.func @transform_12(%arg0: i32) -> (i32, i32, i32) {
    %c0_i32 = arith.constant 0 : i32
    %c0_i32_0 = arith.constant 0 : i32
    %c0_i32_1 = arith.constant 0 : i32
    %c0_i32_2 = arith.constant 0 : i32
    return %c0_i32, %c0_i32_0, %c0_i32_1 : i32, i32, i32
  }
  func.func @transform_13(%arg0: i32) -> (i32, i32, i32) {
    %c0_i32 = arith.constant 0 : i32
    %c0_i32_0 = arith.constant 0 : i32
    %c0_i32_1 = arith.constant 0 : i32
    %c0_i32_2 = arith.constant 0 : i32
    return %c0_i32, %c0_i32_0, %c0_i32_1 : i32, i32, i32
  }
  func.func @transform_14(%arg0: i32) -> (i32, i32, i32) {
    %c0_i32 = arith.constant 0 : i32
    %c0_i32_0 = arith.constant 0 : i32
    %c0_i32_1 = arith.constant 0 : i32
    %c0_i32_2 = arith.constant 0 : i32
    return %c0_i32, %c0_i32_0, %c0_i32_1 : i32, i32, i32
  }
  func.func @transform_15(%arg0: i32) -> (i32, i32, i32) {
    %c0_i32 = arith.constant 0 : i32
    %c0_i32_0 = arith.constant 0 : i32
    %c0_i32_1 = arith.constant 0 : i32
    %c0_i32_2 = arith.constant 0 : i32
    return %c0_i32, %c0_i32_0, %c0_i32_1 : i32, i32, i32
  }
  func.func @transform_16(%arg0: i32) -> (i32, i32, i32) {
    %c0_i32 = arith.constant 0 : i32
    %c0_i32_0 = arith.constant 0 : i32
    %c0_i32_1 = arith.constant 0 : i32
    %c0_i32_2 = arith.constant 0 : i32
    return %c0_i32, %c0_i32_0, %c0_i32_1 : i32, i32, i32
  }
  func.func @transform_17(%arg0: i32) -> (i32, i32, i32) {
    %c0_i32 = arith.constant 0 : i32
    %c0_i32_0 = arith.constant 0 : i32
    %c0_i32_1 = arith.constant 0 : i32
    %c0_i32_2 = arith.constant 0 : i32
    return %c0_i32, %c0_i32_0, %c0_i32_1 : i32, i32, i32
  }
  func.func @transform_18(%arg0: i32) -> (i32, i32, i32) {
    %c0_i32 = arith.constant 0 : i32
    %c0_i32_0 = arith.constant 0 : i32
    %c0_i32_1 = arith.constant 0 : i32
    %c0_i32_2 = arith.constant 0 : i32
    return %c0_i32, %c0_i32_0, %c0_i32_1 : i32, i32, i32
  }
  func.func @transform_19(%arg0: i32) -> (i32, i32) {
    %c0_i32 = arith.constant 0 : i32
    %c0_i32_0 = arith.constant 0 : i32
    %c0_i32_1 = arith.constant 0 : i32
    return %c0_i32, %c0_i32_0 : i32, i32
  }
}

</mosaic_0001>

<llo_original>
// kernel: graph_seq2seq_forward.1
$region0: #{graph_seq2seq_forward.1}
  #allocation0 [shape = 'u32[]', space=smem, size = 0x4, offset = 0x4, fixed_abs, tag = 'smem constant byte address 0x4 - core index']
  #allocation1 [shape = 'u32[72,128]{1,0:T(1,128)}', space=vmem, size = 0x9000, scoped, tag = 'internal scratch']
  #allocation2 [shape = 'f32[2,40,96]{2,1,0:T(8,128)}', space=vmem, size = 0xa000, scoped, tag = 'scratch operand']
  #allocation3 [shape = 'f32[40,64]{1,0:T(8,128)}', space=vmem, size = 0x5000, scoped, tag = 'scratch operand']
  %s0 = inlined_call_operand.vmem [shape: f32[40,24], index: 0, kind: input, shape index: {}]
  %s1 = inlined_call_operand.vmem [shape: f32[8,8], index: 1, kind: input, shape index: {}]
  %s2 = inlined_call_operand.vmem [shape: f32[32,24], index: 2, kind: input, shape index: {}]
  %s3 = inlined_call_operand.vmem [shape: f32[2,24,96], index: 3, kind: input, shape index: {}]
  %s4 = inlined_call_operand.vmem [shape: f32[2,1,96], index: 4, kind: input, shape index: {}]
  %s5 = inlined_call_operand.vmem [shape: f32[2,32,96], index: 5, kind: input, shape index: {}]
  %s6 = inlined_call_operand.vmem [shape: f32[2,1,32], index: 6, kind: input, shape index: {}]
  %s7 = inlined_call_operand.vmem [shape: f32[2,64,96], index: 7, kind: input, shape index: {}]
  %s8 = inlined_call_operand.vmem [shape: f32[2,1,96], index: 8, kind: input, shape index: {}]
  %s9 = inlined_call_operand.vmem [shape: f32[2,32,96], index: 9, kind: input, shape index: {}]
  %s10 = inlined_call_operand.vmem [shape: f32[2,1,32], index: 10, kind: input, shape index: {}]
  %s11 = inlined_call_operand.vmem [shape: f32[2,24,96], index: 11, kind: input, shape index: {}]
  %s12 = inlined_call_operand.vmem [shape: f32[2,1,96], index: 12, kind: input, shape index: {}]
  %s13 = inlined_call_operand.vmem [shape: f32[2,32,96], index: 13, kind: input, shape index: {}]
  %s14 = inlined_call_operand.vmem [shape: f32[2,1,32], index: 14, kind: input, shape index: {}]
  %s15 = inlined_call_operand.vmem [shape: f32[2,64,96], index: 15, kind: input, shape index: {}]
  %s16 = inlined_call_operand.vmem [shape: f32[2,1,96], index: 16, kind: input, shape index: {}]
  %s17 = inlined_call_operand.vmem [shape: f32[2,32,96], index: 17, kind: input, shape index: {}]
  %s18 = inlined_call_operand.vmem [shape: f32[2,1,32], index: 18, kind: input, shape index: {}]
  %s19 = inlined_call_operand.vmem [shape: f32[32,64], index: 19, kind: output, shape index: {}]
  %s20 = sld [smem:[#allocation0]]
  $region86: #{graph_seq2seq_forward.1} parent=0
    _
  %s22 = ssub.s32 1, %s20
  %s23 = scalar_select 0, %s22, %s20
  // Predicated region
  $region2: #{graph_seq2seq_forward.1} parent=0 // pred_check
    _
  $region3: #{graph_seq2seq_forward.1} parent=0 // pred_check_branch
    %25 = sbr.rel (0) target = $region5
  $region4: #{graph_seq2seq_forward.1} parent=0 // pred_region
    _
  $region5: #{graph_seq2seq_forward.1} parent=0 // pred_fallthru
    _
  // Predicated region
  $region6: #{graph_seq2seq_forward.1} parent=0 // pred_check
    _
  $region7: #{graph_seq2seq_forward.1} parent=0 // pred_check_branch
    %27 = sbr.rel (0) target = $region9
  $region8: #{graph_seq2seq_forward.1} parent=0 // pred_region
    _
  $region9: #{graph_seq2seq_forward.1} parent=0 // pred_fallthru
    _
  // Predicated region
  $region10: #{graph_seq2seq_forward.1} parent=0 // pred_check
    _
  $region11: #{graph_seq2seq_forward.1} parent=0 // pred_check_branch
    %29 = sbr.rel (0) target = $region13
  $region12: #{graph_seq2seq_forward.1} parent=0 // pred_region
    _
  $region13: #{graph_seq2seq_forward.1} parent=0 // pred_fallthru
    _
  // Predicated region
  $region14: #{graph_seq2seq_forward.1} parent=0 // pred_check
    _
  $region15: #{graph_seq2seq_forward.1} parent=0 // pred_check_branch
    %31 = sbr.rel (0) target = $region17
  $region16: #{graph_seq2seq_forward.1} parent=0 // pred_region
    _
  $region17: #{graph_seq2seq_forward.1} parent=0 // pred_fallthru
    _
  // Predicated region
  $region18: #{graph_seq2seq_forward.1} parent=0 // pred_check
    _
  $region19: #{graph_seq2seq_forward.1} parent=0 // pred_check_branch
    %33 = sbr.rel (0) target = $region21
  $region20: #{graph_seq2seq_forward.1} parent=0 // pred_region
    _
  $region21: #{graph_seq2seq_forward.1} parent=0 // pred_fallthru
    _
  // Predicated region
  $region22: #{graph_seq2seq_forward.1} parent=0 // pred_check
    _
  $region23: #{graph_seq2seq_forward.1} parent=0 // pred_check_branch
    %35 = sbr.rel (0) target = $region25
  $region24: #{graph_seq2seq_forward.1} parent=0 // pred_region
    _
  $region25: #{graph_seq2seq_forward.1} parent=0 // pred_fallthru
    _
  // Predicated region
  $region26: #{graph_seq2seq_forward.1} parent=0 // pred_check
    _
  $region27: #{graph_seq2seq_forward.1} parent=0 // pred_check_branch
    %37 = sbr.rel (0) target = $region29
  $region28: #{graph_seq2seq_forward.1} parent=0 // pred_region
    _
  $region29: #{graph_seq2seq_forward.1} parent=0 // pred_fallthru
    _
  // Predicated region
  $region30: #{graph_seq2seq_forward.1} parent=0 // pred_check
    _
  $region31: #{graph_seq2seq_forward.1} parent=0 // pred_check_branch
    %39 = sbr.rel (0) target = $region33
  $region32: #{graph_seq2seq_forward.1} parent=0 // pred_region
    _
  $region33: #{graph_seq2seq_forward.1} parent=0 // pred_fallthru
    _
  // Predicated region
  $region34: #{graph_seq2seq_forward.1} parent=0 // pred_check
    _
  $region35: #{graph_seq2seq_forward.1} parent=0 // pred_check_branch
    %41 = sbr.rel (0) target = $region37
  $region36: #{graph_seq2seq_forward.1} parent=0 // pred_region
    _
  $region37: #{graph_seq2seq_forward.1} parent=0 // pred_fallthru
    _
  // Predicated region
  $region38: #{graph_seq2seq_forward.1} parent=0 // pred_check
    _
  $region39: #{graph_seq2seq_forward.1} parent=0 // pred_check_branch
    %43 = sbr.rel (0) target = $region41
  $region40: #{graph_seq2seq_forward.1} parent=0 // pred_region
    _
  $region41: #{graph_seq2seq_forward.1} parent=0 // pred_fallthru
    _
  // Predicated region
  $region42: #{graph_seq2seq_forward.1} parent=0 // pred_check
    _
  $region43: #{graph_seq2seq_forward.1} parent=0 // pred_check_branch
    %45 = sbr.rel (0) target = $region45
  $region44: #{graph_seq2seq_forward.1} parent=0 // pred_region
    _
  $region45: #{graph_seq2seq_forward.1} parent=0 // pred_fallthru
    _
  // Predicated region
  $region46: #{graph_seq2seq_forward.1} parent=0 // pred_check
    _
  $region47: #{graph_seq2seq_forward.1} parent=0 // pred_check_branch
    %47 = sbr.rel (0) target = $region49
  $region48: #{graph_seq2seq_forward.1} parent=0 // pred_region
    _
  $region49: #{graph_seq2seq_forward.1} parent=0 // pred_fallthru
    _
  // Predicated region
  $region50: #{graph_seq2seq_forward.1} parent=0 // pred_check
    _
  $region51: #{graph_seq2seq_forward.1} parent=0 // pred_check_branch
    %49 = sbr.rel (0) target = $region53
  $region52: #{graph_seq2seq_forward.1} parent=0 // pred_region
    _
  $region53: #{graph_seq2seq_forward.1} parent=0 // pred_fallthru
    _
  // Predicated region
  $region54: #{graph_seq2seq_forward.1} parent=0 // pred_check
    _
  $region55: #{graph_seq2seq_forward.1} parent=0 // pred_check_branch
    %51 = sbr.rel (0) target = $region57
  $region56: #{graph_seq2seq_forward.1} parent=0 // pred_region
    _
  $region57: #{graph_seq2seq_forward.1} parent=0 // pred_fallthru
    _
  // Predicated region
  $region58: #{graph_seq2seq_forward.1} parent=0 // pred_check
    _
  $region59: #{graph_seq2seq_forward.1} parent=0 // pred_check_branch
    %53 = sbr.rel (0) target = $region61
  $region60: #{graph_seq2seq_forward.1} parent=0 // pred_region
    _
  $region61: #{graph_seq2seq_forward.1} parent=0 // pred_fallthru
    _
  // Predicated region
  $region62: #{graph_seq2seq_forward.1} parent=0 // pred_check
    _
  $region63: #{graph_seq2seq_forward.1} parent=0 // pred_check_branch
    %55 = sbr.rel (0) target = $region65
  $region64: #{graph_seq2seq_forward.1} parent=0 // pred_region
    _
  $region65: #{graph_seq2seq_forward.1} parent=0 // pred_fallthru
    _
  // Predicated region
  $region66: #{graph_seq2seq_forward.1} parent=0 // pred_check
    _
  $region67: #{graph_seq2seq_forward.1} parent=0 // pred_check_branch
    %57 = sbr.rel (0) target = $region69
  $region68: #{graph_seq2seq_forward.1} parent=0 // pred_region
    _
  $region69: #{graph_seq2seq_forward.1} parent=0 // pred_fallthru
    _
  // Predicated region
  $region70: #{graph_seq2seq_forward.1} parent=0 // pred_check
    _
  $region71: #{graph_seq2seq_forward.1} parent=0 // pred_check_branch
    %59 = sbr.rel (0) target = $region73
  $region72: #{graph_seq2seq_forward.1} parent=0 // pred_region
    _
  $region73: #{graph_seq2seq_forward.1} parent=0 // pred_fallthru
    _
  // Predicated region
  $region74: #{graph_seq2seq_forward.1} parent=0 // pred_check
    _
  $region75: #{graph_seq2seq_forward.1} parent=0 // pred_check_branch
    %61 = sbr.rel (0) target = $region77
  $region76: #{graph_seq2seq_forward.1} parent=0 // pred_region
    _
  $region77: #{graph_seq2seq_forward.1} parent=0 // pred_fallthru
    _
  %v62 = vld [vmem:[%s1] sm:$0xff]
  %v63 = vld [vmem:[%s0] sm:$0xff]
  %v64 = vld [vmem:[%s0 + $0x8] sm:$0xff]
  %v65 = vld [vmem:[%s0 + $0x10] sm:$0xff]
  %v66 = vld [vmem:[%s0 + $0x18] sm:$0xff]
  %v67 = vld [vmem:[%s0 + $0x20] sm:$0xff]
  %v68 = vld [vmem:[%s3] sm:$0xff]
  %v69 = vld [vmem:[%s3 + $0x8] sm:$0xff]
  %v70 = vld [vmem:[%s3 + $0x10] sm:$0xff]
  %v71 = vld [vmem:[%s4] sm:$0x1]
  %v73 = vperm.slane %v71, 0
  %vm75 = vcmask 195584
  %v77 = vsel %vm75, %v63, 0
  %v80 = vsel %vm75, %v64, 0
  %v83 = vsel %vm75, %v65, 0
  %v86 = vsel %vm75, %v66, 0
  %v89 = vsel %vm75, %v67, 0
  %91 = vmatpush.msra.mxu0 0.0
  %92 = vmatpush.msra.mxu0 0.0
  %93 = vmatpush.msra.mxu0 0.0
  %94 = vmatpush.msra.mxu0 0.0
  %95 = vmatpush.msra.mxu0 0.0
  %96 = vmatpush.msra.mxu0 0.0
  %97 = vmatpush.msra.mxu0 0.0
  %98 = vmatpush.msra.mxu0 0.0
  %99 = vmatpush.msra.mxu0 0.0
  %100 = vmatpush.msra.mxu0 0.0
  %101 = vmatpush.msra.mxu0 0.0
  %102 = vmatpush.msra.mxu0 0.0
  %103 = vmatpush.msra.mxu0 0.0
  %104 = vmatpush.msra.mxu0 %v70
  %105 = vmatpush.msra.mxu0 %v69
  %106 = vmatpush.msra.mxu0 %v68
  %107 = vmatmul.f32.gmra.mxu0 %v77
  %v108 = vpop.f32.mrf.mxu0
  %v109 = vadd.f32 %v73, %v108
  %110 = vmatmul.f32.gmra.mxu0 %v80
  %v111 = vpop.f32.mrf.mxu0
  %v112 = vadd.f32 %v73, %v111
  %113 = vmatmul.f32.gmra.mxu0 %v83
  %v114 = vpop.f32.mrf.mxu0
  %v115 = vadd.f32 %v73, %v114
  %116 = vmatmul.f32.gmra.mxu0 %v86
  %v117 = vpop.f32.mrf.mxu0
  %v118 = vadd.f32 %v73, %v117
  %119 = vmatmul.f32.gmra.mxu0 %v89
  %v120 = vpop.f32.mrf.mxu0
  %v121 = vadd.f32 %v73, %v120
  %122 = vdwg.mxu0
  %vm123 = vcmask 785408
  %124 = vst.msk [vmem:[#allocation2] sm:$0xff] %vm123, %v109
  %125 = vst.msk [vmem:[#allocation2 + $0x8] sm:$0xff] %vm123, %v112
  %126 = vst.msk [vmem:[#allocation2 + $0x10] sm:$0xff] %vm123, %v115
  %127 = vst.msk [vmem:[#allocation2 + $0x18] sm:$0xff] %vm123, %v118
  %128 = vst.msk [vmem:[#allocation2 + $0x20] sm:$0xff] %vm123, %v121
  %s129 = scalar_lea.vmem %s3, 24
  %v130 = vld [vmem:[%s129] sm:$0xff]
  %v131 = vld [vmem:[%s129 + $0x8] sm:$0xff]
  %v132 = vld [vmem:[%s129 + $0x10] sm:$0xff]
  %s133 = scalar_lea.vmem %s4, 1
  %v134 = vld [vmem:[%s133] sm:$0x1]
  %v136 = vperm.slane %v134, 0
  %138 = vmatpush.msra.mxu0 0.0
  %139 = vmatpush.msra.mxu0 0.0
  %140 = vmatpush.msra.mxu0 0.0
  %141 = vmatpush.msra.mxu0 0.0
  %142 = vmatpush.msra.mxu0 0.0
  %143 = vmatpush.msra.mxu0 0.0
  %144 = vmatpush.msra.mxu0 0.0
  %145 = vmatpush.msra.mxu0 0.0
  %146 = vmatpush.msra.mxu0 0.0
  %147 = vmatpush.msra.mxu0 0.0
  %148 = vmatpush.msra.mxu0 0.0
  %149 = vmatpush.msra.mxu0 0.0
  %150 = vmatpush.msra.mxu0 0.0
  %151 = vmatpush.msra.mxu0 %v132
  %152 = vmatpush.msra.mxu0 %v131
  %153 = vmatpush.msra.mxu0 %v130
  %154 = vmatmul.f32.gmra.mxu0 %v77
  %v155 = vpop.f32.mrf.mxu0
  %v156 = vadd.f32 %v136, %v155
  %157 = vmatmul.f32.gmra.mxu0 %v80
  %v158 = vpop.f32.mrf.mxu0
  %v159 = vadd.f32 %v136, %v158
  %160 = vmatmul.f32.gmra.mxu0 %v83
  %v161 = vpop.f32.mrf.mxu0
  %v162 = vadd.f32 %v136, %v161
  %163 = vmatmul.f32.gmra.mxu0 %v86
  %v164 = vpop.f32.mrf.mxu0
  %v165 = vadd.f32 %v136, %v164
  %166 = vmatmul.f32.gmra.mxu0 %v89
  %v167 = vpop.f32.mrf.mxu0
  %v168 = vadd.f32 %v136, %v167
  %169 = vdwg.mxu0
  %s170 = scalar_lea.vmem [#allocation2], 40
  %171 = vst.msk [vmem:[%s170] sm:$0xff] %vm123, %v156
  %172 = vst.msk [vmem:[%s170 + $0x8] sm:$0xff] %vm123, %v159
  %173 = vst.msk [vmem:[%s170 + $0x10] sm:$0xff] %vm123, %v162
  %174 = vst.msk [vmem:[%s170 + $0x18] sm:$0xff] %vm123, %v165
  %175 = vst.msk [vmem:[%s170 + $0x20] sm:$0xff] %vm123, %v168
  %v176 = vld [vmem:[%s5] sm:$0xff]
  %v177 = vld [vmem:[%s5 + $0x8] sm:$0xff]
  %v178 = vld [vmem:[%s5 + $0x10] sm:$0xff]
  %v179 = vld [vmem:[%s5 + $0x18] sm:$0xff]
  %s180 = scalar_lea.vmem %s5, 32
  %v181 = vld [vmem:[%s180] sm:$0xff]
  %v182 = vld [vmem:[%s180 + $0x8] sm:$0xff]
  %v183 = vld [vmem:[%s180 + $0x10] sm:$0xff]
  %v184 = vld [vmem:[%s180 + $0x18] sm:$0xff]
  %v185 = vld [vmem:[%s6] sm:$0x1]
  %s186 = scalar_lea.vmem %s6, 1
  %v187 = vld [vmem:[%s186] sm:$0x1]
  %v188 = vld [vmem:[#allocation2] sm:$0xff]
  %v189 = vld [vmem:[%s170 + $0x20] sm:$0xff]
  %vm190 = vcmask 261120
  %v192 = vsel %vm190, 0.0, 0
  %194 = vmatpush.msra.mxu0 0.0
  %195 = vmatpush.msra.mxu0 0.0
  %196 = vmatpush.msra.mxu0 0.0
  %197 = vmatpush.msra.mxu0 0.0
  %198 = vmatpush.msra.mxu0 0.0
  %199 = vmatpush.msra.mxu0 0.0
  %200 = vmatpush.msra.mxu0 0.0
  %201 = vmatpush.msra.mxu0 0.0
  %202 = vmatpush.msra.mxu0 0.0
  %203 = vmatpush.msra.mxu0 0.0
  %204 = vmatpush.msra.mxu0 0.0
  %205 = vmatpush.msra.mxu0 0.0
  %206 = vmatpush.msra.mxu0 %v179
  %207 = vmatpush.msra.mxu0 %v178
  %208 = vmatpush.msra.mxu0 %v177
  %209 = vmatpush.msra.mxu0 %v176
  %210 = vmatmul.f32.gmra.mxu0 %v192
  %v211 = vpop.f32.mrf.mxu0
  %v212 = vadd.f32 0.0, %v211
  %213 = vdwg.mxu0
  %214 = vmatpush.msra.mxu0 0.0
  %215 = vmatpush.msra.mxu0 0.0
  %216 = vmatpush.msra.mxu0 0.0
  %217 = vmatpush.msra.mxu0 0.0
  %218 = vmatpush.msra.mxu0 0.0
  %219 = vmatpush.msra.mxu0 0.0
  %220 = vmatpush.msra.mxu0 0.0
  %221 = vmatpush.msra.mxu0 0.0
  %222 = vmatpush.msra.mxu0 0.0
  %223 = vmatpush.msra.mxu0 0.0
  %224 = vmatpush.msra.mxu0 0.0
  %225 = vmatpush.msra.mxu0 0.0
  %226 = vmatpush.msra.mxu0 %v184
  %227 = vmatpush.msra.mxu0 %v183
  %228 = vmatpush.msra.mxu0 %v182
  %229 = vmatpush.msra.mxu0 %v181
  %230 = vmatmul.f32.gmra.mxu0 %v192
  %v231 = vpop.f32.mrf.mxu0
  %v232 = vadd.f32 0.0, %v231
  %233 = vdwg.mxu0
  %v234 = vadd.f32 %v188, %v212
  %v235 = vxor.u32 %v234, 2147483648
  %v236 = vmul.f32 %v235, 1.442695
  %v237 = vpow.pop %v236
  %v238 = vadd.f32 %v237, 1.0
  %v239 = vrcp.pop %v238
  %v240 = vmul.f32 %v238, %v239
  %v241 = vsub.f32 1.0, %v240
  %v242 = vmul.f32 %v239, %v241
  %v243 = vadd.f32 %v239, %v242
  %vm244 = vweird.f32 %v238
  %vm245 = vweird.f32 %v239
  %vm246 = vmor %vm244, %vm245
  %v247 = vsel %vm246, %v239, %v243
  %v248 = vand.u32 2147483647, %v238
  %vm249 = vcmp.eq.f32.partialorder %v248, 8.507059e+37
  %v250 = vand.u32 %v238, 2147483648
  %v251 = vor.u32 1.1754944e-38, %v250
  %v252 = vsel %vm249, %v251, %v247
  %v253 = vmul.f32 1.0, %v252
  %v255 = vperm.slane %v185, 0
  %256 = vrot.lane.b32.xlu0 %v255, 64
  %v257 = vpop.permute.xlu0 %256
  %v259 = vadd.f32 %v212, %v257
  %261 = vrot.lane.b32.xlu0 %v259, 64
  %v262 = vpop.permute.xlu0 %261
  %v264 = vmul.f32 %v253, %v262
  %266 = vrot.lane.b32.xlu0 %v264, 64
  %v267 = vpop.permute.xlu0 %266
  %v269 = vadd.f32 %v188, %v267
  %v270 = vtanh.pop %v269
  %v271 = vsub.f32 1.0, %v253
  %273 = vrot.lane.b32.xlu0 %v270, 96
  %v274 = vpop.permute.xlu0 %273
  %v276 = vmul.f32 %v271, %v274
  %v277 = vmul.f32 %v253, 0.0
  %v278 = vadd.f32 %v276, %v277
  %v279 = vadd.f32 %v189, %v232
  %v280 = vxor.u32 %v279, 2147483648
  %v281 = vmul.f32 %v280, 1.442695
  %v282 = vpow.pop %v281
  %v283 = vadd.f32 %v282, 1.0
  %v284 = vrcp.pop %v283
  %v285 = vmul.f32 %v283, %v284
  %v286 = vsub.f32 1.0, %v285
  %v287 = vmul.f32 %v284, %v286
  %v288 = vadd.f32 %v284, %v287
  %vm289 = vweird.f32 %v283
  %vm290 = vweird.f32 %v284
  %vm291 = vmor %vm289, %vm290
  %v292 = vsel %vm291, %v284, %v288
  %v293 = vand.u32 2147483647, %v283
  %vm294 = vcmp.eq.f32.partialorder %v293, 8.507059e+37
  %v295 = vand.u32 %v283, 2147483648
  %v296 = vor.u32 1.1754944e-38, %v295
  %v297 = vsel %vm294, %v296, %v292
  %v298 = vmul.f32 1.0, %v297
  %v300 = vperm.slane %v187, 0
  %301 = vrot.lane.b32.xlu0 %v300, 64
  %v302 = vpop.permute.xlu0 %301
  %v304 = vadd.f32 %v232, %v302
  %306 = vrot.lane.b32.xlu0 %v304, 64
  %v307 = vpop.permute.xlu0 %306
  %v309 = vmul.f32 %v298, %v307
  %311 = vrot.lane.b32.xlu0 %v309, 64
  %v312 = vpop.permute.xlu0 %311
  %v314 = vadd.f32 %v189, %v312
  %v315 = vtanh.pop %v314
  %v316 = vsub.f32 1.0, %v298
  %318 = vrot.lane.b32.xlu0 %v315, 96
  %v319 = vpop.permute.xlu0 %318
  %v321 = vmul.f32 %v316, %v319
  %v322 = vmul.f32 %v298, 0.0
  %v323 = vadd.f32 %v321, %v322
  %325 = vrot.lane.b32.xlu0 %v278, 96
  %v326 = vpop.permute.xlu0 %325
  %328 = vst.msk [vmem:[#allocation3] sm:$0xff] %vm190, %v326
  %vm329 = vcmask 523520
  %330 = vst.msk [vmem:[#allocation3 + $0x20] sm:$0xff] %vm329, %v323
  %v331 = vld [vmem:[#allocation2 + $0x8] sm:$0xff]
  %v332 = vld [vmem:[%s170 + $0x18] sm:$0xff]
  %v333 = vsel %vm190, %v326, 0
  %335 = vmatpush.msra.mxu0 0.0
  %336 = vmatpush.msra.mxu0 0.0
  %337 = vmatpush.msra.mxu0 0.0
  %338 = vmatpush.msra.mxu0 0.0
  %339 = vmatpush.msra.mxu0 0.0
  %340 = vmatpush.msra.mxu0 0.0
  %341 = vmatpush.msra.mxu0 0.0
  %342 = vmatpush.msra.mxu0 0.0
  %343 = vmatpush.msra.mxu0 0.0
  %344 = vmatpush.msra.mxu0 0.0
  %345 = vmatpush.msra.mxu0 0.0
  %346 = vmatpush.msra.mxu0 0.0
  %347 = vmatpush.msra.mxu0 %v179
  %348 = vmatpush.msra.mxu0 %v178
  %349 = vmatpush.msra.mxu0 %v177
  %350 = vmatpush.msra.mxu0 %v176
  %351 = vmatmul.f32.gmra.mxu0 %v333
  %v352 = vpop.f32.mrf.mxu0
  %v353 = vadd.f32 0.0, %v352
  %354 = vdwg.mxu0
  %356 = vrot.lane.b32.xlu0 %v323, 96
  %v357 = vpop.permute.xlu0 %356
  %v358 = vsel %vm190, %v357, 0
  %360 = vmatpush.msra.mxu0 0.0
  %361 = vmatpush.msra.mxu0 0.0
  %362 = vmatpush.msra.mxu0 0.0
  %363 = vmatpush.msra.mxu0 0.0
  %364 = vmatpush.msra.mxu0 0.0
  %365 = vmatpush.msra.mxu0 0.0
  %366 = vmatpush.msra.mxu0 0.0
  %367 = vmatpush.msra.mxu0 0.0
  %368 = vmatpush.msra.mxu0 0.0
  %369 = vmatpush.msra.mxu0 0.0
  %370 = vmatpush.msra.mxu0 0.0
  %371 = vmatpush.msra.mxu0 0.0
  %372 = vmatpush.msra.mxu0 %v184
  %373 = vmatpush.msra.mxu0 %v183
  %374 = vmatpush.msra.mxu0 %v182
  %375 = vmatpush.msra.mxu0 %v181
  %376 = vmatmul.f32.gmra.mxu0 %v358
  %v377 = vpop.f32.mrf.mxu0
  %v378 = vadd.f32 0.0, %v377
  %379 = vdwg.mxu0
  %v380 = vadd.f32 %v331, %v353
  %v381 = vxor.u32 %v380, 2147483648
  %v382 = vmul.f32 %v381, 1.442695
  %v383 = vpow.pop %v382
  %v384 = vadd.f32 %v383, 1.0
  %v385 = vrcp.pop %v384
  %v386 = vmul.f32 %v384, %v385
  %v387 = vsub.f32 1.0, %v386
  %v388 = vmul.f32 %v385, %v387
  %v389 = vadd.f32 %v385, %v388
  %vm390 = vweird.f32 %v384
  %vm391 = vweird.f32 %v385
  %vm392 = vmor %vm390, %vm391
  %v393 = vsel %vm392, %v385, %v389
  %v394 = vand.u32 2147483647, %v384
  %vm395 = vcmp.eq.f32.partialorder %v394, 8.507059e+37
  %v396 = vand.u32 %v384, 2147483648
  %v397 = vor.u32 1.1754944e-38, %v396
  %v398 = vsel %vm395, %v397, %v393
  %v399 = vmul.f32 1.0, %v398
  %v400 = vadd.f32 %v353, %v257
  %402 = vrot.lane.b32.xlu0 %v400, 64
  %v403 = vpop.permute.xlu0 %402
  %v405 = vmul.f32 %v399, %v403
  %407 = vrot.lane.b32.xlu0 %v405, 64
  %v408 = vpop.permute.xlu0 %407
  %v410 = vadd.f32 %v331, %v408
  %v411 = vtanh.pop %v410
  %v412 = vsub.f32 1.0, %v399
  %414 = vrot.lane.b32.xlu0 %v411, 96
  %v415 = vpop.permute.xlu0 %414
  %v417 = vmul.f32 %v412, %v415
  %v418 = vmul.f32 %v399, %v278
  %v419 = vadd.f32 %v417, %v418
  %v420 = vadd.f32 %v332, %v378
  %v421 = vxor.u32 %v420, 2147483648
  %v422 = vmul.f32 %v421, 1.442695
  %v423 = vpow.pop %v422
  %v424 = vadd.f32 %v423, 1.0
  %v425 = vrcp.pop %v424
  %v426 = vmul.f32 %v424, %v425
  %v427 = vsub.f32 1.0, %v426
  %v428 = vmul.f32 %v425, %v427
  %v429 = vadd.f32 %v425, %v428
  %vm430 = vweird.f32 %v424
  %vm431 = vweird.f32 %v425
  %vm432 = vmor %vm430, %vm431
  %v433 = vsel %vm432, %v425, %v429
  %v434 = vand.u32 2147483647, %v424
  %vm435 = vcmp.eq.f32.partialorder %v434, 8.507059e+37
  %v436 = vand.u32 %v424, 2147483648
  %v437 = vor.u32 1.1754944e-38, %v436
  %v438 = vsel %vm435, %v437, %v433
  %v439 = vmul.f32 1.0, %v438
  %v440 = vadd.f32 %v378, %v302
  %442 = vrot.lane.b32.xlu0 %v440, 64
  %v443 = vpop.permute.xlu0 %442
  %v445 = vmul.f32 %v439, %v443
  %447 = vrot.lane.b32.xlu0 %v445, 64
  %v448 = vpop.permute.xlu0 %447
  %v450 = vadd.f32 %v332, %v448
  %v451 = vtanh.pop %v450
  %v452 = vsub.f32 1.0, %v439
  %454 = vrot.lane.b32.xlu0 %v451, 96
  %v455 = vpop.permute.xlu0 %454
  %v457 = vmul.f32 %v452, %v455
  %v458 = vmul.f32 %v439, %v323
  %v459 = vadd.f32 %v457, %v458
  %461 = vrot.lane.b32.xlu0 %v419, 96
  %v462 = vpop.permute.xlu0 %461
  %464 = vst.msk [vmem:[#allocation3 + $0x8] sm:$0xff] %vm190, %v462
  %465 = vst.msk [vmem:[#allocation3 + $0x18] sm:$0xff] %vm329, %v459
  %v466 = vld [vmem:[#allocation2 + $0x10] sm:$0xff]
  %v467 = vld [vmem:[%s170 + $0x10] sm:$0xff]
  %v468 = vsel %vm190, %v462, 0
  %470 = vmatpush.msra.mxu0 0.0
  %471 = vmatpush.msra.mxu0 0.0
  %472 = vmatpush.msra.mxu0 0.0
  %473 = vmatpush.msra.mxu0 0.0
  %474 = vmatpush.msra.mxu0 0.0
  %475 = vmatpush.msra.mxu0 0.0
  %476 = vmatpush.msra.mxu0 0.0
  %477 = vmatpush.msra.mxu0 0.0
  %478 = vmatpush.msra.mxu0 0.0
  %479 = vmatpush.msra.mxu0 0.0
  %480 = vmatpush.msra.mxu0 0.0
  %481 = vmatpush.msra.mxu0 0.0
  %482 = vmatpush.msra.mxu0 %v179
  %483 = vmatpush.msra.mxu0 %v178
  %484 = vmatpush.msra.mxu0 %v177
  %485 = vmatpush.msra.mxu0 %v176
  %486 = vmatmul.f32.gmra.mxu0 %v468
  %v487 = vpop.f32.mrf.mxu0
  %v488 = vadd.f32 0.0, %v487
  %489 = vdwg.mxu0
  %491 = vrot.lane.b32.xlu0 %v459, 96
  %v492 = vpop.permute.xlu0 %491
  %v493 = vsel %vm190, %v492, 0
  %495 = vmatpush.msra.mxu0 0.0
  %496 = vmatpush.msra.mxu0 0.0
  %497 = vmatpush.msra.mxu0 0.0
  %498 = vmatpush.msra.mxu0 0.0
  %499 = vmatpush.msra.mxu0 0.0
  %500 = vmatpush.msra.mxu0 0.0
  %501 = vmatpush.msra.mxu0 0.0
  %502 = vmatpush.msra.mxu0 0.0
  %503 = vmatpush.msra.mxu0 0.0
  %504 = vmatpush.msra.mxu0 0.0
  %505 = vmatpush.msra.mxu0 0.0
  %506 = vmatpush.msra.mxu0 0.0
  %507 = vmatpush.msra.mxu0 %v184
  %508 = vmatpush.msra.mxu0 %v183
  %509 = vmatpush.msra.mxu0 %v182
  %510 = vmatpush.msra.mxu0 %v181
  %511 = vmatmul.f32.gmra.mxu0 %v493
  %v512 = vpop.f32.mrf.mxu0
  %v513 = vadd.f32 0.0, %v512
  %514 = vdwg.mxu0
  %v515 = vadd.f32 %v466, %v488
  %v516 = vxor.u32 %v515, 2147483648
  %v517 = vmul.f32 %v516, 1.442695
  %v518 = vpow.pop %v517
  %v519 = vadd.f32 %v518, 1.0
  %v520 = vrcp.pop %v519
  %v521 = vmul.f32 %v519, %v520
  %v522 = vsub.f32 1.0, %v521
  %v523 = vmul.f32 %v520, %v522
  %v524 = vadd.f32 %v520, %v523
  %vm525 = vweird.f32 %v519
  %vm526 = vweird.f32 %v520
  %vm527 = vmor %vm525, %vm526
  %v528 = vsel %vm527, %v520, %v524
  %v529 = vand.u32 2147483647, %v519
  %vm530 = vcmp.eq.f32.partialorder %v529, 8.507059e+37
  %v531 = vand.u32 %v519, 2147483648
  %v532 = vor.u32 1.1754944e-38, %v531
  %v533 = vsel %vm530, %v532, %v528
  %v534 = vmul.f32 1.0, %v533
  %v535 = vadd.f32 %v488, %v257
  %537 = vrot.lane.b32.xlu0 %v535, 64
  %v538 = vpop.permute.xlu0 %537
  %v540 = vmul.f32 %v534, %v538
  %542 = vrot.lane.b32.xlu0 %v540, 64
  %v543 = vpop.permute.xlu0 %542
  %v545 = vadd.f32 %v466, %v543
  %v546 = vtanh.pop %v545
  %v547 = vsub.f32 1.0, %v534
  %549 = vrot.lane.b32.xlu0 %v546, 96
  %v550 = vpop.permute.xlu0 %549
  %v552 = vmul.f32 %v547, %v550
  %v553 = vmul.f32 %v534, %v419
  %v554 = vadd.f32 %v552, %v553
  %v555 = vadd.f32 %v467, %v513
  %v556 = vxor.u32 %v555, 2147483648
  %v557 = vmul.f32 %v556, 1.442695
  %v558 = vpow.pop %v557
  %v559 = vadd.f32 %v558, 1.0
  %v560 = vrcp.pop %v559
  %v561 = vmul.f32 %v559, %v560
  %v562 = vsub.f32 1.0, %v561
  %v563 = vmul.f32 %v560, %v562
  %v564 = vadd.f32 %v560, %v563
  %vm565 = vweird.f32 %v559
  %vm566 = vweird.f32 %v560
  %vm567 = vmor %vm565, %vm566
  %v568 = vsel %vm567, %v560, %v564
  %v569 = vand.u32 2147483647, %v559
  %vm570 = vcmp.eq.f32.partialorder %v569, 8.507059e+37
  %v571 = vand.u32 %v559, 2147483648
  %v572 = vor.u32 1.1754944e-38, %v571
  %v573 = vsel %vm570, %v572, %v568
  %v574 = vmul.f32 1.0, %v573
  %v575 = vadd.f32 %v513, %v302
  %577 = vrot.lane.b32.xlu0 %v575, 64
  %v578 = vpop.permute.xlu0 %577
  %v580 = vmul.f32 %v574, %v578
  %582 = vrot.lane.b32.xlu0 %v580, 64
  %v583 = vpop.permute.xlu0 %582
  %v585 = vadd.f32 %v467, %v583
  %v586 = vtanh.pop %v585
  %v587 = vsub.f32 1.0, %v574
  %589 = vrot.lane.b32.xlu0 %v586, 96
  %v590 = vpop.permute.xlu0 %589
  %v592 = vmul.f32 %v587, %v590
  %v593 = vmul.f32 %v574, %v459
  %v594 = vadd.f32 %v592, %v593
  %596 = vrot.lane.b32.xlu0 %v554, 96
  %v597 = vpop.permute.xlu0 %596
  %599 = vst.msk [vmem:[#allocation3 + $0x10] sm:$0xff] %vm190, %v597
  %600 = vst.msk [vmem:[#allocation3 + $0x10] sm:$0xff] %vm329, %v594
  %v601 = vld [vmem:[#allocation2 + $0x18] sm:$0xff]
  %v602 = vld [vmem:[%s170 + $0x8] sm:$0xff]
  %v603 = vsel %vm190, %v597, 0
  %605 = vmatpush.msra.mxu0 0.0
  %606 = vmatpush.msra.mxu0 0.0
  %607 = vmatpush.msra.mxu0 0.0
  %608 = vmatpush.msra.mxu0 0.0
  %609 = vmatpush.msra.mxu0 0.0
  %610 = vmatpush.msra.mxu0 0.0
  %611 = vmatpush.msra.mxu0 0.0
  %612 = vmatpush.msra.mxu0 0.0
  %613 = vmatpush.msra.mxu0 0.0
  %614 = vmatpush.msra.mxu0 0.0
  %615 = vmatpush.msra.mxu0 0.0
  %616 = vmatpush.msra.mxu0 0.0
  %617 = vmatpush.msra.mxu0 %v179
  %618 = vmatpush.msra.mxu0 %v178
  %619 = vmatpush.msra.mxu0 %v177
  %620 = vmatpush.msra.mxu0 %v176
  %621 = vmatmul.f32.gmra.mxu0 %v603
  %v622 = vpop.f32.mrf.mxu0
  %v623 = vadd.f32 0.0, %v622
  %624 = vdwg.mxu0
  %626 = vrot.lane.b32.xlu0 %v594, 96
  %v627 = vpop.permute.xlu0 %626
  %v628 = vsel %vm190, %v627, 0
  %630 = vmatpush.msra.mxu0 0.0
  %631 = vmatpush.msra.mxu0 0.0
  %632 = vmatpush.msra.mxu0 0.0
  %633 = vmatpush.msra.mxu0 0.0
  %634 = vmatpush.msra.mxu0 0.0
  %635 = vmatpush.msra.mxu0 0.0
  %636 = vmatpush.msra.mxu0 0.0
  %637 = vmatpush.msra.mxu0 0.0
  %638 = vmatpush.msra.mxu0 0.0
  %639 = vmatpush.msra.mxu0 0.0
  %640 = vmatpush.msra.mxu0 0.0
  %641 = vmatpush.msra.mxu0 0.0
  %642 = vmatpush.msra.mxu0 %v184
  %643 = vmatpush.msra.mxu0 %v183
  %644 = vmatpush.msra.mxu0 %v182
  %645 = vmatpush.msra.mxu0 %v181
  %646 = vmatmul.f32.gmra.mxu0 %v628
  %v647 = vpop.f32.mrf.mxu0
  %v648 = vadd.f32 0.0, %v647
  %649 = vdwg.mxu0
  %v650 = vadd.f32 %v601, %v623
  %v651 = vxor.u32 %v650, 2147483648
  %v652 = vmul.f32 %v651, 1.442695
  %v653 = vpow.pop %v652
  %v654 = vadd.f32 %v653, 1.0
  %v655 = vrcp.pop %v654
  %v656 = vmul.f32 %v654, %v655
  %v657 = vsub.f32 1.0, %v656
  %v658 = vmul.f32 %v655, %v657
  %v659 = vadd.f32 %v655, %v658
  %vm660 = vweird.f32 %v654
  %vm661 = vweird.f32 %v655
  %vm662 = vmor %vm660, %vm661
  %v663 = vsel %vm662, %v655, %v659
  %v664 = vand.u32 2147483647, %v654
  %vm665 = vcmp.eq.f32.partialorder %v664, 8.507059e+37
  %v666 = vand.u32 %v654, 2147483648
  %v667 = vor.u32 1.1754944e-38, %v666
  %v668 = vsel %vm665, %v667, %v663
  %v669 = vmul.f32 1.0, %v668
  %v670 = vadd.f32 %v623, %v257
  %672 = vrot.lane.b32.xlu0 %v670, 64
  %v673 = vpop.permute.xlu0 %672
  %v675 = vmul.f32 %v669, %v673
  %677 = vrot.lane.b32.xlu0 %v675, 64
  %v678 = vpop.permute.xlu0 %677
  %v680 = vadd.f32 %v601, %v678
  %v681 = vtanh.pop %v680
  %v682 = vsub.f32 1.0, %v669
  %684 = vrot.lane.b32.xlu0 %v681, 96
  %v685 = vpop.permute.xlu0 %684
  %v687 = vmul.f32 %v682, %v685
  %v688 = vmul.f32 %v669, %v554
  %v689 = vadd.f32 %v687, %v688
  %v690 = vadd.f32 %v602, %v648
  %v691 = vxor.u32 %v690, 2147483648
  %v692 = vmul.f32 %v691, 1.442695
  %v693 = vpow.pop %v692
  %v694 = vadd.f32 %v693, 1.0
  %v695 = vrcp.pop %v694
  %v696 = vmul.f32 %v694, %v695
  %v697 = vsub.f32 1.0, %v696
  %v698 = vmul.f32 %v695, %v697
  %v699 = vadd.f32 %v695, %v698
  %vm700 = vweird.f32 %v694
  %vm701 = vweird.f32 %v695
  %vm702 = vmor %vm700, %vm701
  %v703 = vsel %vm702, %v695, %v699
  %v704 = vand.u32 2147483647, %v694
  %vm705 = vcmp.eq.f32.partialorder %v704, 8.507059e+37
  %v706 = vand.u32 %v694, 2147483648
  %v707 = vor.u32 1.1754944e-38, %v706
  %v708 = vsel %vm705, %v707, %v703
  %v709 = vmul.f32 1.0, %v708
  %v710 = vadd.f32 %v648, %v302
  %712 = vrot.lane.b32.xlu0 %v710, 64
  %v713 = vpop.permute.xlu0 %712
  %v715 = vmul.f32 %v709, %v713
  %717 = vrot.lane.b32.xlu0 %v715, 64
  %v718 = vpop.permute.xlu0 %717
  %v720 = vadd.f32 %v602, %v718
  %v721 = vtanh.pop %v720
  %v722 = vsub.f32 1.0, %v709
  %724 = vrot.lane.b32.xlu0 %v721, 96
  %v725 = vpop.permute.xlu0 %724
  %v727 = vmul.f32 %v722, %v725
  %v728 = vmul.f32 %v709, %v594
  %v729 = vadd.f32 %v727, %v728
  %731 = vrot.lane.b32.xlu0 %v689, 96
  %v732 = vpop.permute.xlu0 %731
  %734 = vst.msk [vmem:[#allocation3 + $0x18] sm:$0xff] %vm190, %v732
  %735 = vst.msk [vmem:[#allocation3 + $0x8] sm:$0xff] %vm329, %v729
  %v736 = vld [vmem:[#allocation2 + $0x20] sm:$0xff]
  %v737 = vld [vmem:[%s170] sm:$0xff]
  %v738 = vsel %vm190, %v732, 0
  %740 = vmatpush.msra.mxu0 0.0
  %741 = vmatpush.msra.mxu0 0.0
  %742 = vmatpush.msra.mxu0 0.0
  %743 = vmatpush.msra.mxu0 0.0
  %744 = vmatpush.msra.mxu0 0.0
  %745 = vmatpush.msra.mxu0 0.0
  %746 = vmatpush.msra.mxu0 0.0
  %747 = vmatpush.msra.mxu0 0.0
  %748 = vmatpush.msra.mxu0 0.0
  %749 = vmatpush.msra.mxu0 0.0
  %750 = vmatpush.msra.mxu0 0.0
  %751 = vmatpush.msra.mxu0 0.0
  %752 = vmatpush.msra.mxu0 %v179
  %753 = vmatpush.msra.mxu0 %v178
  %754 = vmatpush.msra.mxu0 %v177
  %755 = vmatpush.msra.mxu0 %v176
  %756 = vmatmul.f32.gmra.mxu0 %v738
  %v757 = vpop.f32.mrf.mxu0
  %v758 = vadd.f32 0.0, %v757
  %759 = vdwg.mxu0
  %761 = vrot.lane.b32.xlu0 %v729, 96
  %v762 = vpop.permute.xlu0 %761
  %v763 = vsel %vm190, %v762, 0
  %765 = vmatpush.msra.mxu0 0.0
  %766 = vmatpush.msra.mxu0 0.0
  %767 = vmatpush.msra.mxu0 0.0
  %768 = vmatpush.msra.mxu0 0.0
  %769 = vmatpush.msra.mxu0 0.0
  %770 = vmatpush.msra.mxu0 0.0
  %771 = vmatpush.msra.mxu0 0.0
  %772 = vmatpush.msra.mxu0 0.0
  %773 = vmatpush.msra.mxu0 0.0
  %774 = vmatpush.msra.mxu0 0.0
  %775 = vmatpush.msra.mxu0 0.0
  %776 = vmatpush.msra.mxu0 0.0
  %777 = vmatpush.msra.mxu0 %v184
  %778 = vmatpush.msra.mxu0 %v183
  %779 = vmatpush.msra.mxu0 %v182
  %780 = vmatpush.msra.mxu0 %v181
  %781 = vmatmul.f32.gmra.mxu0 %v763
  %v782 = vpop.f32.mrf.mxu0
  %v783 = vadd.f32 0.0, %v782
  %784 = vdwg.mxu0
  %v785 = vadd.f32 %v736, %v758
  %v786 = vxor.u32 %v785, 2147483648
  %v787 = vmul.f32 %v786, 1.442695
  %v788 = vpow.pop %v787
  %v789 = vadd.f32 %v788, 1.0
  %v790 = vrcp.pop %v789
  %v791 = vmul.f32 %v789, %v790
  %v792 = vsub.f32 1.0, %v791
  %v793 = vmul.f32 %v790, %v792
  %v794 = vadd.f32 %v790, %v793
  %vm795 = vweird.f32 %v789
  %vm796 = vweird.f32 %v790
  %vm797 = vmor %vm795, %vm796
  %v798 = vsel %vm797, %v790, %v794
  %v799 = vand.u32 2147483647, %v789
  %vm800 = vcmp.eq.f32.partialorder %v799, 8.507059e+37
  %v801 = vand.u32 %v789, 2147483648
  %v802 = vor.u32 1.1754944e-38, %v801
  %v803 = vsel %vm800, %v802, %v798
  %v804 = vmul.f32 1.0, %v803
  %v805 = vadd.f32 %v758, %v257
  %807 = vrot.lane.b32.xlu0 %v805, 64
  %v808 = vpop.permute.xlu0 %807
  %v810 = vmul.f32 %v804, %v808
  %812 = vrot.lane.b32.xlu0 %v810, 64
  %v813 = vpop.permute.xlu0 %812
  %v815 = vadd.f32 %v736, %v813
  %v816 = vtanh.pop %v815
  %v817 = vsub.f32 1.0, %v804
  %819 = vrot.lane.b32.xlu0 %v816, 96
  %v820 = vpop.permute.xlu0 %819
  %v822 = vmul.f32 %v817, %v820
  %v823 = vmul.f32 %v804, %v689
  %v824 = vadd.f32 %v822, %v823
  %v825 = vadd.f32 %v737, %v783
  %v826 = vxor.u32 %v825, 2147483648
  %v827 = vmul.f32 %v826, 1.442695
  %v828 = vpow.pop %v827
  %v829 = vadd.f32 %v828, 1.0
  %v830 = vrcp.pop %v829
  %v831 = vmul.f32 %v829, %v830
  %v832 = vsub.f32 1.0, %v831
  %v833 = vmul.f32 %v830, %v832
  %v834 = vadd.f32 %v830, %v833
  %vm835 = vweird.f32 %v829
  %vm836 = vweird.f32 %v830
  %vm837 = vmor %vm835, %vm836
  %v838 = vsel %vm837, %v830, %v834
  %v839 = vand.u32 2147483647, %v829
  %vm840 = vcmp.eq.f32.partialorder %v839, 8.507059e+37
  %v841 = vand.u32 %v829, 2147483648
  %v842 = vor.u32 1.1754944e-38, %v841
  %v843 = vsel %vm840, %v842, %v838
  %v844 = vmul.f32 1.0, %v843
  %v845 = vadd.f32 %v783, %v302
  %847 = vrot.lane.b32.xlu0 %v845, 64
  %v848 = vpop.permute.xlu0 %847
  %v850 = vmul.f32 %v844, %v848
  %852 = vrot.lane.b32.xlu0 %v850, 64
  %v853 = vpop.permute.xlu0 %852
  %v855 = vadd.f32 %v737, %v853
  %v856 = vtanh.pop %v855
  %v857 = vsub.f32 1.0, %v844
  %859 = vrot.lane.b32.xlu0 %v856, 96
  %v860 = vpop.permute.xlu0 %859
  %v862 = vmul.f32 %v857, %v860
  %v863 = vmul.f32 %v844, %v729
  %v864 = vadd.f32 %v862, %v863
  %866 = vrot.lane.b32.xlu0 %v824, 96
  %v867 = vpop.permute.xlu0 %866
  %869 = vst.msk [vmem:[#allocation3 + $0x20] sm:$0xff] %vm190, %v867
  %870 = vst.msk [vmem:[#allocation3] sm:$0xff] %vm329, %v864
  %vm871 = vcmask 64512
  %v873 = vsel %vm871, %v62, 0
  %875 = vmatpush.msra.mxu0 0.0
  %876 = vmatpush.msra.mxu0 0.0
  %877 = vmatpush.msra.mxu0 0.0
  %878 = vmatpush.msra.mxu0 0.0
  %879 = vmatpush.msra.mxu0 0.0
  %880 = vmatpush.msra.mxu0 0.0
  %881 = vmatpush.msra.mxu0 0.0
  %882 = vmatpush.msra.mxu0 0.0
  %883 = vmatpush.msra.mxu0 0.0
  %884 = vmatpush.msra.mxu0 0.0
  %885 = vmatpush.msra.mxu0 0.0
  %886 = vmatpush.msra.mxu0 0.0
  %887 = vmatpush.msra.mxu0 0.0
  %888 = vmatpush.msra.mxu0 0.0
  %889 = vmatpush.msra.mxu0 0.0
  %890 = vmatpush.msra.mxu0 %v867
  %891 = vmatmul.f32.gmra.mxu0 %v873
  %v892 = vpop.f32.mrf.mxu0
  %v893 = vadd.f32 0.0, %v892
  %894 = vdwg.mxu0
  %896 = vrot.lane.b32.xlu0 %v864, 96
  %v897 = vpop.permute.xlu0 %896
  %899 = vmatpush.msra.mxu0 0.0
  %900 = vmatpush.msra.mxu0 0.0
  %901 = vmatpush.msra.mxu0 0.0
  %902 = vmatpush.msra.mxu0 0.0
  %903 = vmatpush.msra.mxu0 0.0
  %904 = vmatpush.msra.mxu0 0.0
  %905 = vmatpush.msra.mxu0 0.0
  %906 = vmatpush.msra.mxu0 0.0
  %907 = vmatpush.msra.mxu0 0.0
  %908 = vmatpush.msra.mxu0 0.0
  %909 = vmatpush.msra.mxu0 0.0
  %910 = vmatpush.msra.mxu0 0.0
  %911 = vmatpush.msra.mxu0 0.0
  %912 = vmatpush.msra.mxu0 0.0
  %913 = vmatpush.msra.mxu0 0.0
  %914 = vmatpush.msra.mxu0 %v897
  %915 = vmatmul.f32.gmra.mxu0 %v873
  %v916 = vpop.f32.mrf.mxu0
  %v917 = vadd.f32 0.0, %v916
  %918 = vdwg.mxu0
  %v919 = vld [vmem:[#allocation3] sm:$0xff]
  %v920 = vld [vmem:[#allocation3 + $0x8] sm:$0xff]
  %v921 = vld [vmem:[#allocation3 + $0x10] sm:$0xff]
  %v922 = vld [vmem:[#allocation3 + $0x18] sm:$0xff]
  %v923 = vld [vmem:[#allocation3 + $0x20] sm:$0xff]
  %v924 = vld [vmem:[%s7] sm:$0xff]
  %v925 = vld [vmem:[%s7 + $0x8] sm:$0xff]
  %v926 = vld [vmem:[%s7 + $0x10] sm:$0xff]
  %v927 = vld [vmem:[%s7 + $0x18] sm:$0xff]
  %v928 = vld [vmem:[%s7 + $0x20] sm:$0xff]
  %v929 = vld [vmem:[%s7 + $0x28] sm:$0xff]
  %v930 = vld [vmem:[%s7 + $0x30] sm:$0xff]
  %v931 = vld [vmem:[%s7 + $0x38] sm:$0xff]
  %v932 = vld [vmem:[%s8] sm:$0x1]
  %v934 = vperm.slane %v932, 0
  %vm936 = vcmask 523264
  %v938 = vsel %vm936, %v919, 0
  %v941 = vsel %vm936, %v920, 0
  %v944 = vsel %vm936, %v921, 0
  %v947 = vsel %vm936, %v922, 0
  %v950 = vsel %vm936, %v923, 0
  %952 = vmatpush.msra.mxu0 0.0
  %953 = vmatpush.msra.mxu0 0.0
  %954 = vmatpush.msra.mxu0 0.0
  %955 = vmatpush.msra.mxu0 0.0
  %956 = vmatpush.msra.mxu0 0.0
  %957 = vmatpush.msra.mxu0 0.0
  %958 = vmatpush.msra.mxu0 0.0
  %959 = vmatpush.msra.mxu0 0.0
  %960 = vmatpush.msra.mxu0 %v931
  %961 = vmatpush.msra.mxu0 %v930
  %962 = vmatpush.msra.mxu0 %v929
  %963 = vmatpush.msra.mxu0 %v928
  %964 = vmatpush.msra.mxu0 %v927
  %965 = vmatpush.msra.mxu0 %v926
  %966 = vmatpush.msra.mxu0 %v925
  %967 = vmatpush.msra.mxu0 %v924
  %968 = vmatmul.f32.gmra.mxu0 %v938
  %v969 = vpop.f32.mrf.mxu0
  %v970 = vadd.f32 %v934, %v969
  %971 = vmatmul.f32.gmra.mxu0 %v941
  %v972 = vpop.f32.mrf.mxu0
  %v973 = vadd.f32 %v934, %v972
  %974 = vmatmul.f32.gmra.mxu0 %v944
  %v975 = vpop.f32.mrf.mxu0
  %v976 = vadd.f32 %v934, %v975
  %977 = vmatmul.f32.gmra.mxu0 %v947
  %v978 = vpop.f32.mrf.mxu0
  %v979 = vadd.f32 %v934, %v978
  %980 = vmatmul.f32.gmra.mxu0 %v950
  %v981 = vpop.f32.mrf.mxu0
  %v982 = vadd.f32 %v934, %v981
  %983 = vdwg.mxu0
  %984 = vst.msk [vmem:[#allocation2] sm:$0xff] %vm123, %v970
  %985 = vst.msk [vmem:[#allocation2 + $0x8] sm:$0xff] %vm123, %v973
  %986 = vst.msk [vmem:[#allocation2 + $0x10] sm:$0xff] %vm123, %v976
  %987 = vst.msk [vmem:[#allocation2 + $0x18] sm:$0xff] %vm123, %v979
  %988 = vst.msk [vmem:[#allocation2 + $0x20] sm:$0xff] %vm123, %v982
  %s989 = scalar_lea.vmem %s7, 64
  %v990 = vld [vmem:[%s989] sm:$0xff]
  %v991 = vld [vmem:[%s989 + $0x8] sm:$0xff]
  %v992 = vld [vmem:[%s989 + $0x10] sm:$0xff]
  %v993 = vld [vmem:[%s989 + $0x18] sm:$0xff]
  %v994 = vld [vmem:[%s989 + $0x20] sm:$0xff]
  %v995 = vld [vmem:[%s989 + $0x28] sm:$0xff]
  %v996 = vld [vmem:[%s989 + $0x30] sm:$0xff]
  %v997 = vld [vmem:[%s989 + $0x38] sm:$0xff]
  %s998 = scalar_lea.vmem %s8, 1
  %v999 = vld [vmem:[%s998] sm:$0x1]
  %v1001 = vperm.slane %v999, 0
  %1003 = vmatpush.msra.mxu0 0.0
  %1004 = vmatpush.msra.mxu0 0.0
  %1005 = vmatpush.msra.mxu0 0.0
  %1006 = vmatpush.msra.mxu0 0.0
  %1007 = vmatpush.msra.mxu0 0.0
  %1008 = vmatpush.msra.mxu0 0.0
  %1009 = vmatpush.msra.mxu0 0.0
  %1010 = vmatpush.msra.mxu0 0.0
  %1011 = vmatpush.msra.mxu0 %v997
  %1012 = vmatpush.msra.mxu0 %v996
  %1013 = vmatpush.msra.mxu0 %v995
  %1014 = vmatpush.msra.mxu0 %v994
  %1015 = vmatpush.msra.mxu0 %v993
  %1016 = vmatpush.msra.mxu0 %v992
  %1017 = vmatpush.msra.mxu0 %v991
  %1018 = vmatpush.msra.mxu0 %v990
  %1019 = vmatmul.f32.gmra.mxu0 %v938
  %v1020 = vpop.f32.mrf.mxu0
  %v1021 = vadd.f32 %v1001, %v1020
  %1022 = vmatmul.f32.gmra.mxu0 %v941
  %v1023 = vpop.f32.mrf.mxu0
  %v1024 = vadd.f32 %v1001, %v1023
  %1025 = vmatmul.f32.gmra.mxu0 %v944
  %v1026 = vpop.f32.mrf.mxu0
  %v1027 = vadd.f32 %v1001, %v1026
  %1028 = vmatmul.f32.gmra.mxu0 %v947
  %v1029 = vpop.f32.mrf.mxu0
  %v1030 = vadd.f32 %v1001, %v1029
  %1031 = vmatmul.f32.gmra.mxu0 %v950
  %v1032 = vpop.f32.mrf.mxu0
  %v1033 = vadd.f32 %v1001, %v1032
  %1034 = vdwg.mxu0
  %1035 = vst.msk [vmem:[%s170] sm:$0xff] %vm123, %v1021
  %1036 = vst.msk [vmem:[%s170 + $0x8] sm:$0xff] %vm123, %v1024
  %1037 = vst.msk [vmem:[%s170 + $0x10] sm:$0xff] %vm123, %v1027
  %1038 = vst.msk [vmem:[%s170 + $0x18] sm:$0xff] %vm123, %v1030
  %1039 = vst.msk [vmem:[%s170 + $0x20] sm:$0xff] %vm123, %v1033
  %v1040 = vld [vmem:[%s9] sm:$0xff]
  %v1041 = vld [vmem:[%s9 + $0x8] sm:$0xff]
  %v1042 = vld [vmem:[%s9 + $0x10] sm:$0xff]
  %v1043 = vld [vmem:[%s9 + $0x18] sm:$0xff]
  %s1044 = scalar_lea.vmem %s9, 32
  %v1045 = vld [vmem:[%s1044] sm:$0xff]
  %v1046 = vld [vmem:[%s1044 + $0x8] sm:$0xff]
  %v1047 = vld [vmem:[%s1044 + $0x10] sm:$0xff]
  %v1048 = vld [vmem:[%s1044 + $0x18] sm:$0xff]
  %v1049 = vld [vmem:[%s10] sm:$0x1]
  %s1050 = scalar_lea.vmem %s10, 1
  %v1051 = vld [vmem:[%s1050] sm:$0x1]
  %v1052 = vld [vmem:[#allocation2] sm:$0xff]
  %v1053 = vld [vmem:[%s170 + $0x20] sm:$0xff]
  %1054 = vmatpush.msra.mxu0 0.0
  %1055 = vmatpush.msra.mxu0 0.0
  %1056 = vmatpush.msra.mxu0 0.0
  %1057 = vmatpush.msra.mxu0 0.0
  %1058 = vmatpush.msra.mxu0 0.0
  %1059 = vmatpush.msra.mxu0 0.0
  %1060 = vmatpush.msra.mxu0 0.0
  %1061 = vmatpush.msra.mxu0 0.0
  %1062 = vmatpush.msra.mxu0 0.0
  %1063 = vmatpush.msra.mxu0 0.0
  %1064 = vmatpush.msra.mxu0 0.0
  %1065 = vmatpush.msra.mxu0 0.0
  %1066 = vmatpush.msra.mxu0 %v1043
  %1067 = vmatpush.msra.mxu0 %v1042
  %1068 = vmatpush.msra.mxu0 %v1041
  %1069 = vmatpush.msra.mxu0 %v1040
  %1070 = vmatmul.f32.gmra.mxu0 %v192
  %v1071 = vpop.f32.mrf.mxu0
  %v1072 = vadd.f32 0.0, %v1071
  %1073 = vdwg.mxu0
  %1074 = vmatpush.msra.mxu0 0.0
  %1075 = vmatpush.msra.mxu0 0.0
  %1076 = vmatpush.msra.mxu0 0.0
  %1077 = vmatpush.msra.mxu0 0.0
  %1078 = vmatpush.msra.mxu0 0.0
  %1079 = vmatpush.msra.mxu0 0.0
  %1080 = vmatpush.msra.mxu0 0.0
  %1081 = vmatpush.msra.mxu0 0.0
  %1082 = vmatpush.msra.mxu0 0.0
  %1083 = vmatpush.msra.mxu0 0.0
  %1084 = vmatpush.msra.mxu0 0.0
  %1085 = vmatpush.msra.mxu0 0.0
  %1086 = vmatpush.msra.mxu0 %v1048
  %1087 = vmatpush.msra.mxu0 %v1047
  %1088 = vmatpush.msra.mxu0 %v1046
  %1089 = vmatpush.msra.mxu0 %v1045
  %1090 = vmatmul.f32.gmra.mxu0 %v192
  %v1091 = vpop.f32.mrf.mxu0
  %v1092 = vadd.f32 0.0, %v1091
  %1093 = vdwg.mxu0
  %v1094 = vadd.f32 %v1052, %v1072
  %v1095 = vxor.u32 %v1094, 2147483648
  %v1096 = vmul.f32 %v1095, 1.442695
  %v1097 = vpow.pop %v1096
  %v1098 = vadd.f32 %v1097, 1.0
  %v1099 = vrcp.pop %v1098
  %v1100 = vmul.f32 %v1098, %v1099
  %v1101 = vsub.f32 1.0, %v1100
  %v1102 = vmul.f32 %v1099, %v1101
  %v1103 = vadd.f32 %v1099, %v1102
  %vm1104 = vweird.f32 %v1098
  %vm1105 = vweird.f32 %v1099
  %vm1106 = vmor %vm1104, %vm1105
  %v1107 = vsel %vm1106, %v1099, %v1103
  %v1108 = vand.u32 2147483647, %v1098
  %vm1109 = vcmp.eq.f32.partialorder %v1108, 8.507059e+37
  %v1110 = vand.u32 %v1098, 2147483648
  %v1111 = vor.u32 1.1754944e-38, %v1110
  %v1112 = vsel %vm1109, %v1111, %v1107
  %v1113 = vmul.f32 1.0, %v1112
  %v1115 = vperm.slane %v1049, 0
  %1116 = vrot.lane.b32.xlu0 %v1115, 64
  %v1117 = vpop.permute.xlu0 %1116
  %v1119 = vadd.f32 %v1072, %v1117
  %1121 = vrot.lane.b32.xlu0 %v1119, 64
  %v1122 = vpop.permute.xlu0 %1121
  %v1124 = vmul.f32 %v1113, %v1122
  %1126 = vrot.lane.b32.xlu0 %v1124, 64
  %v1127 = vpop.permute.xlu0 %1126
  %v1129 = vadd.f32 %v1052, %v1127
  %v1130 = vtanh.pop %v1129
  %v1131 = vsub.f32 1.0, %v1113
  %1133 = vrot.lane.b32.xlu0 %v1130, 96
  %v1134 = vpop.permute.xlu0 %1133
  %v1136 = vmul.f32 %v1131, %v1134
  %v1137 = vmul.f32 %v1113, 0.0
  %v1138 = vadd.f32 %v1136, %v1137
  %v1139 = vadd.f32 %v1053, %v1092
  %v1140 = vxor.u32 %v1139, 2147483648
  %v1141 = vmul.f32 %v1140, 1.442695
  %v1142 = vpow.pop %v1141
  %v1143 = vadd.f32 %v1142, 1.0
  %v1144 = vrcp.pop %v1143
  %v1145 = vmul.f32 %v1143, %v1144
  %v1146 = vsub.f32 1.0, %v1145
  %v1147 = vmul.f32 %v1144, %v1146
  %v1148 = vadd.f32 %v1144, %v1147
  %vm1149 = vweird.f32 %v1143
  %vm1150 = vweird.f32 %v1144
  %vm1151 = vmor %vm1149, %vm1150
  %v1152 = vsel %vm1151, %v1144, %v1148
  %v1153 = vand.u32 2147483647, %v1143
  %vm1154 = vcmp.eq.f32.partialorder %v1153, 8.507059e+37
  %v1155 = vand.u32 %v1143, 2147483648
  %v1156 = vor.u32 1.1754944e-38, %v1155
  %v1157 = vsel %vm1154, %v1156, %v1152
  %v1158 = vmul.f32 1.0, %v1157
  %v1160 = vperm.slane %v1051, 0
  %1161 = vrot.lane.b32.xlu0 %v1160, 64
  %v1162 = vpop.permute.xlu0 %1161
  %v1164 = vadd.f32 %v1092, %v1162
  %1166 = vrot.lane.b32.xlu0 %v1164, 64
  %v1167 = vpop.permute.xlu0 %1166
  %v1169 = vmul.f32 %v1158, %v1167
  %1171 = vrot.lane.b32.xlu0 %v1169, 64
  %v1172 = vpop.permute.xlu0 %1171
  %v1174 = vadd.f32 %v1053, %v1172
  %v1175 = vtanh.pop %v1174
  %v1176 = vsub.f32 1.0, %v1158
  %1178 = vrot.lane.b32.xlu0 %v1175, 96
  %v1179 = vpop.permute.xlu0 %1178
  %v1181 = vmul.f32 %v1176, %v1179
  %v1182 = vmul.f32 %v1158, 0.0
  %v1183 = vadd.f32 %v1181, %v1182
  %v1184 = vld [vmem:[#allocation2 + $0x8] sm:$0xff]
  %v1185 = vld [vmem:[%s170 + $0x18] sm:$0xff]
  %1187 = vrot.lane.b32.xlu0 %v1138, 96
  %v1188 = vpop.permute.xlu0 %1187
  %v1189 = vsel %vm190, %v1188, 0
  %1191 = vmatpush.msra.mxu0 0.0
  %1192 = vmatpush.msra.mxu0 0.0
  %1193 = vmatpush.msra.mxu0 0.0
  %1194 = vmatpush.msra.mxu0 0.0
  %1195 = vmatpush.msra.mxu0 0.0
  %1196 = vmatpush.msra.mxu0 0.0
  %1197 = vmatpush.msra.mxu0 0.0
  %1198 = vmatpush.msra.mxu0 0.0
  %1199 = vmatpush.msra.mxu0 0.0
  %1200 = vmatpush.msra.mxu0 0.0
  %1201 = vmatpush.msra.mxu0 0.0
  %1202 = vmatpush.msra.mxu0 0.0
  %1203 = vmatpush.msra.mxu0 %v1043
  %1204 = vmatpush.msra.mxu0 %v1042
  %1205 = vmatpush.msra.mxu0 %v1041
  %1206 = vmatpush.msra.mxu0 %v1040
  %1207 = vmatmul.f32.gmra.mxu0 %v1189
  %v1208 = vpop.f32.mrf.mxu0
  %v1209 = vadd.f32 0.0, %v1208
  %1210 = vdwg.mxu0
  %1212 = vrot.lane.b32.xlu0 %v1183, 96
  %v1213 = vpop.permute.xlu0 %1212
  %v1214 = vsel %vm190, %v1213, 0
  %1216 = vmatpush.msra.mxu0 0.0
  %1217 = vmatpush.msra.mxu0 0.0
  %1218 = vmatpush.msra.mxu0 0.0
  %1219 = vmatpush.msra.mxu0 0.0
  %1220 = vmatpush.msra.mxu0 0.0
  %1221 = vmatpush.msra.mxu0 0.0
  %1222 = vmatpush.msra.mxu0 0.0
  %1223 = vmatpush.msra.mxu0 0.0
  %1224 = vmatpush.msra.mxu0 0.0
  %1225 = vmatpush.msra.mxu0 0.0
  %1226 = vmatpush.msra.mxu0 0.0
  %1227 = vmatpush.msra.mxu0 0.0
  %1228 = vmatpush.msra.mxu0 %v1048
  %1229 = vmatpush.msra.mxu0 %v1047
  %1230 = vmatpush.msra.mxu0 %v1046
  %1231 = vmatpush.msra.mxu0 %v1045
  %1232 = vmatmul.f32.gmra.mxu0 %v1214
  %v1233 = vpop.f32.mrf.mxu0
  %v1234 = vadd.f32 0.0, %v1233
  %1235 = vdwg.mxu0
  %v1236 = vadd.f32 %v1184, %v1209
  %v1237 = vxor.u32 %v1236, 2147483648
  %v1238 = vmul.f32 %v1237, 1.442695
  %v1239 = vpow.pop %v1238
  %v1240 = vadd.f32 %v1239, 1.0
  %v1241 = vrcp.pop %v1240
  %v1242 = vmul.f32 %v1240, %v1241
  %v1243 = vsub.f32 1.0, %v1242
  %v1244 = vmul.f32 %v1241, %v1243
  %v1245 = vadd.f32 %v1241, %v1244
  %vm1246 = vweird.f32 %v1240
  %vm1247 = vweird.f32 %v1241
  %vm1248 = vmor %vm1246, %vm1247
  %v1249 = vsel %vm1248, %v1241, %v1245
  %v1250 = vand.u32 2147483647, %v1240
  %vm1251 = vcmp.eq.f32.partialorder %v1250, 8.507059e+37
  %v1252 = vand.u32 %v1240, 2147483648
  %v1253 = vor.u32 1.1754944e-38, %v1252
  %v1254 = vsel %vm1251, %v1253, %v1249
  %v1255 = vmul.f32 1.0, %v1254
  %v1256 = vadd.f32 %v1209, %v1117
  %1258 = vrot.lane.b32.xlu0 %v1256, 64
  %v1259 = vpop.permute.xlu0 %1258
  %v1261 = vmul.f32 %v1255, %v1259
  %1263 = vrot.lane.b32.xlu0 %v1261, 64
  %v1264 = vpop.permute.xlu0 %1263
  %v1266 = vadd.f32 %v1184, %v1264
  %v1267 = vtanh.pop %v1266
  %v1268 = vsub.f32 1.0, %v1255
  %1270 = vrot.lane.b32.xlu0 %v1267, 96
  %v1271 = vpop.permute.xlu0 %1270
  %v1273 = vmul.f32 %v1268, %v1271
  %v1274 = vmul.f32 %v1255, %v1138
  %v1275 = vadd.f32 %v1273, %v1274
  %v1276 = vadd.f32 %v1185, %v1234
  %v1277 = vxor.u32 %v1276, 2147483648
  %v1278 = vmul.f32 %v1277, 1.442695
  %v1279 = vpow.pop %v1278
  %v1280 = vadd.f32 %v1279, 1.0
  %v1281 = vrcp.pop %v1280
  %v1282 = vmul.f32 %v1280, %v1281
  %v1283 = vsub.f32 1.0, %v1282
  %v1284 = vmul.f32 %v1281, %v1283
  %v1285 = vadd.f32 %v1281, %v1284
  %vm1286 = vweird.f32 %v1280
  %vm1287 = vweird.f32 %v1281
  %vm1288 = vmor %vm1286, %vm1287
  %v1289 = vsel %vm1288, %v1281, %v1285
  %v1290 = vand.u32 2147483647, %v1280
  %vm1291 = vcmp.eq.f32.partialorder %v1290, 8.507059e+37
  %v1292 = vand.u32 %v1280, 2147483648
  %v1293 = vor.u32 1.1754944e-38, %v1292
  %v1294 = vsel %vm1291, %v1293, %v1289
  %v1295 = vmul.f32 1.0, %v1294
  %v1296 = vadd.f32 %v1234, %v1162
  %1298 = vrot.lane.b32.xlu0 %v1296, 64
  %v1299 = vpop.permute.xlu0 %1298
  %v1301 = vmul.f32 %v1295, %v1299
  %1303 = vrot.lane.b32.xlu0 %v1301, 64
  %v1304 = vpop.permute.xlu0 %1303
  %v1306 = vadd.f32 %v1185, %v1304
  %v1307 = vtanh.pop %v1306
  %v1308 = vsub.f32 1.0, %v1295
  %1310 = vrot.lane.b32.xlu0 %v1307, 96
  %v1311 = vpop.permute.xlu0 %1310
  %v1313 = vmul.f32 %v1308, %v1311
  %v1314 = vmul.f32 %v1295, %v1183
  %v1315 = vadd.f32 %v1313, %v1314
  %v1316 = vld [vmem:[#allocation2 + $0x10] sm:$0xff]
  %v1317 = vld [vmem:[%s170 + $0x10] sm:$0xff]
  %1319 = vrot.lane.b32.xlu0 %v1275, 96
  %v1320 = vpop.permute.xlu0 %1319
  %v1321 = vsel %vm190, %v1320, 0
  %1323 = vmatpush.msra.mxu0 0.0
  %1324 = vmatpush.msra.mxu0 0.0
  %1325 = vmatpush.msra.mxu0 0.0
  %1326 = vmatpush.msra.mxu0 0.0
  %1327 = vmatpush.msra.mxu0 0.0
  %1328 = vmatpush.msra.mxu0 0.0
  %1329 = vmatpush.msra.mxu0 0.0
  %1330 = vmatpush.msra.mxu0 0.0
  %1331 = vmatpush.msra.mxu0 0.0
  %1332 = vmatpush.msra.mxu0 0.0
  %1333 = vmatpush.msra.mxu0 0.0
  %1334 = vmatpush.msra.mxu0 0.0
  %1335 = vmatpush.msra.mxu0 %v1043
  %1336 = vmatpush.msra.mxu0 %v1042
  %1337 = vmatpush.msra.mxu0 %v1041
  %1338 = vmatpush.msra.mxu0 %v1040
  %1339 = vmatmul.f32.gmra.mxu0 %v1321
  %v1340 = vpop.f32.mrf.mxu0
  %v1341 = vadd.f32 0.0, %v1340
  %1342 = vdwg.mxu0
  %1344 = vrot.lane.b32.xlu0 %v1315, 96
  %v1345 = vpop.permute.xlu0 %1344
  %v1346 = vsel %vm190, %v1345, 0
  %1348 = vmatpush.msra.mxu0 0.0
  %1349 = vmatpush.msra.mxu0 0.0
  %1350 = vmatpush.msra.mxu0 0.0
  %1351 = vmatpush.msra.mxu0 0.0
  %1352 = vmatpush.msra.mxu0 0.0
  %1353 = vmatpush.msra.mxu0 0.0
  %1354 = vmatpush.msra.mxu0 0.0
  %1355 = vmatpush.msra.mxu0 0.0
  %1356 = vmatpush.msra.mxu0 0.0
  %1357 = vmatpush.msra.mxu0 0.0
  %1358 = vmatpush.msra.mxu0 0.0
  %1359 = vmatpush.msra.mxu0 0.0
  %1360 = vmatpush.msra.mxu0 %v1048
  %1361 = vmatpush.msra.mxu0 %v1047
  %1362 = vmatpush.msra.mxu0 %v1046
  %1363 = vmatpush.msra.mxu0 %v1045
  %1364 = vmatmul.f32.gmra.mxu0 %v1346
  %v1365 = vpop.f32.mrf.mxu0
  %v1366 = vadd.f32 0.0, %v1365
  %1367 = vdwg.mxu0
  %v1368 = vadd.f32 %v1316, %v1341
  %v1369 = vxor.u32 %v1368, 2147483648
  %v1370 = vmul.f32 %v1369, 1.442695
  %v1371 = vpow.pop %v1370
  %v1372 = vadd.f32 %v1371, 1.0
  %v1373 = vrcp.pop %v1372
  %v1374 = vmul.f32 %v1372, %v1373
  %v1375 = vsub.f32 1.0, %v1374
  %v1376 = vmul.f32 %v1373, %v1375
  %v1377 = vadd.f32 %v1373, %v1376
  %vm1378 = vweird.f32 %v1372
  %vm1379 = vweird.f32 %v1373
  %vm1380 = vmor %vm1378, %vm1379
  %v1381 = vsel %vm1380, %v1373, %v1377
  %v1382 = vand.u32 2147483647, %v1372
  %vm1383 = vcmp.eq.f32.partialorder %v1382, 8.507059e+37
  %v1384 = vand.u32 %v1372, 2147483648
  %v1385 = vor.u32 1.1754944e-38, %v1384
  %v1386 = vsel %vm1383, %v1385, %v1381
  %v1387 = vmul.f32 1.0, %v1386
  %v1388 = vadd.f32 %v1341, %v1117
  %1390 = vrot.lane.b32.xlu0 %v1388, 64
  %v1391 = vpop.permute.xlu0 %1390
  %v1393 = vmul.f32 %v1387, %v1391
  %1395 = vrot.lane.b32.xlu0 %v1393, 64
  %v1396 = vpop.permute.xlu0 %1395
  %v1398 = vadd.f32 %v1316, %v1396
  %v1399 = vtanh.pop %v1398
  %v1400 = vsub.f32 1.0, %v1387
  %1402 = vrot.lane.b32.xlu0 %v1399, 96
  %v1403 = vpop.permute.xlu0 %1402
  %v1405 = vmul.f32 %v1400, %v1403
  %v1406 = vmul.f32 %v1387, %v1275
  %v1407 = vadd.f32 %v1405, %v1406
  %v1408 = vadd.f32 %v1317, %v1366
  %v1409 = vxor.u32 %v1408, 2147483648
  %v1410 = vmul.f32 %v1409, 1.442695
  %v1411 = vpow.pop %v1410
  %v1412 = vadd.f32 %v1411, 1.0
  %v1413 = vrcp.pop %v1412
  %v1414 = vmul.f32 %v1412, %v1413
  %v1415 = vsub.f32 1.0, %v1414
  %v1416 = vmul.f32 %v1413, %v1415
  %v1417 = vadd.f32 %v1413, %v1416
  %vm1418 = vweird.f32 %v1412
  %vm1419 = vweird.f32 %v1413
  %vm1420 = vmor %vm1418, %vm1419
  %v1421 = vsel %vm1420, %v1413, %v1417
  %v1422 = vand.u32 2147483647, %v1412
  %vm1423 = vcmp.eq.f32.partialorder %v1422, 8.507059e+37
  %v1424 = vand.u32 %v1412, 2147483648
  %v1425 = vor.u32 1.1754944e-38, %v1424
  %v1426 = vsel %vm1423, %v1425, %v1421
  %v1427 = vmul.f32 1.0, %v1426
  %v1428 = vadd.f32 %v1366, %v1162
  %1430 = vrot.lane.b32.xlu0 %v1428, 64
  %v1431 = vpop.permute.xlu0 %1430
  %v1433 = vmul.f32 %v1427, %v1431
  %1435 = vrot.lane.b32.xlu0 %v1433, 64
  %v1436 = vpop.permute.xlu0 %1435
  %v1438 = vadd.f32 %v1317, %v1436
  %v1439 = vtanh.pop %v1438
  %v1440 = vsub.f32 1.0, %v1427
  %1442 = vrot.lane.b32.xlu0 %v1439, 96
  %v1443 = vpop.permute.xlu0 %1442
  %v1445 = vmul.f32 %v1440, %v1443
  %v1446 = vmul.f32 %v1427, %v1315
  %v1447 = vadd.f32 %v1445, %v1446
  %v1448 = vld [vmem:[#allocation2 + $0x18] sm:$0xff]
  %v1449 = vld [vmem:[%s170 + $0x8] sm:$0xff]
  %1451 = vrot.lane.b32.xlu0 %v1407, 96
  %v1452 = vpop.permute.xlu0 %1451
  %v1453 = vsel %vm190, %v1452, 0
  %1455 = vmatpush.msra.mxu0 0.0
  %1456 = vmatpush.msra.mxu0 0.0
  %1457 = vmatpush.msra.mxu0 0.0
  %1458 = vmatpush.msra.mxu0 0.0
  %1459 = vmatpush.msra.mxu0 0.0
  %1460 = vmatpush.msra.mxu0 0.0
  %1461 = vmatpush.msra.mxu0 0.0
  %1462 = vmatpush.msra.mxu0 0.0
  %1463 = vmatpush.msra.mxu0 0.0
  %1464 = vmatpush.msra.mxu0 0.0
  %1465 = vmatpush.msra.mxu0 0.0
  %1466 = vmatpush.msra.mxu0 0.0
  %1467 = vmatpush.msra.mxu0 %v1043
  %1468 = vmatpush.msra.mxu0 %v1042
  %1469 = vmatpush.msra.mxu0 %v1041
  %1470 = vmatpush.msra.mxu0 %v1040
  %1471 = vmatmul.f32.gmra.mxu0 %v1453
  %v1472 = vpop.f32.mrf.mxu0
  %v1473 = vadd.f32 0.0, %v1472
  %1474 = vdwg.mxu0
  %1476 = vrot.lane.b32.xlu0 %v1447, 96
  %v1477 = vpop.permute.xlu0 %1476
  %v1478 = vsel %vm190, %v1477, 0
  %1480 = vmatpush.msra.mxu0 0.0
  %1481 = vmatpush.msra.mxu0 0.0
  %1482 = vmatpush.msra.mxu0 0.0
  %1483 = vmatpush.msra.mxu0 0.0
  %1484 = vmatpush.msra.mxu0 0.0
  %1485 = vmatpush.msra.mxu0 0.0
  %1486 = vmatpush.msra.mxu0 0.0
  %1487 = vmatpush.msra.mxu0 0.0
  %1488 = vmatpush.msra.mxu0 0.0
  %1489 = vmatpush.msra.mxu0 0.0
  %1490 = vmatpush.msra.mxu0 0.0
  %1491 = vmatpush.msra.mxu0 0.0
  %1492 = vmatpush.msra.mxu0 %v1048
  %1493 = vmatpush.msra.mxu0 %v1047
  %1494 = vmatpush.msra.mxu0 %v1046
  %1495 = vmatpush.msra.mxu0 %v1045
  %1496 = vmatmul.f32.gmra.mxu0 %v1478
  %v1497 = vpop.f32.mrf.mxu0
  %v1498 = vadd.f32 0.0, %v1497
  %1499 = vdwg.mxu0
  %v1500 = vadd.f32 %v1448, %v1473
  %v1501 = vxor.u32 %v1500, 2147483648
  %v1502 = vmul.f32 %v1501, 1.442695
  %v1503 = vpow.pop %v1502
  %v1504 = vadd.f32 %v1503, 1.0
  %v1505 = vrcp.pop %v1504
  %v1506 = vmul.f32 %v1504, %v1505
  %v1507 = vsub.f32 1.0, %v1506
  %v1508 = vmul.f32 %v1505, %v1507
  %v1509 = vadd.f32 %v1505, %v1508
  %vm1510 = vweird.f32 %v1504
  %vm1511 = vweird.f32 %v1505
  %vm1512 = vmor %vm1510, %vm1511
  %v1513 = vsel %vm1512, %v1505, %v1509
  %v1514 = vand.u32 2147483647, %v1504
  %vm1515 = vcmp.eq.f32.partialorder %v1514, 8.507059e+37
  %v1516 = vand.u32 %v1504, 2147483648
  %v1517 = vor.u32 1.1754944e-38, %v1516
  %v1518 = vsel %vm1515, %v1517, %v1513
  %v1519 = vmul.f32 1.0, %v1518
  %v1520 = vadd.f32 %v1473, %v1117
  %1522 = vrot.lane.b32.xlu0 %v1520, 64
  %v1523 = vpop.permute.xlu0 %1522
  %v1525 = vmul.f32 %v1519, %v1523
  %1527 = vrot.lane.b32.xlu0 %v1525, 64
  %v1528 = vpop.permute.xlu0 %1527
  %v1530 = vadd.f32 %v1448, %v1528
  %v1531 = vtanh.pop %v1530
  %v1532 = vsub.f32 1.0, %v1519
  %1534 = vrot.lane.b32.xlu0 %v1531, 96
  %v1535 = vpop.permute.xlu0 %1534
  %v1537 = vmul.f32 %v1532, %v1535
  %v1538 = vmul.f32 %v1519, %v1407
  %v1539 = vadd.f32 %v1537, %v1538
  %v1540 = vadd.f32 %v1449, %v1498
  %v1541 = vxor.u32 %v1540, 2147483648
  %v1542 = vmul.f32 %v1541, 1.442695
  %v1543 = vpow.pop %v1542
  %v1544 = vadd.f32 %v1543, 1.0
  %v1545 = vrcp.pop %v1544
  %v1546 = vmul.f32 %v1544, %v1545
  %v1547 = vsub.f32 1.0, %v1546
  %v1548 = vmul.f32 %v1545, %v1547
  %v1549 = vadd.f32 %v1545, %v1548
  %vm1550 = vweird.f32 %v1544
  %vm1551 = vweird.f32 %v1545
  %vm1552 = vmor %vm1550, %vm1551
  %v1553 = vsel %vm1552, %v1545, %v1549
  %v1554 = vand.u32 2147483647, %v1544
  %vm1555 = vcmp.eq.f32.partialorder %v1554, 8.507059e+37
  %v1556 = vand.u32 %v1544, 2147483648
  %v1557 = vor.u32 1.1754944e-38, %v1556
  %v1558 = vsel %vm1555, %v1557, %v1553
  %v1559 = vmul.f32 1.0, %v1558
  %v1560 = vadd.f32 %v1498, %v1162
  %1562 = vrot.lane.b32.xlu0 %v1560, 64
  %v1563 = vpop.permute.xlu0 %1562
  %v1565 = vmul.f32 %v1559, %v1563
  %1567 = vrot.lane.b32.xlu0 %v1565, 64
  %v1568 = vpop.permute.xlu0 %1567
  %v1570 = vadd.f32 %v1449, %v1568
  %v1571 = vtanh.pop %v1570
  %v1572 = vsub.f32 1.0, %v1559
  %1574 = vrot.lane.b32.xlu0 %v1571, 96
  %v1575 = vpop.permute.xlu0 %1574
  %v1577 = vmul.f32 %v1572, %v1575
  %v1578 = vmul.f32 %v1559, %v1447
  %v1579 = vadd.f32 %v1577, %v1578
  %v1580 = vld [vmem:[#allocation2 + $0x20] sm:$0xff]
  %v1581 = vld [vmem:[%s170] sm:$0xff]
  %1583 = vrot.lane.b32.xlu0 %v1539, 96
  %v1584 = vpop.permute.xlu0 %1583
  %v1585 = vsel %vm190, %v1584, 0
  %1587 = vmatpush.msra.mxu0 0.0
  %1588 = vmatpush.msra.mxu0 0.0
  %1589 = vmatpush.msra.mxu0 0.0
  %1590 = vmatpush.msra.mxu0 0.0
  %1591 = vmatpush.msra.mxu0 0.0
  %1592 = vmatpush.msra.mxu0 0.0
  %1593 = vmatpush.msra.mxu0 0.0
  %1594 = vmatpush.msra.mxu0 0.0
  %1595 = vmatpush.msra.mxu0 0.0
  %1596 = vmatpush.msra.mxu0 0.0
  %1597 = vmatpush.msra.mxu0 0.0
  %1598 = vmatpush.msra.mxu0 0.0
  %1599 = vmatpush.msra.mxu0 %v1043
  %1600 = vmatpush.msra.mxu0 %v1042
  %1601 = vmatpush.msra.mxu0 %v1041
  %1602 = vmatpush.msra.mxu0 %v1040
  %1603 = vmatmul.f32.gmra.mxu0 %v1585
  %v1604 = vpop.f32.mrf.mxu0
  %v1605 = vadd.f32 0.0, %v1604
  %1606 = vdwg.mxu0
  %1608 = vrot.lane.b32.xlu0 %v1579, 96
  %v1609 = vpop.permute.xlu0 %1608
  %v1610 = vsel %vm190, %v1609, 0
  %1612 = vmatpush.msra.mxu0 0.0
  %1613 = vmatpush.msra.mxu0 0.0
  %1614 = vmatpush.msra.mxu0 0.0
  %1615 = vmatpush.msra.mxu0 0.0
  %1616 = vmatpush.msra.mxu0 0.0
  %1617 = vmatpush.msra.mxu0 0.0
  %1618 = vmatpush.msra.mxu0 0.0
  %1619 = vmatpush.msra.mxu0 0.0
  %1620 = vmatpush.msra.mxu0 0.0
  %1621 = vmatpush.msra.mxu0 0.0
  %1622 = vmatpush.msra.mxu0 0.0
  %1623 = vmatpush.msra.mxu0 0.0
  %1624 = vmatpush.msra.mxu0 %v1048
  %1625 = vmatpush.msra.mxu0 %v1047
  %1626 = vmatpush.msra.mxu0 %v1046
  %1627 = vmatpush.msra.mxu0 %v1045
  %1628 = vmatmul.f32.gmra.mxu0 %v1610
  %v1629 = vpop.f32.mrf.mxu0
  %v1630 = vadd.f32 0.0, %v1629
  %1631 = vdwg.mxu0
  %v1632 = vadd.f32 %v1580, %v1605
  %v1633 = vxor.u32 %v1632, 2147483648
  %v1634 = vmul.f32 %v1633, 1.442695
  %v1635 = vpow.pop %v1634
  %v1636 = vadd.f32 %v1635, 1.0
  %v1637 = vrcp.pop %v1636
  %v1638 = vmul.f32 %v1636, %v1637
  %v1639 = vsub.f32 1.0, %v1638
  %v1640 = vmul.f32 %v1637, %v1639
  %v1641 = vadd.f32 %v1637, %v1640
  %vm1642 = vweird.f32 %v1636
  %vm1643 = vweird.f32 %v1637
  %vm1644 = vmor %vm1642, %vm1643
  %v1645 = vsel %vm1644, %v1637, %v1641
  %v1646 = vand.u32 2147483647, %v1636
  %vm1647 = vcmp.eq.f32.partialorder %v1646, 8.507059e+37
  %v1648 = vand.u32 %v1636, 2147483648
  %v1649 = vor.u32 1.1754944e-38, %v1648
  %v1650 = vsel %vm1647, %v1649, %v1645
  %v1651 = vmul.f32 1.0, %v1650
  %v1652 = vadd.f32 %v1605, %v1117
  %1654 = vrot.lane.b32.xlu0 %v1652, 64
  %v1655 = vpop.permute.xlu0 %1654
  %v1657 = vmul.f32 %v1651, %v1655
  %1659 = vrot.lane.b32.xlu0 %v1657, 64
  %v1660 = vpop.permute.xlu0 %1659
  %v1662 = vadd.f32 %v1580, %v1660
  %v1663 = vtanh.pop %v1662
  %v1664 = vsub.f32 1.0, %v1651
  %1666 = vrot.lane.b32.xlu0 %v1663, 96
  %v1667 = vpop.permute.xlu0 %1666
  %v1669 = vmul.f32 %v1664, %v1667
  %v1670 = vmul.f32 %v1651, %v1539
  %v1671 = vadd.f32 %v1669, %v1670
  %v1672 = vadd.f32 %v1581, %v1630
  %v1673 = vxor.u32 %v1672, 2147483648
  %v1674 = vmul.f32 %v1673, 1.442695
  %v1675 = vpow.pop %v1674
  %v1676 = vadd.f32 %v1675, 1.0
  %v1677 = vrcp.pop %v1676
  %v1678 = vmul.f32 %v1676, %v1677
  %v1679 = vsub.f32 1.0, %v1678
  %v1680 = vmul.f32 %v1677, %v1679
  %v1681 = vadd.f32 %v1677, %v1680
  %vm1682 = vweird.f32 %v1676
  %vm1683 = vweird.f32 %v1677
  %vm1684 = vmor %vm1682, %vm1683
  %v1685 = vsel %vm1684, %v1677, %v1681
  %v1686 = vand.u32 2147483647, %v1676
  %vm1687 = vcmp.eq.f32.partialorder %v1686, 8.507059e+37
  %v1688 = vand.u32 %v1676, 2147483648
  %v1689 = vor.u32 1.1754944e-38, %v1688
  %v1690 = vsel %vm1687, %v1689, %v1685
  %v1691 = vmul.f32 1.0, %v1690
  %v1692 = vadd.f32 %v1630, %v1162
  %1694 = vrot.lane.b32.xlu0 %v1692, 64
  %v1695 = vpop.permute.xlu0 %1694
  %v1697 = vmul.f32 %v1691, %v1695
  %1699 = vrot.lane.b32.xlu0 %v1697, 64
  %v1700 = vpop.permute.xlu0 %1699
  %v1702 = vadd.f32 %v1581, %v1700
  %v1703 = vtanh.pop %v1702
  %v1704 = vsub.f32 1.0, %v1691
  %1706 = vrot.lane.b32.xlu0 %v1703, 96
  %v1707 = vpop.permute.xlu0 %1706
  %v1709 = vmul.f32 %v1704, %v1707
  %v1710 = vmul.f32 %v1691, %v1579
  %v1711 = vadd.f32 %v1709, %v1710
  %1713 = vrot.lane.b32.xlu0 %v1671, 96
  %v1714 = vpop.permute.xlu0 %1713
  %1716 = vmatpush.msra.mxu0 0.0
  %1717 = vmatpush.msra.mxu0 0.0
  %1718 = vmatpush.msra.mxu0 0.0
  %1719 = vmatpush.msra.mxu0 0.0
  %1720 = vmatpush.msra.mxu0 0.0
  %1721 = vmatpush.msra.mxu0 0.0
  %1722 = vmatpush.msra.mxu0 0.0
  %1723 = vmatpush.msra.mxu0 0.0
  %1724 = vmatpush.msra.mxu0 0.0
  %1725 = vmatpush.msra.mxu0 0.0
  %1726 = vmatpush.msra.mxu0 0.0
  %1727 = vmatpush.msra.mxu0 0.0
  %1728 = vmatpush.msra.mxu0 0.0
  %1729 = vmatpush.msra.mxu0 0.0
  %1730 = vmatpush.msra.mxu0 0.0
  %1731 = vmatpush.msra.mxu0 %v1714
  %1732 = vmatmul.f32.gmra.mxu0 %v873
  %v1733 = vpop.f32.mrf.mxu0
  %v1734 = vadd.f32 0.0, %v1733
  %1735 = vdwg.mxu0
  %1737 = vrot.lane.b32.xlu0 %v1711, 96
  %v1738 = vpop.permute.xlu0 %1737
  %1740 = vmatpush.msra.mxu0 0.0
  %1741 = vmatpush.msra.mxu0 0.0
  %1742 = vmatpush.msra.mxu0 0.0
  %1743 = vmatpush.msra.mxu0 0.0
  %1744 = vmatpush.msra.mxu0 0.0
  %1745 = vmatpush.msra.mxu0 0.0
  %1746 = vmatpush.msra.mxu0 0.0
  %1747 = vmatpush.msra.mxu0 0.0
  %1748 = vmatpush.msra.mxu0 0.0
  %1749 = vmatpush.msra.mxu0 0.0
  %1750 = vmatpush.msra.mxu0 0.0
  %1751 = vmatpush.msra.mxu0 0.0
  %1752 = vmatpush.msra.mxu0 0.0
  %1753 = vmatpush.msra.mxu0 0.0
  %1754 = vmatpush.msra.mxu0 0.0
  %1755 = vmatpush.msra.mxu0 %v1738
  %1756 = vmatmul.f32.gmra.mxu0 %v873
  %v1757 = vpop.f32.mrf.mxu0
  %v1758 = vadd.f32 0.0, %v1757
  %1759 = vdwg.mxu0
  %v1760 = vld [vmem:[%s2] sm:$0xff]
  %v1761 = vld [vmem:[%s2 + $0x8] sm:$0xff]
  %v1762 = vld [vmem:[%s2 + $0x10] sm:$0xff]
  %v1763 = vld [vmem:[%s2 + $0x18] sm:$0xff]
  %v1764 = vld [vmem:[%s11] sm:$0xff]
  %v1765 = vld [vmem:[%s11 + $0x8] sm:$0xff]
  %v1766 = vld [vmem:[%s11 + $0x10] sm:$0xff]
  %v1767 = vld [vmem:[%s12] sm:$0x1]
  %v1769 = vperm.slane %v1767, 0
  %v1772 = vsel %vm75, %v1760, 0
  %v1775 = vsel %vm75, %v1761, 0
  %v1778 = vsel %vm75, %v1762, 0
  %v1781 = vsel %vm75, %v1763, 0
  %1783 = vmatpush.msra.mxu0 0.0
  %1784 = vmatpush.msra.mxu0 0.0
  %1785 = vmatpush.msra.mxu0 0.0
  %1786 = vmatpush.msra.mxu0 0.0
  %1787 = vmatpush.msra.mxu0 0.0
  %1788 = vmatpush.msra.mxu0 0.0
  %1789 = vmatpush.msra.mxu0 0.0
  %1790 = vmatpush.msra.mxu0 0.0
  %1791 = vmatpush.msra.mxu0 0.0
  %1792 = vmatpush.msra.mxu0 0.0
  %1793 = vmatpush.msra.mxu0 0.0
  %1794 = vmatpush.msra.mxu0 0.0
  %1795 = vmatpush.msra.mxu0 0.0
  %1796 = vmatpush.msra.mxu0 %v1766
  %1797 = vmatpush.msra.mxu0 %v1765
  %1798 = vmatpush.msra.mxu0 %v1764
  %1799 = vmatmul.f32.gmra.mxu0 %v1772
  %v1800 = vpop.f32.mrf.mxu0
  %v1801 = vadd.f32 %v1769, %v1800
  %1802 = vmatmul.f32.gmra.mxu0 %v1775
  %v1803 = vpop.f32.mrf.mxu0
  %v1804 = vadd.f32 %v1769, %v1803
  %1805 = vmatmul.f32.gmra.mxu0 %v1778
  %v1806 = vpop.f32.mrf.mxu0
  %v1807 = vadd.f32 %v1769, %v1806
  %1808 = vmatmul.f32.gmra.mxu0 %v1781
  %v1809 = vpop.f32.mrf.mxu0
  %v1810 = vadd.f32 %v1769, %v1809
  %1811 = vdwg.mxu0
  %1812 = vst.msk [vmem:[#allocation2] sm:$0xff] %vm123, %v1801
  %1813 = vst.msk [vmem:[#allocation2 + $0x8] sm:$0xff] %vm123, %v1804
  %1814 = vst.msk [vmem:[#allocation2 + $0x10] sm:$0xff] %vm123, %v1807
  %1815 = vst.msk [vmem:[#allocation2 + $0x18] sm:$0xff] %vm123, %v1810
  %s1816 = scalar_lea.vmem %s11, 24
  %v1817 = vld [vmem:[%s1816] sm:$0xff]
  %v1818 = vld [vmem:[%s1816 + $0x8] sm:$0xff]
  %v1819 = vld [vmem:[%s1816 + $0x10] sm:$0xff]
  %s1820 = scalar_lea.vmem %s12, 1
  %v1821 = vld [vmem:[%s1820] sm:$0x1]
  %v1823 = vperm.slane %v1821, 0
  %1825 = vmatpush.msra.mxu0 0.0
  %1826 = vmatpush.msra.mxu0 0.0
  %1827 = vmatpush.msra.mxu0 0.0
  %1828 = vmatpush.msra.mxu0 0.0
  %1829 = vmatpush.msra.mxu0 0.0
  %1830 = vmatpush.msra.mxu0 0.0
  %1831 = vmatpush.msra.mxu0 0.0
  %1832 = vmatpush.msra.mxu0 0.0
  %1833 = vmatpush.msra.mxu0 0.0
  %1834 = vmatpush.msra.mxu0 0.0
  %1835 = vmatpush.msra.mxu0 0.0
  %1836 = vmatpush.msra.mxu0 0.0
  %1837 = vmatpush.msra.mxu0 0.0
  %1838 = vmatpush.msra.mxu0 %v1819
  %1839 = vmatpush.msra.mxu0 %v1818
  %1840 = vmatpush.msra.mxu0 %v1817
  %1841 = vmatmul.f32.gmra.mxu0 %v1772
  %v1842 = vpop.f32.mrf.mxu0
  %v1843 = vadd.f32 %v1823, %v1842
  %1844 = vmatmul.f32.gmra.mxu0 %v1775
  %v1845 = vpop.f32.mrf.mxu0
  %v1846 = vadd.f32 %v1823, %v1845
  %1847 = vmatmul.f32.gmra.mxu0 %v1778
  %v1848 = vpop.f32.mrf.mxu0
  %v1849 = vadd.f32 %v1823, %v1848
  %1850 = vmatmul.f32.gmra.mxu0 %v1781
  %v1851 = vpop.f32.mrf.mxu0
  %v1852 = vadd.f32 %v1823, %v1851
  %1853 = vdwg.mxu0
  %1854 = vst.msk [vmem:[%s170] sm:$0xff] %vm123, %v1843
  %1855 = vst.msk [vmem:[%s170 + $0x8] sm:$0xff] %vm123, %v1846
  %1856 = vst.msk [vmem:[%s170 + $0x10] sm:$0xff] %vm123, %v1849
  %1857 = vst.msk [vmem:[%s170 + $0x18] sm:$0xff] %vm123, %v1852
  %v1858 = vld [vmem:[%s13] sm:$0xff]
  %v1859 = vld [vmem:[%s13 + $0x8] sm:$0xff]
  %v1860 = vld [vmem:[%s13 + $0x10] sm:$0xff]
  %v1861 = vld [vmem:[%s13 + $0x18] sm:$0xff]
  %s1862 = scalar_lea.vmem %s13, 32
  %v1863 = vld [vmem:[%s1862] sm:$0xff]
  %v1864 = vld [vmem:[%s1862 + $0x8] sm:$0xff]
  %v1865 = vld [vmem:[%s1862 + $0x10] sm:$0xff]
  %v1866 = vld [vmem:[%s1862 + $0x18] sm:$0xff]
  %v1867 = vld [vmem:[%s14] sm:$0x1]
  %s1868 = scalar_lea.vmem %s14, 1
  %v1869 = vld [vmem:[%s1868] sm:$0x1]
  %v1870 = vld [vmem:[#allocation2] sm:$0xff]
  %v1871 = vld [vmem:[%s170 + $0x18] sm:$0xff]
  %v1873 = vsel %vm190, %v893, 0
  %1875 = vmatpush.msra.mxu0 0.0
  %1876 = vmatpush.msra.mxu0 0.0
  %1877 = vmatpush.msra.mxu0 0.0
  %1878 = vmatpush.msra.mxu0 0.0
  %1879 = vmatpush.msra.mxu0 0.0
  %1880 = vmatpush.msra.mxu0 0.0
  %1881 = vmatpush.msra.mxu0 0.0
  %1882 = vmatpush.msra.mxu0 0.0
  %1883 = vmatpush.msra.mxu0 0.0
  %1884 = vmatpush.msra.mxu0 0.0
  %1885 = vmatpush.msra.mxu0 0.0
  %1886 = vmatpush.msra.mxu0 0.0
  %1887 = vmatpush.msra.mxu0 %v1861
  %1888 = vmatpush.msra.mxu0 %v1860
  %1889 = vmatpush.msra.mxu0 %v1859
  %1890 = vmatpush.msra.mxu0 %v1858
  %1891 = vmatmul.f32.gmra.mxu0 %v1873
  %v1892 = vpop.f32.mrf.mxu0
  %v1893 = vadd.f32 0.0, %v1892
  %1894 = vdwg.mxu0
  %v1896 = vsel %vm190, %v917, 0
  %1898 = vmatpush.msra.mxu0 0.0
  %1899 = vmatpush.msra.mxu0 0.0
  %1900 = vmatpush.msra.mxu0 0.0
  %1901 = vmatpush.msra.mxu0 0.0
  %1902 = vmatpush.msra.mxu0 0.0
  %1903 = vmatpush.msra.mxu0 0.0
  %1904 = vmatpush.msra.mxu0 0.0
  %1905 = vmatpush.msra.mxu0 0.0
  %1906 = vmatpush.msra.mxu0 0.0
  %1907 = vmatpush.msra.mxu0 0.0
  %1908 = vmatpush.msra.mxu0 0.0
  %1909 = vmatpush.msra.mxu0 0.0
  %1910 = vmatpush.msra.mxu0 %v1866
  %1911 = vmatpush.msra.mxu0 %v1865
  %1912 = vmatpush.msra.mxu0 %v1864
  %1913 = vmatpush.msra.mxu0 %v1863
  %1914 = vmatmul.f32.gmra.mxu0 %v1896
  %v1915 = vpop.f32.mrf.mxu0
  %v1916 = vadd.f32 0.0, %v1915
  %1917 = vdwg.mxu0
  %v1918 = vadd.f32 %v1870, %v1893
  %v1919 = vxor.u32 %v1918, 2147483648
  %v1920 = vmul.f32 %v1919, 1.442695
  %v1921 = vpow.pop %v1920
  %v1922 = vadd.f32 %v1921, 1.0
  %v1923 = vrcp.pop %v1922
  %v1924 = vmul.f32 %v1922, %v1923
  %v1925 = vsub.f32 1.0, %v1924
  %v1926 = vmul.f32 %v1923, %v1925
  %v1927 = vadd.f32 %v1923, %v1926
  %vm1928 = vweird.f32 %v1922
  %vm1929 = vweird.f32 %v1923
  %vm1930 = vmor %vm1928, %vm1929
  %v1931 = vsel %vm1930, %v1923, %v1927
  %v1932 = vand.u32 2147483647, %v1922
  %vm1933 = vcmp.eq.f32.partialorder %v1932, 8.507059e+37
  %v1934 = vand.u32 %v1922, 2147483648
  %v1935 = vor.u32 1.1754944e-38, %v1934
  %v1936 = vsel %vm1933, %v1935, %v1931
  %v1937 = vmul.f32 1.0, %v1936
  %v1939 = vperm.slane %v1867, 0
  %1940 = vrot.lane.b32.xlu0 %v1939, 64
  %v1941 = vpop.permute.xlu0 %1940
  %v1943 = vadd.f32 %v1893, %v1941
  %1945 = vrot.lane.b32.xlu0 %v1943, 64
  %v1946 = vpop.permute.xlu0 %1945
  %v1948 = vmul.f32 %v1937, %v1946
  %1950 = vrot.lane.b32.xlu0 %v1948, 64
  %v1951 = vpop.permute.xlu0 %1950
  %v1953 = vadd.f32 %v1870, %v1951
  %v1954 = vtanh.pop %v1953
  %v1955 = vsub.f32 1.0, %v1937
  %1957 = vrot.lane.b32.xlu0 %v1954, 96
  %v1958 = vpop.permute.xlu0 %1957
  %v1960 = vmul.f32 %v1955, %v1958
  %1961 = vrot.lane.b32.xlu0 %v893, 32
  %v1962 = vpop.permute.xlu0 %1961
  %v1964 = vmul.f32 %v1937, %v1962
  %v1965 = vadd.f32 %v1960, %v1964
  %v1966 = vadd.f32 %v1871, %v1916
  %v1967 = vxor.u32 %v1966, 2147483648
  %v1968 = vmul.f32 %v1967, 1.442695
  %v1969 = vpow.pop %v1968
  %v1970 = vadd.f32 %v1969, 1.0
  %v1971 = vrcp.pop %v1970
  %v1972 = vmul.f32 %v1970, %v1971
  %v1973 = vsub.f32 1.0, %v1972
  %v1974 = vmul.f32 %v1971, %v1973
  %v1975 = vadd.f32 %v1971, %v1974
  %vm1976 = vweird.f32 %v1970
  %vm1977 = vweird.f32 %v1971
  %vm1978 = vmor %vm1976, %vm1977
  %v1979 = vsel %vm1978, %v1971, %v1975
  %v1980 = vand.u32 2147483647, %v1970
  %vm1981 = vcmp.eq.f32.partialorder %v1980, 8.507059e+37
  %v1982 = vand.u32 %v1970, 2147483648
  %v1983 = vor.u32 1.1754944e-38, %v1982
  %v1984 = vsel %vm1981, %v1983, %v1979
  %v1985 = vmul.f32 1.0, %v1984
  %v1987 = vperm.slane %v1869, 0
  %1988 = vrot.lane.b32.xlu0 %v1987, 64
  %v1989 = vpop.permute.xlu0 %1988
  %v1991 = vadd.f32 %v1916, %v1989
  %1993 = vrot.lane.b32.xlu0 %v1991, 64
  %v1994 = vpop.permute.xlu0 %1993
  %v1996 = vmul.f32 %v1985, %v1994
  %1998 = vrot.lane.b32.xlu0 %v1996, 64
  %v1999 = vpop.permute.xlu0 %1998
  %v2001 = vadd.f32 %v1871, %v1999
  %v2002 = vtanh.pop %v2001
  %v2003 = vsub.f32 1.0, %v1985
  %2005 = vrot.lane.b32.xlu0 %v2002, 96
  %v2006 = vpop.permute.xlu0 %2005
  %v2008 = vmul.f32 %v2003, %v2006
  %2009 = vrot.lane.b32.xlu0 %v917, 32
  %v2010 = vpop.permute.xlu0 %2009
  %v2012 = vmul.f32 %v1985, %v2010
  %v2013 = vadd.f32 %v2008, %v2012
  %2015 = vrot.lane.b32.xlu0 %v1965, 96
  %v2016 = vpop.permute.xlu0 %2015
  %2018 = vst.msk [vmem:[#allocation3] sm:$0xff] %vm190, %v2016
  %2019 = vst.msk [vmem:[#allocation3 + $0x18] sm:$0xff] %vm329, %v2013
  %v2020 = vld [vmem:[#allocation2 + $0x8] sm:$0xff]
  %v2021 = vld [vmem:[%s170 + $0x10] sm:$0xff]
  %v2022 = vsel %vm190, %v2016, 0
  %2024 = vmatpush.msra.mxu0 0.0
  %2025 = vmatpush.msra.mxu0 0.0
  %2026 = vmatpush.msra.mxu0 0.0
  %2027 = vmatpush.msra.mxu0 0.0
  %2028 = vmatpush.msra.mxu0 0.0
  %2029 = vmatpush.msra.mxu0 0.0
  %2030 = vmatpush.msra.mxu0 0.0
  %2031 = vmatpush.msra.mxu0 0.0
  %2032 = vmatpush.msra.mxu0 0.0
  %2033 = vmatpush.msra.mxu0 0.0
  %2034 = vmatpush.msra.mxu0 0.0
  %2035 = vmatpush.msra.mxu0 0.0
  %2036 = vmatpush.msra.mxu0 %v1861
  %2037 = vmatpush.msra.mxu0 %v1860
  %2038 = vmatpush.msra.mxu0 %v1859
  %2039 = vmatpush.msra.mxu0 %v1858
  %2040 = vmatmul.f32.gmra.mxu0 %v2022
  %v2041 = vpop.f32.mrf.mxu0
  %v2042 = vadd.f32 0.0, %v2041
  %2043 = vdwg.mxu0
  %2045 = vrot.lane.b32.xlu0 %v2013, 96
  %v2046 = vpop.permute.xlu0 %2045
  %v2047 = vsel %vm190, %v2046, 0
  %2049 = vmatpush.msra.mxu0 0.0
  %2050 = vmatpush.msra.mxu0 0.0
  %2051 = vmatpush.msra.mxu0 0.0
  %2052 = vmatpush.msra.mxu0 0.0
  %2053 = vmatpush.msra.mxu0 0.0
  %2054 = vmatpush.msra.mxu0 0.0
  %2055 = vmatpush.msra.mxu0 0.0
  %2056 = vmatpush.msra.mxu0 0.0
  %2057 = vmatpush.msra.mxu0 0.0
  %2058 = vmatpush.msra.mxu0 0.0
  %2059 = vmatpush.msra.mxu0 0.0
  %2060 = vmatpush.msra.mxu0 0.0
  %2061 = vmatpush.msra.mxu0 %v1866
  %2062 = vmatpush.msra.mxu0 %v1865
  %2063 = vmatpush.msra.mxu0 %v1864
  %2064 = vmatpush.msra.mxu0 %v1863
  %2065 = vmatmul.f32.gmra.mxu0 %v2047
  %v2066 = vpop.f32.mrf.mxu0
  %v2067 = vadd.f32 0.0, %v2066
  %2068 = vdwg.mxu0
  %v2069 = vadd.f32 %v2020, %v2042
  %v2070 = vxor.u32 %v2069, 2147483648
  %v2071 = vmul.f32 %v2070, 1.442695
  %v2072 = vpow.pop %v2071
  %v2073 = vadd.f32 %v2072, 1.0
  %v2074 = vrcp.pop %v2073
  %v2075 = vmul.f32 %v2073, %v2074
  %v2076 = vsub.f32 1.0, %v2075
  %v2077 = vmul.f32 %v2074, %v2076
  %v2078 = vadd.f32 %v2074, %v2077
  %vm2079 = vweird.f32 %v2073
  %vm2080 = vweird.f32 %v2074
  %vm2081 = vmor %vm2079, %vm2080
  %v2082 = vsel %vm2081, %v2074, %v2078
  %v2083 = vand.u32 2147483647, %v2073
  %vm2084 = vcmp.eq.f32.partialorder %v2083, 8.507059e+37
  %v2085 = vand.u32 %v2073, 2147483648
  %v2086 = vor.u32 1.1754944e-38, %v2085
  %v2087 = vsel %vm2084, %v2086, %v2082
  %v2088 = vmul.f32 1.0, %v2087
  %v2089 = vadd.f32 %v2042, %v1941
  %2091 = vrot.lane.b32.xlu0 %v2089, 64
  %v2092 = vpop.permute.xlu0 %2091
  %v2094 = vmul.f32 %v2088, %v2092
  %2096 = vrot.lane.b32.xlu0 %v2094, 64
  %v2097 = vpop.permute.xlu0 %2096
  %v2099 = vadd.f32 %v2020, %v2097
  %v2100 = vtanh.pop %v2099
  %v2101 = vsub.f32 1.0, %v2088
  %2103 = vrot.lane.b32.xlu0 %v2100, 96
  %v2104 = vpop.permute.xlu0 %2103
  %v2106 = vmul.f32 %v2101, %v2104
  %v2107 = vmul.f32 %v2088, %v1965
  %v2108 = vadd.f32 %v2106, %v2107
  %v2109 = vadd.f32 %v2021, %v2067
  %v2110 = vxor.u32 %v2109, 2147483648
  %v2111 = vmul.f32 %v2110, 1.442695
  %v2112 = vpow.pop %v2111
  %v2113 = vadd.f32 %v2112, 1.0
  %v2114 = vrcp.pop %v2113
  %v2115 = vmul.f32 %v2113, %v2114
  %v2116 = vsub.f32 1.0, %v2115
  %v2117 = vmul.f32 %v2114, %v2116
  %v2118 = vadd.f32 %v2114, %v2117
  %vm2119 = vweird.f32 %v2113
  %vm2120 = vweird.f32 %v2114
  %vm2121 = vmor %vm2119, %vm2120
  %v2122 = vsel %vm2121, %v2114, %v2118
  %v2123 = vand.u32 2147483647, %v2113
  %vm2124 = vcmp.eq.f32.partialorder %v2123, 8.507059e+37
  %v2125 = vand.u32 %v2113, 2147483648
  %v2126 = vor.u32 1.1754944e-38, %v2125
  %v2127 = vsel %vm2124, %v2126, %v2122
  %v2128 = vmul.f32 1.0, %v2127
  %v2129 = vadd.f32 %v2067, %v1989
  %2131 = vrot.lane.b32.xlu0 %v2129, 64
  %v2132 = vpop.permute.xlu0 %2131
  %v2134 = vmul.f32 %v2128, %v2132
  %2136 = vrot.lane.b32.xlu0 %v2134, 64
  %v2137 = vpop.permute.xlu0 %2136
  %v2139 = vadd.f32 %v2021, %v2137
  %v2140 = vtanh.pop %v2139
  %v2141 = vsub.f32 1.0, %v2128
  %2143 = vrot.lane.b32.xlu0 %v2140, 96
  %v2144 = vpop.permute.xlu0 %2143
  %v2146 = vmul.f32 %v2141, %v2144
  %v2147 = vmul.f32 %v2128, %v2013
  %v2148 = vadd.f32 %v2146, %v2147
  %2150 = vrot.lane.b32.xlu0 %v2108, 96
  %v2151 = vpop.permute.xlu0 %2150
  %2153 = vst.msk [vmem:[#allocation3 + $0x8] sm:$0xff] %vm190, %v2151
  %2154 = vst.msk [vmem:[#allocation3 + $0x10] sm:$0xff] %vm329, %v2148
  %v2155 = vld [vmem:[#allocation2 + $0x10] sm:$0xff]
  %v2156 = vld [vmem:[%s170 + $0x8] sm:$0xff]
  %v2157 = vsel %vm190, %v2151, 0
  %2159 = vmatpush.msra.mxu0 0.0
  %2160 = vmatpush.msra.mxu0 0.0
  %2161 = vmatpush.msra.mxu0 0.0
  %2162 = vmatpush.msra.mxu0 0.0
  %2163 = vmatpush.msra.mxu0 0.0
  %2164 = vmatpush.msra.mxu0 0.0
  %2165 = vmatpush.msra.mxu0 0.0
  %2166 = vmatpush.msra.mxu0 0.0
  %2167 = vmatpush.msra.mxu0 0.0
  %2168 = vmatpush.msra.mxu0 0.0
  %2169 = vmatpush.msra.mxu0 0.0
  %2170 = vmatpush.msra.mxu0 0.0
  %2171 = vmatpush.msra.mxu0 %v1861
  %2172 = vmatpush.msra.mxu0 %v1860
  %2173 = vmatpush.msra.mxu0 %v1859
  %2174 = vmatpush.msra.mxu0 %v1858
  %2175 = vmatmul.f32.gmra.mxu0 %v2157
  %v2176 = vpop.f32.mrf.mxu0
  %v2177 = vadd.f32 0.0, %v2176
  %2178 = vdwg.mxu0
  %2180 = vrot.lane.b32.xlu0 %v2148, 96
  %v2181 = vpop.permute.xlu0 %2180
  %v2182 = vsel %vm190, %v2181, 0
  %2184 = vmatpush.msra.mxu0 0.0
  %2185 = vmatpush.msra.mxu0 0.0
  %2186 = vmatpush.msra.mxu0 0.0
  %2187 = vmatpush.msra.mxu0 0.0
  %2188 = vmatpush.msra.mxu0 0.0
  %2189 = vmatpush.msra.mxu0 0.0
  %2190 = vmatpush.msra.mxu0 0.0
  %2191 = vmatpush.msra.mxu0 0.0
  %2192 = vmatpush.msra.mxu0 0.0
  %2193 = vmatpush.msra.mxu0 0.0
  %2194 = vmatpush.msra.mxu0 0.0
  %2195 = vmatpush.msra.mxu0 0.0
  %2196 = vmatpush.msra.mxu0 %v1866
  %2197 = vmatpush.msra.mxu0 %v1865
  %2198 = vmatpush.msra.mxu0 %v1864
  %2199 = vmatpush.msra.mxu0 %v1863
  %2200 = vmatmul.f32.gmra.mxu0 %v2182
  %v2201 = vpop.f32.mrf.mxu0
  %v2202 = vadd.f32 0.0, %v2201
  %2203 = vdwg.mxu0
  %v2204 = vadd.f32 %v2155, %v2177
  %v2205 = vxor.u32 %v2204, 2147483648
  %v2206 = vmul.f32 %v2205, 1.442695
  %v2207 = vpow.pop %v2206
  %v2208 = vadd.f32 %v2207, 1.0
  %v2209 = vrcp.pop %v2208
  %v2210 = vmul.f32 %v2208, %v2209
  %v2211 = vsub.f32 1.0, %v2210
  %v2212 = vmul.f32 %v2209, %v2211
  %v2213 = vadd.f32 %v2209, %v2212
  %vm2214 = vweird.f32 %v2208
  %vm2215 = vweird.f32 %v2209
  %vm2216 = vmor %vm2214, %vm2215
  %v2217 = vsel %vm2216, %v2209, %v2213
  %v2218 = vand.u32 2147483647, %v2208
  %vm2219 = vcmp.eq.f32.partialorder %v2218, 8.507059e+37
  %v2220 = vand.u32 %v2208, 2147483648
  %v2221 = vor.u32 1.1754944e-38, %v2220
  %v2222 = vsel %vm2219, %v2221, %v2217
  %v2223 = vmul.f32 1.0, %v2222
  %v2224 = vadd.f32 %v2177, %v1941
  %2226 = vrot.lane.b32.xlu0 %v2224, 64
  %v2227 = vpop.permute.xlu0 %2226
  %v2229 = vmul.f32 %v2223, %v2227
  %2231 = vrot.lane.b32.xlu0 %v2229, 64
  %v2232 = vpop.permute.xlu0 %2231
  %v2234 = vadd.f32 %v2155, %v2232
  %v2235 = vtanh.pop %v2234
  %v2236 = vsub.f32 1.0, %v2223
  %2238 = vrot.lane.b32.xlu0 %v2235, 96
  %v2239 = vpop.permute.xlu0 %2238
  %v2241 = vmul.f32 %v2236, %v2239
  %v2242 = vmul.f32 %v2223, %v2108
  %v2243 = vadd.f32 %v2241, %v2242
  %v2244 = vadd.f32 %v2156, %v2202
  %v2245 = vxor.u32 %v2244, 2147483648
  %v2246 = vmul.f32 %v2245, 1.442695
  %v2247 = vpow.pop %v2246
  %v2248 = vadd.f32 %v2247, 1.0
  %v2249 = vrcp.pop %v2248
  %v2250 = vmul.f32 %v2248, %v2249
  %v2251 = vsub.f32 1.0, %v2250
  %v2252 = vmul.f32 %v2249, %v2251
  %v2253 = vadd.f32 %v2249, %v2252
  %vm2254 = vweird.f32 %v2248
  %vm2255 = vweird.f32 %v2249
  %vm2256 = vmor %vm2254, %vm2255
  %v2257 = vsel %vm2256, %v2249, %v2253
  %v2258 = vand.u32 2147483647, %v2248
  %vm2259 = vcmp.eq.f32.partialorder %v2258, 8.507059e+37
  %v2260 = vand.u32 %v2248, 2147483648
  %v2261 = vor.u32 1.1754944e-38, %v2260
  %v2262 = vsel %vm2259, %v2261, %v2257
  %v2263 = vmul.f32 1.0, %v2262
  %v2264 = vadd.f32 %v2202, %v1989
  %2266 = vrot.lane.b32.xlu0 %v2264, 64
  %v2267 = vpop.permute.xlu0 %2266
  %v2269 = vmul.f32 %v2263, %v2267
  %2271 = vrot.lane.b32.xlu0 %v2269, 64
  %v2272 = vpop.permute.xlu0 %2271
  %v2274 = vadd.f32 %v2156, %v2272
  %v2275 = vtanh.pop %v2274
  %v2276 = vsub.f32 1.0, %v2263
  %2278 = vrot.lane.b32.xlu0 %v2275, 96
  %v2279 = vpop.permute.xlu0 %2278
  %v2281 = vmul.f32 %v2276, %v2279
  %v2282 = vmul.f32 %v2263, %v2148
  %v2283 = vadd.f32 %v2281, %v2282
  %2285 = vrot.lane.b32.xlu0 %v2243, 96
  %v2286 = vpop.permute.xlu0 %2285
  %2288 = vst.msk [vmem:[#allocation3 + $0x10] sm:$0xff] %vm190, %v2286
  %2289 = vst.msk [vmem:[#allocation3 + $0x8] sm:$0xff] %vm329, %v2283
  %v2290 = vld [vmem:[#allocation2 + $0x18] sm:$0xff]
  %v2291 = vld [vmem:[%s170] sm:$0xff]
  %v2292 = vsel %vm190, %v2286, 0
  %2294 = vmatpush.msra.mxu0 0.0
  %2295 = vmatpush.msra.mxu0 0.0
  %2296 = vmatpush.msra.mxu0 0.0
  %2297 = vmatpush.msra.mxu0 0.0
  %2298 = vmatpush.msra.mxu0 0.0
  %2299 = vmatpush.msra.mxu0 0.0
  %2300 = vmatpush.msra.mxu0 0.0
  %2301 = vmatpush.msra.mxu0 0.0
  %2302 = vmatpush.msra.mxu0 0.0
  %2303 = vmatpush.msra.mxu0 0.0
  %2304 = vmatpush.msra.mxu0 0.0
  %2305 = vmatpush.msra.mxu0 0.0
  %2306 = vmatpush.msra.mxu0 %v1861
  %2307 = vmatpush.msra.mxu0 %v1860
  %2308 = vmatpush.msra.mxu0 %v1859
  %2309 = vmatpush.msra.mxu0 %v1858
  %2310 = vmatmul.f32.gmra.mxu0 %v2292
  %v2311 = vpop.f32.mrf.mxu0
  %v2312 = vadd.f32 0.0, %v2311
  %2313 = vdwg.mxu0
  %2315 = vrot.lane.b32.xlu0 %v2283, 96
  %v2316 = vpop.permute.xlu0 %2315
  %v2317 = vsel %vm190, %v2316, 0
  %2319 = vmatpush.msra.mxu0 0.0
  %2320 = vmatpush.msra.mxu0 0.0
  %2321 = vmatpush.msra.mxu0 0.0
  %2322 = vmatpush.msra.mxu0 0.0
  %2323 = vmatpush.msra.mxu0 0.0
  %2324 = vmatpush.msra.mxu0 0.0
  %2325 = vmatpush.msra.mxu0 0.0
  %2326 = vmatpush.msra.mxu0 0.0
  %2327 = vmatpush.msra.mxu0 0.0
  %2328 = vmatpush.msra.mxu0 0.0
  %2329 = vmatpush.msra.mxu0 0.0
  %2330 = vmatpush.msra.mxu0 0.0
  %2331 = vmatpush.msra.mxu0 %v1866
  %2332 = vmatpush.msra.mxu0 %v1865
  %2333 = vmatpush.msra.mxu0 %v1864
  %2334 = vmatpush.msra.mxu0 %v1863
  %2335 = vmatmul.f32.gmra.mxu0 %v2317
  %v2336 = vpop.f32.mrf.mxu0
  %v2337 = vadd.f32 0.0, %v2336
  %2338 = vdwg.mxu0
  %v2339 = vadd.f32 %v2290, %v2312
  %v2340 = vxor.u32 %v2339, 2147483648
  %v2341 = vmul.f32 %v2340, 1.442695
  %v2342 = vpow.pop %v2341
  %v2343 = vadd.f32 %v2342, 1.0
  %v2344 = vrcp.pop %v2343
  %v2345 = vmul.f32 %v2343, %v2344
  %v2346 = vsub.f32 1.0, %v2345
  %v2347 = vmul.f32 %v2344, %v2346
  %v2348 = vadd.f32 %v2344, %v2347
  %vm2349 = vweird.f32 %v2343
  %vm2350 = vweird.f32 %v2344
  %vm2351 = vmor %vm2349, %vm2350
  %v2352 = vsel %vm2351, %v2344, %v2348
  %v2353 = vand.u32 2147483647, %v2343
  %vm2354 = vcmp.eq.f32.partialorder %v2353, 8.507059e+37
  %v2355 = vand.u32 %v2343, 2147483648
  %v2356 = vor.u32 1.1754944e-38, %v2355
  %v2357 = vsel %vm2354, %v2356, %v2352
  %v2358 = vmul.f32 1.0, %v2357
  %v2359 = vadd.f32 %v2312, %v1941
  %2361 = vrot.lane.b32.xlu0 %v2359, 64
  %v2362 = vpop.permute.xlu0 %2361
  %v2364 = vmul.f32 %v2358, %v2362
  %2366 = vrot.lane.b32.xlu0 %v2364, 64
  %v2367 = vpop.permute.xlu0 %2366
  %v2369 = vadd.f32 %v2290, %v2367
  %v2370 = vtanh.pop %v2369
  %v2371 = vsub.f32 1.0, %v2358
  %2373 = vrot.lane.b32.xlu0 %v2370, 96
  %v2374 = vpop.permute.xlu0 %2373
  %v2376 = vmul.f32 %v2371, %v2374
  %v2377 = vmul.f32 %v2358, %v2243
  %v2378 = vadd.f32 %v2376, %v2377
  %v2379 = vadd.f32 %v2291, %v2337
  %v2380 = vxor.u32 %v2379, 2147483648
  %v2381 = vmul.f32 %v2380, 1.442695
  %v2382 = vpow.pop %v2381
  %v2383 = vadd.f32 %v2382, 1.0
  %v2384 = vrcp.pop %v2383
  %v2385 = vmul.f32 %v2383, %v2384
  %v2386 = vsub.f32 1.0, %v2385
  %v2387 = vmul.f32 %v2384, %v2386
  %v2388 = vadd.f32 %v2384, %v2387
  %vm2389 = vweird.f32 %v2383
  %vm2390 = vweird.f32 %v2384
  %vm2391 = vmor %vm2389, %vm2390
  %v2392 = vsel %vm2391, %v2384, %v2388
  %v2393 = vand.u32 2147483647, %v2383
  %vm2394 = vcmp.eq.f32.partialorder %v2393, 8.507059e+37
  %v2395 = vand.u32 %v2383, 2147483648
  %v2396 = vor.u32 1.1754944e-38, %v2395
  %v2397 = vsel %vm2394, %v2396, %v2392
  %v2398 = vmul.f32 1.0, %v2397
  %v2399 = vadd.f32 %v2337, %v1989
  %2401 = vrot.lane.b32.xlu0 %v2399, 64
  %v2402 = vpop.permute.xlu0 %2401
  %v2404 = vmul.f32 %v2398, %v2402
  %2406 = vrot.lane.b32.xlu0 %v2404, 64
  %v2407 = vpop.permute.xlu0 %2406
  %v2409 = vadd.f32 %v2291, %v2407
  %v2410 = vtanh.pop %v2409
  %v2411 = vsub.f32 1.0, %v2398
  %2413 = vrot.lane.b32.xlu0 %v2410, 96
  %v2414 = vpop.permute.xlu0 %2413
  %v2416 = vmul.f32 %v2411, %v2414
  %v2417 = vmul.f32 %v2398, %v2283
  %v2418 = vadd.f32 %v2416, %v2417
  %2420 = vrot.lane.b32.xlu0 %v2378, 96
  %v2421 = vpop.permute.xlu0 %2420
  %2423 = vst.msk [vmem:[#allocation3 + $0x18] sm:$0xff] %vm190, %v2421
  %2424 = vst.msk [vmem:[#allocation3] sm:$0xff] %vm329, %v2418
  %v2425 = vld [vmem:[#allocation3] sm:$0xff]
  %v2426 = vld [vmem:[#allocation3 + $0x8] sm:$0xff]
  %v2427 = vld [vmem:[#allocation3 + $0x10] sm:$0xff]
  %v2428 = vld [vmem:[#allocation3 + $0x18] sm:$0xff]
  %v2429 = vld [vmem:[%s15] sm:$0xff]
  %v2430 = vld [vmem:[%s15 + $0x8] sm:$0xff]
  %v2431 = vld [vmem:[%s15 + $0x10] sm:$0xff]
  %v2432 = vld [vmem:[%s15 + $0x18] sm:$0xff]
  %v2433 = vld [vmem:[%s15 + $0x20] sm:$0xff]
  %v2434 = vld [vmem:[%s15 + $0x28] sm:$0xff]
  %v2435 = vld [vmem:[%s15 + $0x30] sm:$0xff]
  %v2436 = vld [vmem:[%s15 + $0x38] sm:$0xff]
  %v2437 = vld [vmem:[%s16] sm:$0x1]
  %v2439 = vperm.slane %v2437, 0
  %v2442 = vsel %vm936, %v2425, 0
  %v2445 = vsel %vm936, %v2426, 0
  %v2448 = vsel %vm936, %v2427, 0
  %v2451 = vsel %vm936, %v2428, 0
  %2453 = vmatpush.msra.mxu0 0.0
  %2454 = vmatpush.msra.mxu0 0.0
  %2455 = vmatpush.msra.mxu0 0.0
  %2456 = vmatpush.msra.mxu0 0.0
  %2457 = vmatpush.msra.mxu0 0.0
  %2458 = vmatpush.msra.mxu0 0.0
  %2459 = vmatpush.msra.mxu0 0.0
  %2460 = vmatpush.msra.mxu0 0.0
  %2461 = vmatpush.msra.mxu0 %v2436
  %2462 = vmatpush.msra.mxu0 %v2435
  %2463 = vmatpush.msra.mxu0 %v2434
  %2464 = vmatpush.msra.mxu0 %v2433
  %2465 = vmatpush.msra.mxu0 %v2432
  %2466 = vmatpush.msra.mxu0 %v2431
  %2467 = vmatpush.msra.mxu0 %v2430
  %2468 = vmatpush.msra.mxu0 %v2429
  %2469 = vmatmul.f32.gmra.mxu0 %v2442
  %v2470 = vpop.f32.mrf.mxu0
  %v2471 = vadd.f32 %v2439, %v2470
  %2472 = vmatmul.f32.gmra.mxu0 %v2445
  %v2473 = vpop.f32.mrf.mxu0
  %v2474 = vadd.f32 %v2439, %v2473
  %2475 = vmatmul.f32.gmra.mxu0 %v2448
  %v2476 = vpop.f32.mrf.mxu0
  %v2477 = vadd.f32 %v2439, %v2476
  %2478 = vmatmul.f32.gmra.mxu0 %v2451
  %v2479 = vpop.f32.mrf.mxu0
  %v2480 = vadd.f32 %v2439, %v2479
  %2481 = vdwg.mxu0
  %2482 = vst.msk [vmem:[#allocation2] sm:$0xff] %vm123, %v2471
  %2483 = vst.msk [vmem:[#allocation2 + $0x8] sm:$0xff] %vm123, %v2474
  %2484 = vst.msk [vmem:[#allocation2 + $0x10] sm:$0xff] %vm123, %v2477
  %2485 = vst.msk [vmem:[#allocation2 + $0x18] sm:$0xff] %vm123, %v2480
  %s2486 = scalar_lea.vmem %s15, 64
  %v2487 = vld [vmem:[%s2486] sm:$0xff]
  %v2488 = vld [vmem:[%s2486 + $0x8] sm:$0xff]
  %v2489 = vld [vmem:[%s2486 + $0x10] sm:$0xff]
  %v2490 = vld [vmem:[%s2486 + $0x18] sm:$0xff]
  %v2491 = vld [vmem:[%s2486 + $0x20] sm:$0xff]
  %v2492 = vld [vmem:[%s2486 + $0x28] sm:$0xff]
  %v2493 = vld [vmem:[%s2486 + $0x30] sm:$0xff]
  %v2494 = vld [vmem:[%s2486 + $0x38] sm:$0xff]
  %s2495 = scalar_lea.vmem %s16, 1
  %v2496 = vld [vmem:[%s2495] sm:$0x1]
  %v2498 = vperm.slane %v2496, 0
  %2500 = vmatpush.msra.mxu0 0.0
  %2501 = vmatpush.msra.mxu0 0.0
  %2502 = vmatpush.msra.mxu0 0.0
  %2503 = vmatpush.msra.mxu0 0.0
  %2504 = vmatpush.msra.mxu0 0.0
  %2505 = vmatpush.msra.mxu0 0.0
  %2506 = vmatpush.msra.mxu0 0.0
  %2507 = vmatpush.msra.mxu0 0.0
  %2508 = vmatpush.msra.mxu0 %v2494
  %2509 = vmatpush.msra.mxu0 %v2493
  %2510 = vmatpush.msra.mxu0 %v2492
  %2511 = vmatpush.msra.mxu0 %v2491
  %2512 = vmatpush.msra.mxu0 %v2490
  %2513 = vmatpush.msra.mxu0 %v2489
  %2514 = vmatpush.msra.mxu0 %v2488
  %2515 = vmatpush.msra.mxu0 %v2487
  %2516 = vmatmul.f32.gmra.mxu0 %v2442
  %v2517 = vpop.f32.mrf.mxu0
  %v2518 = vadd.f32 %v2498, %v2517
  %2519 = vmatmul.f32.gmra.mxu0 %v2445
  %v2520 = vpop.f32.mrf.mxu0
  %v2521 = vadd.f32 %v2498, %v2520
  %2522 = vmatmul.f32.gmra.mxu0 %v2448
  %v2523 = vpop.f32.mrf.mxu0
  %v2524 = vadd.f32 %v2498, %v2523
  %2525 = vmatmul.f32.gmra.mxu0 %v2451
  %v2526 = vpop.f32.mrf.mxu0
  %v2527 = vadd.f32 %v2498, %v2526
  %2528 = vdwg.mxu0
  %2529 = vst.msk [vmem:[%s170] sm:$0xff] %vm123, %v2518
  %2530 = vst.msk [vmem:[%s170 + $0x8] sm:$0xff] %vm123, %v2521
  %2531 = vst.msk [vmem:[%s170 + $0x10] sm:$0xff] %vm123, %v2524
  %2532 = vst.msk [vmem:[%s170 + $0x18] sm:$0xff] %vm123, %v2527
  %v2533 = vld [vmem:[%s17] sm:$0xff]
  %v2534 = vld [vmem:[%s17 + $0x8] sm:$0xff]
  %v2535 = vld [vmem:[%s17 + $0x10] sm:$0xff]
  %v2536 = vld [vmem:[%s17 + $0x18] sm:$0xff]
  %s2537 = scalar_lea.vmem %s17, 32
  %v2538 = vld [vmem:[%s2537] sm:$0xff]
  %v2539 = vld [vmem:[%s2537 + $0x8] sm:$0xff]
  %v2540 = vld [vmem:[%s2537 + $0x10] sm:$0xff]
  %v2541 = vld [vmem:[%s2537 + $0x18] sm:$0xff]
  %v2542 = vld [vmem:[%s18] sm:$0x1]
  %s2543 = scalar_lea.vmem %s18, 1
  %v2544 = vld [vmem:[%s2543] sm:$0x1]
  %v2545 = vld [vmem:[#allocation2] sm:$0xff]
  %v2546 = vld [vmem:[%s170 + $0x18] sm:$0xff]
  %v2548 = vsel %vm190, %v1734, 0
  %2550 = vmatpush.msra.mxu0 0.0
  %2551 = vmatpush.msra.mxu0 0.0
  %2552 = vmatpush.msra.mxu0 0.0
  %2553 = vmatpush.msra.mxu0 0.0
  %2554 = vmatpush.msra.mxu0 0.0
  %2555 = vmatpush.msra.mxu0 0.0
  %2556 = vmatpush.msra.mxu0 0.0
  %2557 = vmatpush.msra.mxu0 0.0
  %2558 = vmatpush.msra.mxu0 0.0
  %2559 = vmatpush.msra.mxu0 0.0
  %2560 = vmatpush.msra.mxu0 0.0
  %2561 = vmatpush.msra.mxu0 0.0
  %2562 = vmatpush.msra.mxu0 %v2536
  %2563 = vmatpush.msra.mxu0 %v2535
  %2564 = vmatpush.msra.mxu0 %v2534
  %2565 = vmatpush.msra.mxu0 %v2533
  %2566 = vmatmul.f32.gmra.mxu0 %v2548
  %v2567 = vpop.f32.mrf.mxu0
  %v2568 = vadd.f32 0.0, %v2567
  %2569 = vdwg.mxu0
  %v2571 = vsel %vm190, %v1758, 0
  %2573 = vmatpush.msra.mxu0 0.0
  %2574 = vmatpush.msra.mxu0 0.0
  %2575 = vmatpush.msra.mxu0 0.0
  %2576 = vmatpush.msra.mxu0 0.0
  %2577 = vmatpush.msra.mxu0 0.0
  %2578 = vmatpush.msra.mxu0 0.0
  %2579 = vmatpush.msra.mxu0 0.0
  %2580 = vmatpush.msra.mxu0 0.0
  %2581 = vmatpush.msra.mxu0 0.0
  %2582 = vmatpush.msra.mxu0 0.0
  %2583 = vmatpush.msra.mxu0 0.0
  %2584 = vmatpush.msra.mxu0 0.0
  %2585 = vmatpush.msra.mxu0 %v2541
  %2586 = vmatpush.msra.mxu0 %v2540
  %2587 = vmatpush.msra.mxu0 %v2539
  %2588 = vmatpush.msra.mxu0 %v2538
  %2589 = vmatmul.f32.gmra.mxu0 %v2571
  %v2590 = vpop.f32.mrf.mxu0
  %v2591 = vadd.f32 0.0, %v2590
  %2592 = vdwg.mxu0
  %v2593 = vadd.f32 %v2545, %v2568
  %v2594 = vxor.u32 %v2593, 2147483648
  %v2595 = vmul.f32 %v2594, 1.442695
  %v2596 = vpow.pop %v2595
  %v2597 = vadd.f32 %v2596, 1.0
  %v2598 = vrcp.pop %v2597
  %v2599 = vmul.f32 %v2597, %v2598
  %v2600 = vsub.f32 1.0, %v2599
  %v2601 = vmul.f32 %v2598, %v2600
  %v2602 = vadd.f32 %v2598, %v2601
  %vm2603 = vweird.f32 %v2597
  %vm2604 = vweird.f32 %v2598
  %vm2605 = vmor %vm2603, %vm2604
  %v2606 = vsel %vm2605, %v2598, %v2602
  %v2607 = vand.u32 2147483647, %v2597
  %vm2608 = vcmp.eq.f32.partialorder %v2607, 8.507059e+37
  %v2609 = vand.u32 %v2597, 2147483648
  %v2610 = vor.u32 1.1754944e-38, %v2609
  %v2611 = vsel %vm2608, %v2610, %v2606
  %v2612 = vmul.f32 1.0, %v2611
  %v2614 = vperm.slane %v2542, 0
  %2615 = vrot.lane.b32.xlu0 %v2614, 64
  %v2616 = vpop.permute.xlu0 %2615
  %v2618 = vadd.f32 %v2568, %v2616
  %2620 = vrot.lane.b32.xlu0 %v2618, 64
  %v2621 = vpop.permute.xlu0 %2620
  %v2623 = vmul.f32 %v2612, %v2621
  %2625 = vrot.lane.b32.xlu0 %v2623, 64
  %v2626 = vpop.permute.xlu0 %2625
  %v2628 = vadd.f32 %v2545, %v2626
  %v2629 = vtanh.pop %v2628
  %v2630 = vsub.f32 1.0, %v2612
  %2632 = vrot.lane.b32.xlu0 %v2629, 96
  %v2633 = vpop.permute.xlu0 %2632
  %v2635 = vmul.f32 %v2630, %v2633
  %2636 = vrot.lane.b32.xlu0 %v1734, 32
  %v2637 = vpop.permute.xlu0 %2636
  %v2639 = vmul.f32 %v2612, %v2637
  %v2640 = vadd.f32 %v2635, %v2639
  %v2641 = vadd.f32 %v2546, %v2591
  %v2642 = vxor.u32 %v2641, 2147483648
  %v2643 = vmul.f32 %v2642, 1.442695
  %v2644 = vpow.pop %v2643
  %v2645 = vadd.f32 %v2644, 1.0
  %v2646 = vrcp.pop %v2645
  %v2647 = vmul.f32 %v2645, %v2646
  %v2648 = vsub.f32 1.0, %v2647
  %v2649 = vmul.f32 %v2646, %v2648
  %v2650 = vadd.f32 %v2646, %v2649
  %vm2651 = vweird.f32 %v2645
  %vm2652 = vweird.f32 %v2646
  %vm2653 = vmor %vm2651, %vm2652
  %v2654 = vsel %vm2653, %v2646, %v2650
  %v2655 = vand.u32 2147483647, %v2645
  %vm2656 = vcmp.eq.f32.partialorder %v2655, 8.507059e+37
  %v2657 = vand.u32 %v2645, 2147483648
  %v2658 = vor.u32 1.1754944e-38, %v2657
  %v2659 = vsel %vm2656, %v2658, %v2654
  %v2660 = vmul.f32 1.0, %v2659
  %v2662 = vperm.slane %v2544, 0
  %2663 = vrot.lane.b32.xlu0 %v2662, 64
  %v2664 = vpop.permute.xlu0 %2663
  %v2666 = vadd.f32 %v2591, %v2664
  %2668 = vrot.lane.b32.xlu0 %v2666, 64
  %v2669 = vpop.permute.xlu0 %2668
  %v2671 = vmul.f32 %v2660, %v2669
  %2673 = vrot.lane.b32.xlu0 %v2671, 64
  %v2674 = vpop.permute.xlu0 %2673
  %v2676 = vadd.f32 %v2546, %v2674
  %v2677 = vtanh.pop %v2676
  %v2678 = vsub.f32 1.0, %v2660
  %2680 = vrot.lane.b32.xlu0 %v2677, 96
  %v2681 = vpop.permute.xlu0 %2680
  %v2683 = vmul.f32 %v2678, %v2681
  %2684 = vrot.lane.b32.xlu0 %v1758, 32
  %v2685 = vpop.permute.xlu0 %2684
  %v2687 = vmul.f32 %v2660, %v2685
  %v2688 = vadd.f32 %v2683, %v2687
  %2690 = vrot.lane.b32.xlu0 %v2640, 96
  %v2691 = vpop.permute.xlu0 %2690
  %2693 = vst.msk [vmem:[%s19] sm:$0xff] %vm190, %v2691
  %2694 = vst.msk [vmem:[%s19 + $0x18] sm:$0xff] %vm329, %v2688
  %v2695 = vld [vmem:[#allocation2 + $0x8] sm:$0xff]
  %v2696 = vld [vmem:[%s170 + $0x10] sm:$0xff]
  %v2697 = vsel %vm190, %v2691, 0
  %2699 = vmatpush.msra.mxu0 0.0
  %2700 = vmatpush.msra.mxu0 0.0
  %2701 = vmatpush.msra.mxu0 0.0
  %2702 = vmatpush.msra.mxu0 0.0
  %2703 = vmatpush.msra.mxu0 0.0
  %2704 = vmatpush.msra.mxu0 0.0
  %2705 = vmatpush.msra.mxu0 0.0
  %2706 = vmatpush.msra.mxu0 0.0
  %2707 = vmatpush.msra.mxu0 0.0
  %2708 = vmatpush.msra.mxu0 0.0
  %2709 = vmatpush.msra.mxu0 0.0
  %2710 = vmatpush.msra.mxu0 0.0
  %2711 = vmatpush.msra.mxu0 %v2536
  %2712 = vmatpush.msra.mxu0 %v2535
  %2713 = vmatpush.msra.mxu0 %v2534
  %2714 = vmatpush.msra.mxu0 %v2533
  %2715 = vmatmul.f32.gmra.mxu0 %v2697
  %v2716 = vpop.f32.mrf.mxu0
  %v2717 = vadd.f32 0.0, %v2716
  %2718 = vdwg.mxu0
  %2720 = vrot.lane.b32.xlu0 %v2688, 96
  %v2721 = vpop.permute.xlu0 %2720
  %v2722 = vsel %vm190, %v2721, 0
  %2724 = vmatpush.msra.mxu0 0.0
  %2725 = vmatpush.msra.mxu0 0.0
  %2726 = vmatpush.msra.mxu0 0.0
  %2727 = vmatpush.msra.mxu0 0.0
  %2728 = vmatpush.msra.mxu0 0.0
  %2729 = vmatpush.msra.mxu0 0.0
  %2730 = vmatpush.msra.mxu0 0.0
  %2731 = vmatpush.msra.mxu0 0.0
  %2732 = vmatpush.msra.mxu0 0.0
  %2733 = vmatpush.msra.mxu0 0.0
  %2734 = vmatpush.msra.mxu0 0.0
  %2735 = vmatpush.msra.mxu0 0.0
  %2736 = vmatpush.msra.mxu0 %v2541
  %2737 = vmatpush.msra.mxu0 %v2540
  %2738 = vmatpush.msra.mxu0 %v2539
  %2739 = vmatpush.msra.mxu0 %v2538
  %2740 = vmatmul.f32.gmra.mxu0 %v2722
  %v2741 = vpop.f32.mrf.mxu0
  %v2742 = vadd.f32 0.0, %v2741
  %2743 = vdwg.mxu0
  %v2744 = vadd.f32 %v2695, %v2717
  %v2745 = vxor.u32 %v2744, 2147483648
  %v2746 = vmul.f32 %v2745, 1.442695
  %v2747 = vpow.pop %v2746
  %v2748 = vadd.f32 %v2747, 1.0
  %v2749 = vrcp.pop %v2748
  %v2750 = vmul.f32 %v2748, %v2749
  %v2751 = vsub.f32 1.0, %v2750
  %v2752 = vmul.f32 %v2749, %v2751
  %v2753 = vadd.f32 %v2749, %v2752
  %vm2754 = vweird.f32 %v2748
  %vm2755 = vweird.f32 %v2749
  %vm2756 = vmor %vm2754, %vm2755
  %v2757 = vsel %vm2756, %v2749, %v2753
  %v2758 = vand.u32 2147483647, %v2748
  %vm2759 = vcmp.eq.f32.partialorder %v2758, 8.507059e+37
  %v2760 = vand.u32 %v2748, 2147483648
  %v2761 = vor.u32 1.1754944e-38, %v2760
  %v2762 = vsel %vm2759, %v2761, %v2757
  %v2763 = vmul.f32 1.0, %v2762
  %v2764 = vadd.f32 %v2717, %v2616
  %2766 = vrot.lane.b32.xlu0 %v2764, 64
  %v2767 = vpop.permute.xlu0 %2766
  %v2769 = vmul.f32 %v2763, %v2767
  %2771 = vrot.lane.b32.xlu0 %v2769, 64
  %v2772 = vpop.permute.xlu0 %2771
  %v2774 = vadd.f32 %v2695, %v2772
  %v2775 = vtanh.pop %v2774
  %v2776 = vsub.f32 1.0, %v2763
  %2778 = vrot.lane.b32.xlu0 %v2775, 96
  %v2779 = vpop.permute.xlu0 %2778
  %v2781 = vmul.f32 %v2776, %v2779
  %v2782 = vmul.f32 %v2763, %v2640
  %v2783 = vadd.f32 %v2781, %v2782
  %v2784 = vadd.f32 %v2696, %v2742
  %v2785 = vxor.u32 %v2784, 2147483648
  %v2786 = vmul.f32 %v2785, 1.442695
  %v2787 = vpow.pop %v2786
  %v2788 = vadd.f32 %v2787, 1.0
  %v2789 = vrcp.pop %v2788
  %v2790 = vmul.f32 %v2788, %v2789
  %v2791 = vsub.f32 1.0, %v2790
  %v2792 = vmul.f32 %v2789, %v2791
  %v2793 = vadd.f32 %v2789, %v2792
  %vm2794 = vweird.f32 %v2788
  %vm2795 = vweird.f32 %v2789
  %vm2796 = vmor %vm2794, %vm2795
  %v2797 = vsel %vm2796, %v2789, %v2793
  %v2798 = vand.u32 2147483647, %v2788
  %vm2799 = vcmp.eq.f32.partialorder %v2798, 8.507059e+37
  %v2800 = vand.u32 %v2788, 2147483648
  %v2801 = vor.u32 1.1754944e-38, %v2800
  %v2802 = vsel %vm2799, %v2801, %v2797
  %v2803 = vmul.f32 1.0, %v2802
  %v2804 = vadd.f32 %v2742, %v2664
  %2806 = vrot.lane.b32.xlu0 %v2804, 64
  %v2807 = vpop.permute.xlu0 %2806
  %v2809 = vmul.f32 %v2803, %v2807
  %2811 = vrot.lane.b32.xlu0 %v2809, 64
  %v2812 = vpop.permute.xlu0 %2811
  %v2814 = vadd.f32 %v2696, %v2812
  %v2815 = vtanh.pop %v2814
  %v2816 = vsub.f32 1.0, %v2803
  %2818 = vrot.lane.b32.xlu0 %v2815, 96
  %v2819 = vpop.permute.xlu0 %2818
  %v2821 = vmul.f32 %v2816, %v2819
  %v2822 = vmul.f32 %v2803, %v2688
  %v2823 = vadd.f32 %v2821, %v2822
  %2825 = vrot.lane.b32.xlu0 %v2783, 96
  %v2826 = vpop.permute.xlu0 %2825
  %2828 = vst.msk [vmem:[%s19 + $0x8] sm:$0xff] %vm190, %v2826
  %2829 = vst.msk [vmem:[%s19 + $0x10] sm:$0xff] %vm329, %v2823
  %v2830 = vld [vmem:[#allocation2 + $0x10] sm:$0xff]
  %v2831 = vld [vmem:[%s170 + $0x8] sm:$0xff]
  %v2832 = vsel %vm190, %v2826, 0
  %2834 = vmatpush.msra.mxu0 0.0
  %2835 = vmatpush.msra.mxu0 0.0
  %2836 = vmatpush.msra.mxu0 0.0
  %2837 = vmatpush.msra.mxu0 0.0
  %2838 = vmatpush.msra.mxu0 0.0
  %2839 = vmatpush.msra.mxu0 0.0
  %2840 = vmatpush.msra.mxu0 0.0
  %2841 = vmatpush.msra.mxu0 0.0
  %2842 = vmatpush.msra.mxu0 0.0
  %2843 = vmatpush.msra.mxu0 0.0
  %2844 = vmatpush.msra.mxu0 0.0
  %2845 = vmatpush.msra.mxu0 0.0
  %2846 = vmatpush.msra.mxu0 %v2536
  %2847 = vmatpush.msra.mxu0 %v2535
  %2848 = vmatpush.msra.mxu0 %v2534
  %2849 = vmatpush.msra.mxu0 %v2533
  %2850 = vmatmul.f32.gmra.mxu0 %v2832
  %v2851 = vpop.f32.mrf.mxu0
  %v2852 = vadd.f32 0.0, %v2851
  %2853 = vdwg.mxu0
  %2855 = vrot.lane.b32.xlu0 %v2823, 96
  %v2856 = vpop.permute.xlu0 %2855
  %v2857 = vsel %vm190, %v2856, 0
  %2859 = vmatpush.msra.mxu0 0.0
  %2860 = vmatpush.msra.mxu0 0.0
  %2861 = vmatpush.msra.mxu0 0.0
  %2862 = vmatpush.msra.mxu0 0.0
  %2863 = vmatpush.msra.mxu0 0.0
  %2864 = vmatpush.msra.mxu0 0.0
  %2865 = vmatpush.msra.mxu0 0.0
  %2866 = vmatpush.msra.mxu0 0.0
  %2867 = vmatpush.msra.mxu0 0.0
  %2868 = vmatpush.msra.mxu0 0.0
  %2869 = vmatpush.msra.mxu0 0.0
  %2870 = vmatpush.msra.mxu0 0.0
  %2871 = vmatpush.msra.mxu0 %v2541
  %2872 = vmatpush.msra.mxu0 %v2540
  %2873 = vmatpush.msra.mxu0 %v2539
  %2874 = vmatpush.msra.mxu0 %v2538
  %2875 = vmatmul.f32.gmra.mxu0 %v2857
  %v2876 = vpop.f32.mrf.mxu0
  %v2877 = vadd.f32 0.0, %v2876
  %2878 = vdwg.mxu0
  %v2879 = vadd.f32 %v2830, %v2852
  %v2880 = vxor.u32 %v2879, 2147483648
  %v2881 = vmul.f32 %v2880, 1.442695
  %v2882 = vpow.pop %v2881
  %v2883 = vadd.f32 %v2882, 1.0
  %v2884 = vrcp.pop %v2883
  %v2885 = vmul.f32 %v2883, %v2884
  %v2886 = vsub.f32 1.0, %v2885
  %v2887 = vmul.f32 %v2884, %v2886
  %v2888 = vadd.f32 %v2884, %v2887
  %vm2889 = vweird.f32 %v2883
  %vm2890 = vweird.f32 %v2884
  %vm2891 = vmor %vm2889, %vm2890
  %v2892 = vsel %vm2891, %v2884, %v2888
  %v2893 = vand.u32 2147483647, %v2883
  %vm2894 = vcmp.eq.f32.partialorder %v2893, 8.507059e+37
  %v2895 = vand.u32 %v2883, 2147483648
  %v2896 = vor.u32 1.1754944e-38, %v2895
  %v2897 = vsel %vm2894, %v2896, %v2892
  %v2898 = vmul.f32 1.0, %v2897
  %v2899 = vadd.f32 %v2852, %v2616
  %2901 = vrot.lane.b32.xlu0 %v2899, 64
  %v2902 = vpop.permute.xlu0 %2901
  %v2904 = vmul.f32 %v2898, %v2902
  %2906 = vrot.lane.b32.xlu0 %v2904, 64
  %v2907 = vpop.permute.xlu0 %2906
  %v2909 = vadd.f32 %v2830, %v2907
  %v2910 = vtanh.pop %v2909
  %v2911 = vsub.f32 1.0, %v2898
  %2913 = vrot.lane.b32.xlu0 %v2910, 96
  %v2914 = vpop.permute.xlu0 %2913
  %v2916 = vmul.f32 %v2911, %v2914
  %v2917 = vmul.f32 %v2898, %v2783
  %v2918 = vadd.f32 %v2916, %v2917
  %v2919 = vadd.f32 %v2831, %v2877
  %v2920 = vxor.u32 %v2919, 2147483648
  %v2921 = vmul.f32 %v2920, 1.442695
  %v2922 = vpow.pop %v2921
  %v2923 = vadd.f32 %v2922, 1.0
  %v2924 = vrcp.pop %v2923
  %v2925 = vmul.f32 %v2923, %v2924
  %v2926 = vsub.f32 1.0, %v2925
  %v2927 = vmul.f32 %v2924, %v2926
  %v2928 = vadd.f32 %v2924, %v2927
  %vm2929 = vweird.f32 %v2923
  %vm2930 = vweird.f32 %v2924
  %vm2931 = vmor %vm2929, %vm2930
  %v2932 = vsel %vm2931, %v2924, %v2928
  %v2933 = vand.u32 2147483647, %v2923
  %vm2934 = vcmp.eq.f32.partialorder %v2933, 8.507059e+37
  %v2935 = vand.u32 %v2923, 2147483648
  %v2936 = vor.u32 1.1754944e-38, %v2935
  %v2937 = vsel %vm2934, %v2936, %v2932
  %v2938 = vmul.f32 1.0, %v2937
  %v2939 = vadd.f32 %v2877, %v2664
  %2941 = vrot.lane.b32.xlu0 %v2939, 64
  %v2942 = vpop.permute.xlu0 %2941
  %v2944 = vmul.f32 %v2938, %v2942
  %2946 = vrot.lane.b32.xlu0 %v2944, 64
  %v2947 = vpop.permute.xlu0 %2946
  %v2949 = vadd.f32 %v2831, %v2947
  %v2950 = vtanh.pop %v2949
  %v2951 = vsub.f32 1.0, %v2938
  %2953 = vrot.lane.b32.xlu0 %v2950, 96
  %v2954 = vpop.permute.xlu0 %2953
  %v2956 = vmul.f32 %v2951, %v2954
  %v2957 = vmul.f32 %v2938, %v2823
  %v2958 = vadd.f32 %v2956, %v2957
  %2960 = vrot.lane.b32.xlu0 %v2918, 96
  %v2961 = vpop.permute.xlu0 %2960
  %2963 = vst.msk [vmem:[%s19 + $0x10] sm:$0xff] %vm190, %v2961
  %2964 = vst.msk [vmem:[%s19 + $0x8] sm:$0xff] %vm329, %v2958
  %v2965 = vld [vmem:[#allocation2 + $0x18] sm:$0xff]
  %v2966 = vld [vmem:[%s170] sm:$0xff]
  %v2967 = vsel %vm190, %v2961, 0
  %2969 = vmatpush.msra.mxu0 0.0
  %2970 = vmatpush.msra.mxu0 0.0
  %2971 = vmatpush.msra.mxu0 0.0
  %2972 = vmatpush.msra.mxu0 0.0
  %2973 = vmatpush.msra.mxu0 0.0
  %2974 = vmatpush.msra.mxu0 0.0
  %2975 = vmatpush.msra.mxu0 0.0
  %2976 = vmatpush.msra.mxu0 0.0
  %2977 = vmatpush.msra.mxu0 0.0
  %2978 = vmatpush.msra.mxu0 0.0
  %2979 = vmatpush.msra.mxu0 0.0
  %2980 = vmatpush.msra.mxu0 0.0
  %2981 = vmatpush.msra.mxu0 %v2536
  %2982 = vmatpush.msra.mxu0 %v2535
  %2983 = vmatpush.msra.mxu0 %v2534
  %2984 = vmatpush.msra.mxu0 %v2533
  %2985 = vmatmul.f32.gmra.mxu0 %v2967
  %v2986 = vpop.f32.mrf.mxu0
  %v2987 = vadd.f32 0.0, %v2986
  %2988 = vdwg.mxu0
  %2990 = vrot.lane.b32.xlu0 %v2958, 96
  %v2991 = vpop.permute.xlu0 %2990
  %v2992 = vsel %vm190, %v2991, 0
  %2994 = vmatpush.msra.mxu0 0.0
  %2995 = vmatpush.msra.mxu0 0.0
  %2996 = vmatpush.msra.mxu0 0.0
  %2997 = vmatpush.msra.mxu0 0.0
  %2998 = vmatpush.msra.mxu0 0.0
  %2999 = vmatpush.msra.mxu0 0.0
  %3000 = vmatpush.msra.mxu0 0.0
  %3001 = vmatpush.msra.mxu0 0.0
  %3002 = vmatpush.msra.mxu0 0.0
  %3003 = vmatpush.msra.mxu0 0.0
  %3004 = vmatpush.msra.mxu0 0.0
  %3005 = vmatpush.msra.mxu0 0.0
  %3006 = vmatpush.msra.mxu0 %v2541
  %3007 = vmatpush.msra.mxu0 %v2540
  %3008 = vmatpush.msra.mxu0 %v2539
  %3009 = vmatpush.msra.mxu0 %v2538
  %3010 = vmatmul.f32.gmra.mxu0 %v2992
  %v3011 = vpop.f32.mrf.mxu0
  %v3012 = vadd.f32 0.0, %v3011
  %3013 = vdwg.mxu0
  %v3014 = vadd.f32 %v2965, %v2987
  %v3015 = vxor.u32 %v3014, 2147483648
  %v3016 = vmul.f32 %v3015, 1.442695
  %v3017 = vpow.pop %v3016
  %v3018 = vadd.f32 %v3017, 1.0
  %v3019 = vrcp.pop %v3018
  %v3020 = vmul.f32 %v3018, %v3019
  %v3021 = vsub.f32 1.0, %v3020
  %v3022 = vmul.f32 %v3019, %v3021
  %v3023 = vadd.f32 %v3019, %v3022
  %vm3024 = vweird.f32 %v3018
  %vm3025 = vweird.f32 %v3019
  %vm3026 = vmor %vm3024, %vm3025
  %v3027 = vsel %vm3026, %v3019, %v3023
  %v3028 = vand.u32 2147483647, %v3018
  %vm3029 = vcmp.eq.f32.partialorder %v3028, 8.507059e+37
  %v3030 = vand.u32 %v3018, 2147483648
  %v3031 = vor.u32 1.1754944e-38, %v3030
  %v3032 = vsel %vm3029, %v3031, %v3027
  %v3033 = vmul.f32 1.0, %v3032
  %v3034 = vadd.f32 %v2987, %v2616
  %3036 = vrot.lane.b32.xlu0 %v3034, 64
  %v3037 = vpop.permute.xlu0 %3036
  %v3039 = vmul.f32 %v3033, %v3037
  %3041 = vrot.lane.b32.xlu0 %v3039, 64
  %v3042 = vpop.permute.xlu0 %3041
  %v3044 = vadd.f32 %v2965, %v3042
  %v3045 = vtanh.pop %v3044
  %v3046 = vsub.f32 1.0, %v3033
  %3048 = vrot.lane.b32.xlu0 %v3045, 96
  %v3049 = vpop.permute.xlu0 %3048
  %v3051 = vmul.f32 %v3046, %v3049
  %v3052 = vmul.f32 %v3033, %v2918
  %v3053 = vadd.f32 %v3051, %v3052
  %v3054 = vadd.f32 %v2966, %v3012
  %v3055 = vxor.u32 %v3054, 2147483648
  %v3056 = vmul.f32 %v3055, 1.442695
  %v3057 = vpow.pop %v3056
  %v3058 = vadd.f32 %v3057, 1.0
  %v3059 = vrcp.pop %v3058
  %v3060 = vmul.f32 %v3058, %v3059
  %v3061 = vsub.f32 1.0, %v3060
  %v3062 = vmul.f32 %v3059, %v3061
  %v3063 = vadd.f32 %v3059, %v3062
  %vm3064 = vweird.f32 %v3058
  %vm3065 = vweird.f32 %v3059
  %vm3066 = vmor %vm3064, %vm3065
  %v3067 = vsel %vm3066, %v3059, %v3063
  %v3068 = vand.u32 2147483647, %v3058
  %vm3069 = vcmp.eq.f32.partialorder %v3068, 8.507059e+37
  %v3070 = vand.u32 %v3058, 2147483648
  %v3071 = vor.u32 1.1754944e-38, %v3070
  %v3072 = vsel %vm3069, %v3071, %v3067
  %v3073 = vmul.f32 1.0, %v3072
  %v3074 = vadd.f32 %v3012, %v2664
  %3076 = vrot.lane.b32.xlu0 %v3074, 64
  %v3077 = vpop.permute.xlu0 %3076
  %v3079 = vmul.f32 %v3073, %v3077
  %3081 = vrot.lane.b32.xlu0 %v3079, 64
  %v3082 = vpop.permute.xlu0 %3081
  %v3084 = vadd.f32 %v2966, %v3082
  %v3085 = vtanh.pop %v3084
  %v3086 = vsub.f32 1.0, %v3073
  %3088 = vrot.lane.b32.xlu0 %v3085, 96
  %v3089 = vpop.permute.xlu0 %3088
  %v3091 = vmul.f32 %v3086, %v3089
  %v3092 = vmul.f32 %v3073, %v2958
  %v3093 = vadd.f32 %v3091, %v3092
  %3095 = vrot.lane.b32.xlu0 %v3053, 96
  %v3096 = vpop.permute.xlu0 %3095
  %3098 = vst.msk [vmem:[%s19 + $0x18] sm:$0xff] %vm190, %v3096
  %3099 = vst.msk [vmem:[%s19] sm:$0xff] %vm329, %v3093
  // Predicated region
  $region78: #{graph_seq2seq_forward.1} parent=0 // pred_check
    _
  $region79: #{graph_seq2seq_forward.1} parent=0 // pred_check_branch
    %3101 = sbr.rel (0) target = $region81
  $region80: #{graph_seq2seq_forward.1} parent=0 // pred_region
    _
  $region81: #{graph_seq2seq_forward.1} parent=0 // pred_fallthru
    _
  // Predicated region
  $region82: #{graph_seq2seq_forward.1} parent=0 // pred_check
    _
  $region83: #{graph_seq2seq_forward.1} parent=0 // pred_check_branch
    %3103 = sbr.rel (0) target = $region85
  $region84: #{graph_seq2seq_forward.1} parent=0 // pred_region
    _
  $region85: #{graph_seq2seq_forward.1} parent=0 // pred_fallthru
    _

</llo_original>
